<compile_context>
chip_gen: v7x
topology: tpu7x:2x2x1
jax: 0.10.0
libtpu: 0.0.40
codegen_flags: <defaults>
</compile_context>

<pallas_src>
import numpy as np
import jax
import jax.numpy as jnp
from jax.experimental import pallas as pl
from jax.experimental.pallas import tpu as pltpu

_LANE = 128


def _round_up(x, m):
    return (x + m - 1) // m * m


# ----------------------------------------------------------------------------
# Conv (as im2col matmul) + bias + ReLU kernel (lane-dense, M-tiled)
# ----------------------------------------------------------------------------
def _matmul_bias_relu_kernel(p_ref, w_ref, b_ref, o_ref):
    acc = jnp.dot(p_ref[...], w_ref[...], preferred_element_type=jnp.float32)
    o_ref[...] = jnp.maximum(acc + b_ref[...], 0.0)


def conv2d_relu(x_nhwc, w_packed, b_packed, oc, kh, kw, stride, row_tile=1024):
    """Valid-padding Conv2d + ReLU via im2col + Pallas matmul.

    w_packed: (kh*kw*C, OCP) with OCP a multiple of 128 (zero-padded columns).
    b_packed: (1, OCP).
    """
    N, H, W, C = x_nhwc.shape
    OH = (H - kh) // stride + 1
    OW = (W - kw) // stride + 1
    K, OCP = w_packed.shape

    # im2col glue (plain JAX): patch K-axis ordered (kh, kw, c), matching the
    # (2, 3, 1, 0) weight transpose done in prepare_params().
    cols = []
    for i in range(kh):
        for j in range(kw):
            cols.append(
                x_nhwc[:, i:i + stride * OH:stride, j:j + stride * OW:stride, :])
    patches = jnp.concatenate(cols, axis=-1).reshape(N * OH * OW, K)
    M = patches.shape[0]

    # Tile over rows: single full block if it fits, else 1024-row tiles
    # (multiple of 8) with zero-padded tail rows (sliced off afterwards).
    if M <= row_tile:
        tm, Mp = M, M
    else:
        tm = row_tile
        Mp = _round_up(M, tm)
        patches = jnp.pad(patches, ((0, Mp - M), (0, 0)))
    grid_m = Mp // tm

    out = pl.pallas_call(
        _matmul_bias_relu_kernel,
        out_shape=jax.ShapeDtypeStruct((Mp, OCP), jnp.float32),
        grid=(grid_m,),
        in_specs=[
            pl.BlockSpec((tm, K), lambda i: (i, 0)),
            pl.BlockSpec((K, OCP), lambda i: (0, 0)),
            pl.BlockSpec((1, OCP), lambda i: (0, 0)),
        ],
        out_specs=pl.BlockSpec((tm, OCP), lambda i: (i, 0)),
        compiler_params=pltpu.CompilerParams(
            dimension_semantics=("parallel",)),
    )(patches, w_packed, b_packed)
    return out[:M, :oc].reshape(N, OH, OW, oc)


# ----------------------------------------------------------------------------
# GRU kernel: hoisted input projection + fused gate weights + in-kernel loop
# ----------------------------------------------------------------------------
def _make_gru_kernel(T, B, H):
    def kernel(seq_ref, wih_ref, whh_ref, bi_ref, bh_ref, h_out_ref, gi_scr):
        # Hoisted input projection: ONE matmul covering every timestep.
        gi_scr[...] = (
            jnp.dot(seq_ref[...], wih_ref[...],
                    preferred_element_type=jnp.float32) + bi_ref[...])
        whh = whh_ref[...]          # (H, GP) fused [r | z | n] gate weights
        bh = bh_ref[...]            # (1, GP)
        h = jnp.zeros((B, H), jnp.float32)
        # T is small and static: unrolled loop with static slices; one fused
        # (B, H) x (H, 3H) MXU op per step, no per-step grid/DMA overhead.
        for t in range(T):
            gi_t = gi_scr[t * B:(t + 1) * B, :]
            gh = jnp.dot(h, whh, preferred_element_type=jnp.float32) + bh
            r = jax.nn.sigmoid(gi_t[:, 0:H] + gh[:, 0:H])
            z = jax.nn.sigmoid(gi_t[:, H:2 * H] + gh[:, H:2 * H])
            n = jnp.tanh(gi_t[:, 2 * H:3 * H] + r * gh[:, 2 * H:3 * H])
            h = (1.0 - z) * n + z * h
        h_out_ref[...] = h
    return kernel


def gru_final_hidden(seq2d, wih_p, whh_p, bi_p, bh_p, T, B):
    """seq2d: (T*B, D) time-major rows. Returns the final hidden state (B, H)."""
    TB, D = seq2d.shape
    H, GP = whh_p.shape
    return pl.pallas_call(
        _make_gru_kernel(T, B, H),
        out_shape=jax.ShapeDtypeStruct((B, H), jnp.float32),
        grid=(1,),
        in_specs=[
            pl.BlockSpec((TB, D), lambda i: (0, 0)),
            pl.BlockSpec((D, GP), lambda i: (0, 0)),
            pl.BlockSpec((H, GP), lambda i: (0, 0)),
            pl.BlockSpec((1, GP), lambda i: (0, 0)),
            pl.BlockSpec((1, GP), lambda i: (0, 0)),
        ],
        out_specs=pl.BlockSpec((B, H), lambda i: (0, 0)),
        scratch_shapes=[pltpu.VMEM((TB, GP), jnp.float32)],
    )(seq2d, wih_p, whh_p, bi_p, bh_p)


# ----------------------------------------------------------------------------
# One-time weight packing (transpose / fuse gates / pad to 128 lanes)
# ----------------------------------------------------------------------------
def prepare_params(params, hidden_size):
    H = hidden_size
    GP = _round_up(3 * H, _LANE)

    def pack_conv(w_oihw, b):
        OC, IC, KH, KW = w_oihw.shape
        K = KH * KW * IC
        OCP = _round_up(OC, _LANE)
        w = jnp.transpose(w_oihw, (2, 3, 1, 0)).reshape(K, OC)  # (kh,kw,c) rows
        w = jnp.pad(w, ((0, 0), (0, OCP - OC)))
        return w, jnp.pad(b, (0, OCP - OC)).reshape(1, OCP)

    c1w, c1b = pack_conv(params["conv1_w"], params["conv1_b"])
    c2w, c2b = pack_conv(params["conv2_w"], params["conv2_b"])
    gpad = ((0, 0), (0, GP - 3 * H))
    return dict(
        conv1_w=c1w, conv1_b=c1b, conv2_w=c2w, conv2_b=c2b,
        # PyTorch packs gates as [r, z, n] rows of W_ih (3H, D) / W_hh (3H, H);
        # transposing keeps that order along the lane axis of (D, 3H)/(H, 3H).
        gru_wih=jnp.pad(params["gru_w_ih"].T, gpad),
        gru_whh=jnp.pad(params["gru_w_hh"].T, gpad),
        gru_bi=jnp.pad(params["gru_b_ih"], (0, GP - 3 * H)).reshape(1, GP),
        gru_bh=jnp.pad(params["gru_b_hh"], (0, GP - 3 * H)).reshape(1, GP),
    )


# ----------------------------------------------------------------------------
# RolloutEncoder forward
# ----------------------------------------------------------------------------
def rollout_encoder_forward(prepped, state, reward):
    # state: (T, B, C, H, W)   reward: (T, B, num_rewards)
    T, B, C, H, W = state.shape
    x = state.reshape(T * B, C, H, W)
    x = jnp.transpose(x, (0, 2, 3, 1))                       # NCHW -> NHWC
    # nn.Conv2d(C, 16, 3, stride=1) + ReLU ; nn.Conv2d(16, 16, 3, stride=2) + ReLU
    x = conv2d_relu(x, prepped["conv1_w"], prepped["conv1_b"],
                    oc=16, kh=3, kw=3, stride=1)
    x = conv2d_relu(x, prepped["conv2_w"], prepped["conv2_b"],
                    oc=16, kh=3, kw=3, stride=2)
    # flatten in PyTorch (C, H, W) order
    x = jnp.transpose(x, (0, 3, 1, 2)).reshape(T * B, -1)
    seq2d = jnp.concatenate([x, reward.reshape(T * B, -1)], axis=1)  # (T*B, D)
    return gru_final_hidden(seq2d, prepped["gru_wih"], prepped["gru_whh"],
                            prepped["gru_bi"], prepped["gru_bh"], T, B)


# ----------------------------------------------------------------------------
# Deterministic (synthetic) parameter init matching nn.Module shapes
# ----------------------------------------------------------------------------
def init_params(key, in_shape, num_rewards, hidden_size):
    C, H, W = in_shape
    oh1, ow1 = H - 2, W - 2                               # conv1: k=3, s=1
    oh2, ow2 = (oh1 - 3) // 2 + 1, (ow1 - 3) // 2 + 1     # conv2: k=3, s=2
    feat = 16 * oh2 * ow2
    D = feat + num_rewards
    ks = jax.random.split(key, 8)

    def u(k, shape, fan_in):
        bound = 1.0 / np.sqrt(fan_in)
        return jax.random.uniform(k, shape, jnp.float32, -bound, bound)

    return dict(
        conv1_w=u(ks[0], (16, C, 3, 3), C * 9),
        conv1_b=u(ks[1], (16,), C * 9),
        conv2_w=u(ks[2], (16, 16, 3, 3), 16 * 9),
        conv2_b=u(ks[3], (16,), 16 * 9),
        gru_w_ih=u(ks[4], (3 * hidden_size, D), hidden_size),
        gru_w_hh=u(ks[5], (3 * hidden_size, hidden_size), hidden_size),
        gru_b_ih=u(ks[6], (3 * hidden_size,), hidden_size),
        gru_b_hh=u(ks[7], (3 * hidden_size,), hidden_size),
    )


# ----------------------------------------------------------------------------
# Pure-JAX reference (for correctness check)
# ----------------------------------------------------------------------------
def reference_forward(params, state, reward, hidden_size):
    T, B, C, H, W = state.shape
    x = state.reshape(T * B, C, H, W)

    def conv(x, w, b, stride):
        y = jax.lax.conv_general_dilated(
            x, w, (stride, stride), "VALID",
            dimension_numbers=("NCHW", "OIHW", "NCHW"))
        return jnp.maximum(y + b[None, :, None, None], 0.0)

    x = conv(x, params["conv1_w"], params["conv1_b"], 1)
    x = conv(x, params["conv2_w"], params["conv2_b"], 2)
    seq = jnp.concatenate([x.reshape(T, B, -1), reward], axis=2)

    Hs = hidden_size
    w_ih, w_hh = params["gru_w_ih"], params["gru_w_hh"]
    b_ih, b_hh = params["gru_b_ih"], params["gru_b_hh"]
    h = jnp.zeros((B, Hs), jnp.float32)
    for t in range(T):
        gi = seq[t] @ w_ih.T + b_ih
        gh = h @ w_hh.T + b_hh
        r = jax.nn.sigmoid(gi[:, :Hs] + gh[:, :Hs])
        z = jax.nn.sigmoid(gi[:, Hs:2 * Hs] + gh[:, Hs:2 * Hs])
        n = jnp.tanh(gi[:, 2 * Hs:] + r * gh[:, 2 * Hs:])
        h = (1.0 - z) * n + z * h
    return h


if __name__ == "__main__":
    in_shape = (4, 16, 16)      # (C, H, W) like the PyTorch module's in_shape
    num_rewards = 1
    hidden_size = 32
    T, B = 8, 2                 # num_steps, batch_size

    key = jax.random.PRNGKey(0)
    kp, ks, kr = jax.random.split(key, 3)
    params = init_params(kp, in_shape, num_rewards, hidden_size)
    prepped = prepare_params(params, hidden_size)       # packed once, reused
    state = jax.random.normal(ks, (T, B, *in_shape), jnp.float32)
    reward = jax.random.normal(kr, (T, B, num_rewards), jnp.float32)

    fwd = jax.jit(rollout_encoder_forward)
    out = jax.block_until_ready(fwd(prepped, state, reward))
    assert out.shape == (B, hidden_size)
    assert bool(jnp.all(jnp.isfinite(out)))

    ref = reference_forward(params, state, reward, hidden_size)
    # Tolerance covers MXU default-precision rounding on different summation
    # orders; still far below any layout/ordering mistake (O(0.1-1)).
    err = float(np.max(np.abs(np.asarray(out) - np.asarray(ref))))
    assert np.allclose(np.asarray(out), np.asarray(ref), atol=5e-3, rtol=5e-3), (
        "max abs diff = %g" % err)

    print("KERNEL_OK")
</pallas_src>

<mosaic_0001>
module attributes {stable_mosaic.version = 11 : i64} {
  func.func @_matmul_bias_relu_kernel(%arg0: i32, %arg1: memref<1024x36xf32, #tpu.memory_space<vmem>>, %arg2: memref<36x128xf32, #tpu.memory_space<vmem>>, %arg3: memref<1x128xf32, #tpu.memory_space<vmem>>, %arg4: memref<1024x128xf32, #tpu.memory_space<vmem>>) attributes {dimension_semantics = [#tpu.dimension_semantics<parallel>], iteration_bounds = array<i64: 4>, scalar_prefetch = 0 : i64, scratch_operands = 0 : i64, tpu.core_type = #tpu.core_type<tc>, window_params = [{transform_indices = @transform_0, window_bounds = array<i64: 1024, 36>}, {pipeline_mode = #tpu.pipeline_mode<synchronous>, transform_indices = @transform_1, window_bounds = array<i64: 36, 128>}, {pipeline_mode = #tpu.pipeline_mode<synchronous>, transform_indices = @transform_2, window_bounds = array<i64: 1, 128>}, {transform_indices = @transform_3, window_bounds = array<i64: 1024, 128>}]} {
    %c0 = arith.constant 0 : index
    %c0_0 = arith.constant 0 : index
    %0 = vector.load %arg1[%c0, %c0_0] : memref<1024x36xf32, #tpu.memory_space<vmem>>, vector<1024x36xf32>
    %c0_1 = arith.constant 0 : index
    %c0_2 = arith.constant 0 : index
    %1 = vector.load %arg2[%c0_1, %c0_2] : memref<36x128xf32, #tpu.memory_space<vmem>>, vector<36x128xf32>
    %cst = arith.constant dense<0.000000e+00> : vector<1024x128xf32>
    %2 = tpu.matmul %0, %1, %cst {dimension_numbers = #tpu.dot_dimension_numbers<[1], [0], [0], [1], [0, 0, 1, 1], [], []>} : vector<1024x36xf32>, vector<36x128xf32>, vector<1024x128xf32> -> vector<1024x128xf32>
    %c0_3 = arith.constant 0 : index
    %c0_4 = arith.constant 0 : index
    %3 = vector.load %arg3[%c0_3, %c0_4] : memref<1x128xf32, #tpu.memory_space<vmem>>, vector<1x128xf32>
    %4 = vector.broadcast %3 : vector<1x128xf32> to vector<1024x128xf32>
    %5 = arith.addf %2, %4 : vector<1024x128xf32>
    %cst_5 = arith.constant 0.000000e+00 : f32
    %6 = vector.broadcast %cst_5 : f32 to vector<1024x128xf32>
    %7 = arith.maximumf %5, %6 : vector<1024x128xf32>
    %c0_6 = arith.constant 0 : index
    %c0_7 = arith.constant 0 : index
    %8 = vector.load %arg4[%c0_6, %c0_7] : memref<1024x128xf32, #tpu.memory_space<vmem>>, vector<1024x128xf32>
    tpu.vector_store %arg4[%c0_6, %c0_7], %7 {strides = array<i32>} : memref<1024x128xf32, #tpu.memory_space<vmem>>, vector<1024x128xf32>,
    return
  }
  func.func @transform_0(%arg0: i32) -> (i32, i32) {
    %c0_i32 = arith.constant 0 : i32
    %c0_i32_0 = arith.constant 0 : i32
    return %arg0, %c0_i32 : i32, i32
  }
  func.func @transform_1(%arg0: i32) -> (i32, i32) {
    %c0_i32 = arith.constant 0 : i32
    %c0_i32_0 = arith.constant 0 : i32
    %c0_i32_1 = arith.constant 0 : i32
    return %c0_i32, %c0_i32_0 : i32, i32
  }
  func.func @transform_2(%arg0: i32) -> (i32, i32) {
    %c0_i32 = arith.constant 0 : i32
    %c0_i32_0 = arith.constant 0 : i32
    %c0_i32_1 = arith.constant 0 : i32
    return %c0_i32, %c0_i32_0 : i32, i32
  }
  func.func @transform_3(%arg0: i32) -> (i32, i32) {
    %c0_i32 = arith.constant 0 : i32
    %c0_i32_0 = arith.constant 0 : i32
    return %arg0, %c0_i32 : i32, i32
  }
}

module attributes {stable_mosaic.version = 11 : i64} {
  func.func @_matmul_bias_relu_kernel(%arg0: i32, %arg1: memref<576x144xf32, #tpu.memory_space<vmem>>, %arg2: memref<144x128xf32, #tpu.memory_space<vmem>>, %arg3: memref<1x128xf32, #tpu.memory_space<vmem>>, %arg4: memref<576x128xf32, #tpu.memory_space<vmem>>) attributes {dimension_semantics = [#tpu.dimension_semantics<parallel>], iteration_bounds = array<i64: 1>, scalar_prefetch = 0 : i64, scratch_operands = 0 : i64, tpu.core_type = #tpu.core_type<tc>, window_params = [{transform_indices = @transform_0, window_bounds = array<i64: 576, 144>}, {pipeline_mode = #tpu.pipeline_mode<synchronous>, transform_indices = @transform_1, window_bounds = array<i64: 144, 128>}, {pipeline_mode = #tpu.pipeline_mode<synchronous>, transform_indices = @transform_2, window_bounds = array<i64: 1, 128>}, {transform_indices = @transform_3, window_bounds = array<i64: 576, 128>}]} {
    %c0 = arith.constant 0 : index
    %c0_0 = arith.constant 0 : index
    %0 = vector.load %arg1[%c0, %c0_0] : memref<576x144xf32, #tpu.memory_space<vmem>>, vector<576x144xf32>
    %c0_1 = arith.constant 0 : index
    %c0_2 = arith.constant 0 : index
    %1 = vector.load %arg2[%c0_1, %c0_2] : memref<144x128xf32, #tpu.memory_space<vmem>>, vector<144x128xf32>
    %cst = arith.constant dense<0.000000e+00> : vector<576x128xf32>
    %2 = tpu.matmul %0, %1, %cst {dimension_numbers = #tpu.dot_dimension_numbers<[1], [0], [0], [1], [0, 0, 1, 1], [], []>} : vector<576x144xf32>, vector<144x128xf32>, vector<576x128xf32> -> vector<576x128xf32>
    %c0_3 = arith.constant 0 : index
    %c0_4 = arith.constant 0 : index
    %3 = vector.load %arg3[%c0_3, %c0_4] : memref<1x128xf32, #tpu.memory_space<vmem>>, vector<1x128xf32>
    %4 = vector.broadcast %3 : vector<1x128xf32> to vector<576x128xf32>
    %5 = arith.addf %2, %4 : vector<576x128xf32>
    %cst_5 = arith.constant 0.000000e+00 : f32
    %6 = vector.broadcast %cst_5 : f32 to vector<576x128xf32>
    %7 = arith.maximumf %5, %6 : vector<576x128xf32>
    %c0_6 = arith.constant 0 : index
    %c0_7 = arith.constant 0 : index
    %8 = vector.load %arg4[%c0_6, %c0_7] : memref<576x128xf32, #tpu.memory_space<vmem>>, vector<576x128xf32>
    tpu.vector_store %arg4[%c0_6, %c0_7], %7 {strides = array<i32>} : memref<576x128xf32, #tpu.memory_space<vmem>>, vector<576x128xf32>,
    return
  }
  func.func @transform_0(%arg0: i32) -> (i32, i32) {
    %c0_i32 = arith.constant 0 : i32
    %c0_i32_0 = arith.constant 0 : i32
    return %arg0, %c0_i32 : i32, i32
  }
  func.func @transform_1(%arg0: i32) -> (i32, i32) {
    %c0_i32 = arith.constant 0 : i32
    %c0_i32_0 = arith.constant 0 : i32
    %c0_i32_1 = arith.constant 0 : i32
    return %c0_i32, %c0_i32_0 : i32, i32
  }
  func.func @transform_2(%arg0: i32) -> (i32, i32) {
    %c0_i32 = arith.constant 0 : i32
    %c0_i32_0 = arith.constant 0 : i32
    %c0_i32_1 = arith.constant 0 : i32
    return %c0_i32, %c0_i32_0 : i32, i32
  }
  func.func @transform_3(%arg0: i32) -> (i32, i32) {
    %c0_i32 = arith.constant 0 : i32
    %c0_i32_0 = arith.constant 0 : i32
    return %arg0, %c0_i32 : i32, i32
  }
}

module attributes {stable_mosaic.version = 11 : i64} {
  func.func @kernel(%arg0: i32, %arg1: memref<16x577xf32, #tpu.memory_space<vmem>>, %arg2: memref<577x128xf32, #tpu.memory_space<vmem>>, %arg3: memref<32x128xf32, #tpu.memory_space<vmem>>, %arg4: memref<1x128xf32, #tpu.memory_space<vmem>>, %arg5: memref<1x128xf32, #tpu.memory_space<vmem>>, %arg6: memref<2x32xf32, #tpu.memory_space<vmem>>, %arg7: memref<16x128xf32, #tpu.memory_space<vmem>>) attributes {dimension_semantics = [#tpu.dimension_semantics<arbitrary>], iteration_bounds = array<i64: 1>, scalar_prefetch = 0 : i64, scratch_operands = 1 : i64, tpu.core_type = #tpu.core_type<tc>, window_params = [{pipeline_mode = #tpu.pipeline_mode<synchronous>, transform_indices = @transform_0, window_bounds = array<i64: 16, 577>}, {pipeline_mode = #tpu.pipeline_mode<synchronous>, transform_indices = @transform_1, window_bounds = array<i64: 577, 128>}, {pipeline_mode = #tpu.pipeline_mode<synchronous>, transform_indices = @transform_2, window_bounds = array<i64: 32, 128>}, {pipeline_mode = #tpu.pipeline_mode<synchronous>, transform_indices = @transform_3, window_bounds = array<i64: 1, 128>}, {pipeline_mode = #tpu.pipeline_mode<synchronous>, transform_indices = @transform_4, window_bounds = array<i64: 1, 128>}, {pipeline_mode = #tpu.pipeline_mode<synchronous>, transform_indices = @transform_5, window_bounds = array<i64: 2, 32>}]} {
    %c0 = arith.constant 0 : index
    %c0_0 = arith.constant 0 : index
    %0 = vector.load %arg1[%c0, %c0_0] : memref<16x577xf32, #tpu.memory_space<vmem>>, vector<16x577xf32>
    %c0_1 = arith.constant 0 : index
    %c0_2 = arith.constant 0 : index
    %1 = vector.load %arg2[%c0_1, %c0_2] : memref<577x128xf32, #tpu.memory_space<vmem>>, vector<577x128xf32>
    %cst = arith.constant dense<0.000000e+00> : vector<16x128xf32>
    %2 = tpu.matmul %0, %1, %cst {dimension_numbers = #tpu.dot_dimension_numbers<[1], [0], [0], [1], [0, 0, 1, 1], [], []>} : vector<16x577xf32>, vector<577x128xf32>, vector<16x128xf32> -> vector<16x128xf32>
    %c0_3 = arith.constant 0 : index
    %c0_4 = arith.constant 0 : index
    %3 = vector.load %arg4[%c0_3, %c0_4] : memref<1x128xf32, #tpu.memory_space<vmem>>, vector<1x128xf32>
    %4 = vector.broadcast %3 : vector<1x128xf32> to vector<16x128xf32>
    %5 = arith.addf %2, %4 : vector<16x128xf32>
    %c0_5 = arith.constant 0 : index
    %c0_6 = arith.constant 0 : index
    %6 = vector.load %arg7[%c0_5, %c0_6] : memref<16x128xf32, #tpu.memory_space<vmem>>, vector<16x128xf32>
    tpu.vector_store %arg7[%c0_5, %c0_6], %5 {strides = array<i32>} : memref<16x128xf32, #tpu.memory_space<vmem>>, vector<16x128xf32>,
    %c0_7 = arith.constant 0 : index
    %c0_8 = arith.constant 0 : index
    %7 = vector.load %arg3[%c0_7, %c0_8] : memref<32x128xf32, #tpu.memory_space<vmem>>, vector<32x128xf32>
    %c0_9 = arith.constant 0 : index
    %c0_10 = arith.constant 0 : index
    %8 = vector.load %arg5[%c0_9, %c0_10] : memref<1x128xf32, #tpu.memory_space<vmem>>, vector<1x128xf32>
    %cst_11 = arith.constant 0.000000e+00 : f32
    %9 = vector.broadcast %cst_11 : f32 to vector<2x32xf32>
    %c0_12 = arith.constant 0 : index
    %c0_13 = arith.constant 0 : index
    %10 = vector.load %arg7[%c0_12, %c0_13] : memref<16x128xf32, #tpu.memory_space<vmem>>, vector<2x128xf32>
    %cst_14 = arith.constant dense<0.000000e+00> : vector<2x128xf32>
    %11 = tpu.matmul %9, %7, %cst_14 {dimension_numbers = #tpu.dot_dimension_numbers<[1], [0], [0], [1], [0, 0, 1, 1], [], []>} : vector<2x32xf32>, vector<32x128xf32>, vector<2x128xf32> -> vector<2x128xf32>
    %12 = vector.broadcast %8 : vector<1x128xf32> to vector<2x128xf32>
    %13 = arith.addf %11, %12 : vector<2x128xf32>
    %14 = vector.extract_strided_slice %10 {offsets = [0, 0], sizes = [2, 32], strides = [1, 1]} : vector<2x128xf32> to vector<2x32xf32>
    %15 = vector.extract_strided_slice %13 {offsets = [0, 0], sizes = [2, 32], strides = [1, 1]} : vector<2x128xf32> to vector<2x32xf32>
    %16 = arith.addf %14, %15 : vector<2x32xf32>
    %17 = arith.negf %16 : vector<2x32xf32>
    %18 = math.exp %17 : vector<2x32xf32>
    %cst_15 = arith.constant 1.000000e+00 : f32
    %19 = vector.broadcast %cst_15 : f32 to vector<2x32xf32>
    %20 = arith.addf %19, %18 : vector<2x32xf32>
    %21 = arith.divf %19, %20 : vector<2x32xf32>
    %22 = vector.extract_strided_slice %10 {offsets = [0, 32], sizes = [2, 32], strides = [1, 1]} : vector<2x128xf32> to vector<2x32xf32>
    %23 = vector.extract_strided_slice %13 {offsets = [0, 32], sizes = [2, 32], strides = [1, 1]} : vector<2x128xf32> to vector<2x32xf32>
    %24 = arith.addf %22, %23 : vector<2x32xf32>
    %25 = arith.negf %24 : vector<2x32xf32>
    %26 = math.exp %25 : vector<2x32xf32>
    %cst_16 = arith.constant 1.000000e+00 : f32
    %27 = vector.broadcast %cst_16 : f32 to vector<2x32xf32>
    %28 = arith.addf %27, %26 : vector<2x32xf32>
    %29 = arith.divf %27, %28 : vector<2x32xf32>
    %30 = vector.extract_strided_slice %10 {offsets = [0, 64], sizes = [2, 32], strides = [1, 1]} : vector<2x128xf32> to vector<2x32xf32>
    %31 = vector.extract_strided_slice %13 {offsets = [0, 64], sizes = [2, 32], strides = [1, 1]} : vector<2x128xf32> to vector<2x32xf32>
    %32 = arith.mulf %21, %31 : vector<2x32xf32>
    %33 = arith.addf %30, %32 : vector<2x32xf32>
    %34 = math.tanh %33 : vector<2x32xf32>
    %cst_17 = arith.constant 1.000000e+00 : f32
    %35 = vector.broadcast %cst_17 : f32 to vector<2x32xf32>
    %36 = arith.subf %35, %29 : vector<2x32xf32>
    %37 = arith.mulf %36, %34 : vector<2x32xf32>
    %38 = arith.mulf %29, %9 : vector<2x32xf32>
    %39 = arith.addf %37, %38 : vector<2x32xf32>
    %c2 = arith.constant 2 : index
    %c0_18 = arith.constant 0 : index
    %40 = vector.load %arg7[%c2, %c0_18] : memref<16x128xf32, #tpu.memory_space<vmem>>, vector<2x128xf32>
    %cst_19 = arith.constant dense<0.000000e+00> : vector<2x128xf32>
    %41 = tpu.matmul %39, %7, %cst_19 {dimension_numbers = #tpu.dot_dimension_numbers<[1], [0], [0], [1], [0, 0, 1, 1], [], []>} : vector<2x32xf32>, vector<32x128xf32>, vector<2x128xf32> -> vector<2x128xf32>
    %42 = vector.broadcast %8 : vector<1x128xf32> to vector<2x128xf32>
    %43 = arith.addf %41, %42 : vector<2x128xf32>
    %44 = vector.extract_strided_slice %40 {offsets = [0, 0], sizes = [2, 32], strides = [1, 1]} : vector<2x128xf32> to vector<2x32xf32>
    %45 = vector.extract_strided_slice %43 {offsets = [0, 0], sizes = [2, 32], strides = [1, 1]} : vector<2x128xf32> to vector<2x32xf32>
    %46 = arith.addf %44, %45 : vector<2x32xf32>
    %47 = arith.negf %46 : vector<2x32xf32>
    %48 = math.exp %47 : vector<2x32xf32>
    %cst_20 = arith.constant 1.000000e+00 : f32
    %49 = vector.broadcast %cst_20 : f32 to vector<2x32xf32>
    %50 = arith.addf %49, %48 : vector<2x32xf32>
    %51 = arith.divf %49, %50 : vector<2x32xf32>
    %52 = vector.extract_strided_slice %40 {offsets = [0, 32], sizes = [2, 32], strides = [1, 1]} : vector<2x128xf32> to vector<2x32xf32>
    %53 = vector.extract_strided_slice %43 {offsets = [0, 32], sizes = [2, 32], strides = [1, 1]} : vector<2x128xf32> to vector<2x32xf32>
    %54 = arith.addf %52, %53 : vector<2x32xf32>
    %55 = arith.negf %54 : vector<2x32xf32>
    %56 = math.exp %55 : vector<2x32xf32>
    %cst_21 = arith.constant 1.000000e+00 : f32
    %57 = vector.broadcast %cst_21 : f32 to vector<2x32xf32>
    %58 = arith.addf %57, %56 : vector<2x32xf32>
    %59 = arith.divf %57, %58 : vector<2x32xf32>
    %60 = vector.extract_strided_slice %40 {offsets = [0, 64], sizes = [2, 32], strides = [1, 1]} : vector<2x128xf32> to vector<2x32xf32>
    %61 = vector.extract_strided_slice %43 {offsets = [0, 64], sizes = [2, 32], strides = [1, 1]} : vector<2x128xf32> to vector<2x32xf32>
    %62 = arith.mulf %51, %61 : vector<2x32xf32>
    %63 = arith.addf %60, %62 : vector<2x32xf32>
    %64 = math.tanh %63 : vector<2x32xf32>
    %cst_22 = arith.constant 1.000000e+00 : f32
    %65 = vector.broadcast %cst_22 : f32 to vector<2x32xf32>
    %66 = arith.subf %65, %59 : vector<2x32xf32>
    %67 = arith.mulf %66, %64 : vector<2x32xf32>
    %68 = arith.mulf %59, %39 : vector<2x32xf32>
    %69 = arith.addf %67, %68 : vector<2x32xf32>
    %c4 = arith.constant 4 : index
    %c0_23 = arith.constant 0 : index
    %70 = vector.load %arg7[%c4, %c0_23] : memref<16x128xf32, #tpu.memory_space<vmem>>, vector<2x128xf32>
    %cst_24 = arith.constant dense<0.000000e+00> : vector<2x128xf32>
    %71 = tpu.matmul %69, %7, %cst_24 {dimension_numbers = #tpu.dot_dimension_numbers<[1], [0], [0], [1], [0, 0, 1, 1], [], []>} : vector<2x32xf32>, vector<32x128xf32>, vector<2x128xf32> -> vector<2x128xf32>
    %72 = vector.broadcast %8 : vector<1x128xf32> to vector<2x128xf32>
    %73 = arith.addf %71, %72 : vector<2x128xf32>
    %74 = vector.extract_strided_slice %70 {offsets = [0, 0], sizes = [2, 32], strides = [1, 1]} : vector<2x128xf32> to vector<2x32xf32>
    %75 = vector.extract_strided_slice %73 {offsets = [0, 0], sizes = [2, 32], strides = [1, 1]} : vector<2x128xf32> to vector<2x32xf32>
    %76 = arith.addf %74, %75 : vector<2x32xf32>
    %77 = arith.negf %76 : vector<2x32xf32>
    %78 = math.exp %77 : vector<2x32xf32>
    %cst_25 = arith.constant 1.000000e+00 : f32
    %79 = vector.broadcast %cst_25 : f32 to vector<2x32xf32>
    %80 = arith.addf %79, %78 : vector<2x32xf32>
    %81 = arith.divf %79, %80 : vector<2x32xf32>
    %82 = vector.extract_strided_slice %70 {offsets = [0, 32], sizes = [2, 32], strides = [1, 1]} : vector<2x128xf32> to vector<2x32xf32>
    %83 = vector.extract_strided_slice %73 {offsets = [0, 32], sizes = [2, 32], strides = [1, 1]} : vector<2x128xf32> to vector<2x32xf32>
    %84 = arith.addf %82, %83 : vector<2x32xf32>
    %85 = arith.negf %84 : vector<2x32xf32>
    %86 = math.exp %85 : vector<2x32xf32>
    %cst_26 = arith.constant 1.000000e+00 : f32
    %87 = vector.broadcast %cst_26 : f32 to vector<2x32xf32>
    %88 = arith.addf %87, %86 : vector<2x32xf32>
    %89 = arith.divf %87, %88 : vector<2x32xf32>
    %90 = vector.extract_strided_slice %70 {offsets = [0, 64], sizes = [2, 32], strides = [1, 1]} : vector<2x128xf32> to vector<2x32xf32>
    %91 = vector.extract_strided_slice %73 {offsets = [0, 64], sizes = [2, 32], strides = [1, 1]} : vector<2x128xf32> to vector<2x32xf32>
    %92 = arith.mulf %81, %91 : vector<2x32xf32>
    %93 = arith.addf %90, %92 : vector<2x32xf32>
    %94 = math.tanh %93 : vector<2x32xf32>
    %cst_27 = arith.constant 1.000000e+00 : f32
    %95 = vector.broadcast %cst_27 : f32 to vector<2x32xf32>
    %96 = arith.subf %95, %89 : vector<2x32xf32>
    %97 = arith.mulf %96, %94 : vector<2x32xf32>
    %98 = arith.mulf %89, %69 : vector<2x32xf32>
    %99 = arith.addf %97, %98 : vector<2x32xf32>
    %c6 = arith.constant 6 : index
    %c0_28 = arith.constant 0 : index
    %100 = vector.load %arg7[%c6, %c0_28] : memref<16x128xf32, #tpu.memory_space<vmem>>, vector<2x128xf32>
    %cst_29 = arith.constant dense<0.000000e+00> : vector<2x128xf32>
    %101 = tpu.matmul %99, %7, %cst_29 {dimension_numbers = #tpu.dot_dimension_numbers<[1], [0], [0], [1], [0, 0, 1, 1], [], []>} : vector<2x32xf32>, vector<32x128xf32>, vector<2x128xf32> -> vector<2x128xf32>
    %102 = vector.broadcast %8 : vector<1x128xf32> to vector<2x128xf32>
    %103 = arith.addf %101, %102 : vector<2x128xf32>
    %104 = vector.extract_strided_slice %100 {offsets = [0, 0], sizes = [2, 32], strides = [1, 1]} : vector<2x128xf32> to vector<2x32xf32>
    %105 = vector.extract_strided_slice %103 {offsets = [0, 0], sizes = [2, 32], strides = [1, 1]} : vector<2x128xf32> to vector<2x32xf32>
    %106 = arith.addf %104, %105 : vector<2x32xf32>
    %107 = arith.negf %106 : vector<2x32xf32>
    %108 = math.exp %107 : vector<2x32xf32>
    %cst_30 = arith.constant 1.000000e+00 : f32
    %109 = vector.broadcast %cst_30 : f32 to vector<2x32xf32>
    %110 = arith.addf %109, %108 : vector<2x32xf32>
    %111 = arith.divf %109, %110 : vector<2x32xf32>
    %112 = vector.extract_strided_slice %100 {offsets = [0, 32], sizes = [2, 32], strides = [1, 1]} : vector<2x128xf32> to vector<2x32xf32>
    %113 = vector.extract_strided_slice %103 {offsets = [0, 32], sizes = [2, 32], strides = [1, 1]} : vector<2x128xf32> to vector<2x32xf32>
    %114 = arith.addf %112, %113 : vector<2x32xf32>
    %115 = arith.negf %114 : vector<2x32xf32>
    %116 = math.exp %115 : vector<2x32xf32>
    %cst_31 = arith.constant 1.000000e+00 : f32
    %117 = vector.broadcast %cst_31 : f32 to vector<2x32xf32>
    %118 = arith.addf %117, %116 : vector<2x32xf32>
    %119 = arith.divf %117, %118 : vector<2x32xf32>
    %120 = vector.extract_strided_slice %100 {offsets = [0, 64], sizes = [2, 32], strides = [1, 1]} : vector<2x128xf32> to vector<2x32xf32>
    %121 = vector.extract_strided_slice %103 {offsets = [0, 64], sizes = [2, 32], strides = [1, 1]} : vector<2x128xf32> to vector<2x32xf32>
    %122 = arith.mulf %111, %121 : vector<2x32xf32>
    %123 = arith.addf %120, %122 : vector<2x32xf32>
    %124 = math.tanh %123 : vector<2x32xf32>
    %cst_32 = arith.constant 1.000000e+00 : f32
    %125 = vector.broadcast %cst_32 : f32 to vector<2x32xf32>
    %126 = arith.subf %125, %119 : vector<2x32xf32>
    %127 = arith.mulf %126, %124 : vector<2x32xf32>
    %128 = arith.mulf %119, %99 : vector<2x32xf32>
    %129 = arith.addf %127, %128 : vector<2x32xf32>
    %c8 = arith.constant 8 : index
    %c0_33 = arith.constant 0 : index
    %130 = vector.load %arg7[%c8, %c0_33] : memref<16x128xf32, #tpu.memory_space<vmem>>, vector<2x128xf32>
    %cst_34 = arith.constant dense<0.000000e+00> : vector<2x128xf32>
    %131 = tpu.matmul %129, %7, %cst_34 {dimension_numbers = #tpu.dot_dimension_numbers<[1], [0], [0], [1], [0, 0, 1, 1], [], []>} : vector<2x32xf32>, vector<32x128xf32>, vector<2x128xf32> -> vector<2x128xf32>
    %132 = vector.broadcast %8 : vector<1x128xf32> to vector<2x128xf32>
    %133 = arith.addf %131, %132 : vector<2x128xf32>
    %134 = vector.extract_strided_slice %130 {offsets = [0, 0], sizes = [2, 32], strides = [1, 1]} : vector<2x128xf32> to vector<2x32xf32>
    %135 = vector.extract_strided_slice %133 {offsets = [0, 0], sizes = [2, 32], strides = [1, 1]} : vector<2x128xf32> to vector<2x32xf32>
    %136 = arith.addf %134, %135 : vector<2x32xf32>
    %137 = arith.negf %136 : vector<2x32xf32>
    %138 = math.exp %137 : vector<2x32xf32>
    %cst_35 = arith.constant 1.000000e+00 : f32
    %139 = vector.broadcast %cst_35 : f32 to vector<2x32xf32>
    %140 = arith.addf %139, %138 : vector<2x32xf32>
    %141 = arith.divf %139, %140 : vector<2x32xf32>
    %142 = vector.extract_strided_slice %130 {offsets = [0, 32], sizes = [2, 32], strides = [1, 1]} : vector<2x128xf32> to vector<2x32xf32>
    %143 = vector.extract_strided_slice %133 {offsets = [0, 32], sizes = [2, 32], strides = [1, 1]} : vector<2x128xf32> to vector<2x32xf32>
    %144 = arith.addf %142, %143 : vector<2x32xf32>
    %145 = arith.negf %144 : vector<2x32xf32>
    %146 = math.exp %145 : vector<2x32xf32>
    %cst_36 = arith.constant 1.000000e+00 : f32
    %147 = vector.broadcast %cst_36 : f32 to vector<2x32xf32>
    %148 = arith.addf %147, %146 : vector<2x32xf32>
    %149 = arith.divf %147, %148 : vector<2x32xf32>
    %150 = vector.extract_strided_slice %130 {offsets = [0, 64], sizes = [2, 32], strides = [1, 1]} : vector<2x128xf32> to vector<2x32xf32>
    %151 = vector.extract_strided_slice %133 {offsets = [0, 64], sizes = [2, 32], strides = [1, 1]} : vector<2x128xf32> to vector<2x32xf32>
    %152 = arith.mulf %141, %151 : vector<2x32xf32>
    %153 = arith.addf %150, %152 : vector<2x32xf32>
    %154 = math.tanh %153 : vector<2x32xf32>
    %cst_37 = arith.constant 1.000000e+00 : f32
    %155 = vector.broadcast %cst_37 : f32 to vector<2x32xf32>
    %156 = arith.subf %155, %149 : vector<2x32xf32>
    %157 = arith.mulf %156, %154 : vector<2x32xf32>
    %158 = arith.mulf %149, %129 : vector<2x32xf32>
    %159 = arith.addf %157, %158 : vector<2x32xf32>
    %c10 = arith.constant 10 : index
    %c0_38 = arith.constant 0 : index
    %160 = vector.load %arg7[%c10, %c0_38] : memref<16x128xf32, #tpu.memory_space<vmem>>, vector<2x128xf32>
    %cst_39 = arith.constant dense<0.000000e+00> : vector<2x128xf32>
    %161 = tpu.matmul %159, %7, %cst_39 {dimension_numbers = #tpu.dot_dimension_numbers<[1], [0], [0], [1], [0, 0, 1, 1], [], []>} : vector<2x32xf32>, vector<32x128xf32>, vector<2x128xf32> -> vector<2x128xf32>
    %162 = vector.broadcast %8 : vector<1x128xf32> to vector<2x128xf32>
    %163 = arith.addf %161, %162 : vector<2x128xf32>
    %164 = vector.extract_strided_slice %160 {offsets = [0, 0], sizes = [2, 32], strides = [1, 1]} : vector<2x128xf32> to vector<2x32xf32>
    %165 = vector.extract_strided_slice %163 {offsets = [0, 0], sizes = [2, 32], strides = [1, 1]} : vector<2x128xf32> to vector<2x32xf32>
    %166 = arith.addf %164, %165 : vector<2x32xf32>
    %167 = arith.negf %166 : vector<2x32xf32>
    %168 = math.exp %167 : vector<2x32xf32>
    %cst_40 = arith.constant 1.000000e+00 : f32
    %169 = vector.broadcast %cst_40 : f32 to vector<2x32xf32>
    %170 = arith.addf %169, %168 : vector<2x32xf32>
    %171 = arith.divf %169, %170 : vector<2x32xf32>
    %172 = vector.extract_strided_slice %160 {offsets = [0, 32], sizes = [2, 32], strides = [1, 1]} : vector<2x128xf32> to vector<2x32xf32>
    %173 = vector.extract_strided_slice %163 {offsets = [0, 32], sizes = [2, 32], strides = [1, 1]} : vector<2x128xf32> to vector<2x32xf32>
    %174 = arith.addf %172, %173 : vector<2x32xf32>
    %175 = arith.negf %174 : vector<2x32xf32>
    %176 = math.exp %175 : vector<2x32xf32>
    %cst_41 = arith.constant 1.000000e+00 : f32
    %177 = vector.broadcast %cst_41 : f32 to vector<2x32xf32>
    %178 = arith.addf %177, %176 : vector<2x32xf32>
    %179 = arith.divf %177, %178 : vector<2x32xf32>
    %180 = vector.extract_strided_slice %160 {offsets = [0, 64], sizes = [2, 32], strides = [1, 1]} : vector<2x128xf32> to vector<2x32xf32>
    %181 = vector.extract_strided_slice %163 {offsets = [0, 64], sizes = [2, 32], strides = [1, 1]} : vector<2x128xf32> to vector<2x32xf32>
    %182 = arith.mulf %171, %181 : vector<2x32xf32>
    %183 = arith.addf %180, %182 : vector<2x32xf32>
    %184 = math.tanh %183 : vector<2x32xf32>
    %cst_42 = arith.constant 1.000000e+00 : f32
    %185 = vector.broadcast %cst_42 : f32 to vector<2x32xf32>
    %186 = arith.subf %185, %179 : vector<2x32xf32>
    %187 = arith.mulf %186, %184 : vector<2x32xf32>
    %188 = arith.mulf %179, %159 : vector<2x32xf32>
    %189 = arith.addf %187, %188 : vector<2x32xf32>
    %c12 = arith.constant 12 : index
    %c0_43 = arith.constant 0 : index
    %190 = vector.load %arg7[%c12, %c0_43] : memref<16x128xf32, #tpu.memory_space<vmem>>, vector<2x128xf32>
    %cst_44 = arith.constant dense<0.000000e+00> : vector<2x128xf32>
    %191 = tpu.matmul %189, %7, %cst_44 {dimension_numbers = #tpu.dot_dimension_numbers<[1], [0], [0], [1], [0, 0, 1, 1], [], []>} : vector<2x32xf32>, vector<32x128xf32>, vector<2x128xf32> -> vector<2x128xf32>
    %192 = vector.broadcast %8 : vector<1x128xf32> to vector<2x128xf32>
    %193 = arith.addf %191, %192 : vector<2x128xf32>
    %194 = vector.extract_strided_slice %190 {offsets = [0, 0], sizes = [2, 32], strides = [1, 1]} : vector<2x128xf32> to vector<2x32xf32>
    %195 = vector.extract_strided_slice %193 {offsets = [0, 0], sizes = [2, 32], strides = [1, 1]} : vector<2x128xf32> to vector<2x32xf32>
    %196 = arith.addf %194, %195 : vector<2x32xf32>
    %197 = arith.negf %196 : vector<2x32xf32>
    %198 = math.exp %197 : vector<2x32xf32>
    %cst_45 = arith.constant 1.000000e+00 : f32
    %199 = vector.broadcast %cst_45 : f32 to vector<2x32xf32>
    %200 = arith.addf %199, %198 : vector<2x32xf32>
    %201 = arith.divf %199, %200 : vector<2x32xf32>
    %202 = vector.extract_strided_slice %190 {offsets = [0, 32], sizes = [2, 32], strides = [1, 1]} : vector<2x128xf32> to vector<2x32xf32>
    %203 = vector.extract_strided_slice %193 {offsets = [0, 32], sizes = [2, 32], strides = [1, 1]} : vector<2x128xf32> to vector<2x32xf32>
    %204 = arith.addf %202, %203 : vector<2x32xf32>
    %205 = arith.negf %204 : vector<2x32xf32>
    %206 = math.exp %205 : vector<2x32xf32>
    %cst_46 = arith.constant 1.000000e+00 : f32
    %207 = vector.broadcast %cst_46 : f32 to vector<2x32xf32>
    %208 = arith.addf %207, %206 : vector<2x32xf32>
    %209 = arith.divf %207, %208 : vector<2x32xf32>
    %210 = vector.extract_strided_slice %190 {offsets = [0, 64], sizes = [2, 32], strides = [1, 1]} : vector<2x128xf32> to vector<2x32xf32>
    %211 = vector.extract_strided_slice %193 {offsets = [0, 64], sizes = [2, 32], strides = [1, 1]} : vector<2x128xf32> to vector<2x32xf32>
    %212 = arith.mulf %201, %211 : vector<2x32xf32>
    %213 = arith.addf %210, %212 : vector<2x32xf32>
    %214 = math.tanh %213 : vector<2x32xf32>
    %cst_47 = arith.constant 1.000000e+00 : f32
    %215 = vector.broadcast %cst_47 : f32 to vector<2x32xf32>
    %216 = arith.subf %215, %209 : vector<2x32xf32>
    %217 = arith.mulf %216, %214 : vector<2x32xf32>
    %218 = arith.mulf %209, %189 : vector<2x32xf32>
    %219 = arith.addf %217, %218 : vector<2x32xf32>
    %c14 = arith.constant 14 : index
    %c0_48 = arith.constant 0 : index
    %220 = vector.load %arg7[%c14, %c0_48] : memref<16x128xf32, #tpu.memory_space<vmem>>, vector<2x128xf32>
    %cst_49 = arith.constant dense<0.000000e+00> : vector<2x128xf32>
    %221 = tpu.matmul %219, %7, %cst_49 {dimension_numbers = #tpu.dot_dimension_numbers<[1], [0], [0], [1], [0, 0, 1, 1], [], []>} : vector<2x32xf32>, vector<32x128xf32>, vector<2x128xf32> -> vector<2x128xf32>
    %222 = vector.broadcast %8 : vector<1x128xf32> to vector<2x128xf32>
    %223 = arith.addf %221, %222 : vector<2x128xf32>
    %224 = vector.extract_strided_slice %220 {offsets = [0, 0], sizes = [2, 32], strides = [1, 1]} : vector<2x128xf32> to vector<2x32xf32>
    %225 = vector.extract_strided_slice %223 {offsets = [0, 0], sizes = [2, 32], strides = [1, 1]} : vector<2x128xf32> to vector<2x32xf32>
    %226 = arith.addf %224, %225 : vector<2x32xf32>
    %227 = arith.negf %226 : vector<2x32xf32>
    %228 = math.exp %227 : vector<2x32xf32>
    %cst_50 = arith.constant 1.000000e+00 : f32
    %229 = vector.broadcast %cst_50 : f32 to vector<2x32xf32>
    %230 = arith.addf %229, %228 : vector<2x32xf32>
    %231 = arith.divf %229, %230 : vector<2x32xf32>
    %232 = vector.extract_strided_slice %220 {offsets = [0, 32], sizes = [2, 32], strides = [1, 1]} : vector<2x128xf32> to vector<2x32xf32>
    %233 = vector.extract_strided_slice %223 {offsets = [0, 32], sizes = [2, 32], strides = [1, 1]} : vector<2x128xf32> to vector<2x32xf32>
    %234 = arith.addf %232, %233 : vector<2x32xf32>
    %235 = arith.negf %234 : vector<2x32xf32>
    %236 = math.exp %235 : vector<2x32xf32>
    %cst_51 = arith.constant 1.000000e+00 : f32
    %237 = vector.broadcast %cst_51 : f32 to vector<2x32xf32>
    %238 = arith.addf %237, %236 : vector<2x32xf32>
    %239 = arith.divf %237, %238 : vector<2x32xf32>
    %240 = vector.extract_strided_slice %220 {offsets = [0, 64], sizes = [2, 32], strides = [1, 1]} : vector<2x128xf32> to vector<2x32xf32>
    %241 = vector.extract_strided_slice %223 {offsets = [0, 64], sizes = [2, 32], strides = [1, 1]} : vector<2x128xf32> to vector<2x32xf32>
    %242 = arith.mulf %231, %241 : vector<2x32xf32>
    %243 = arith.addf %240, %242 : vector<2x32xf32>
    %244 = math.tanh %243 : vector<2x32xf32>
    %cst_52 = arith.constant 1.000000e+00 : f32
    %245 = vector.broadcast %cst_52 : f32 to vector<2x32xf32>
    %246 = arith.subf %245, %239 : vector<2x32xf32>
    %247 = arith.mulf %246, %244 : vector<2x32xf32>
    %248 = arith.mulf %239, %219 : vector<2x32xf32>
    %249 = arith.addf %247, %248 : vector<2x32xf32>
    %c0_53 = arith.constant 0 : index
    %c0_54 = arith.constant 0 : index
    %250 = vector.load %arg6[%c0_53, %c0_54] : memref<2x32xf32, #tpu.memory_space<vmem>>, vector<2x32xf32>
    tpu.vector_store %arg6[%c0_53, %c0_54], %249 {strides = array<i32>} : memref<2x32xf32, #tpu.memory_space<vmem>>, vector<2x32xf32>,
    return
  }
  func.func @transform_0(%arg0: i32) -> (i32, i32) {
    %c0_i32 = arith.constant 0 : i32
    %c0_i32_0 = arith.constant 0 : i32
    %c0_i32_1 = arith.constant 0 : i32
    return %c0_i32, %c0_i32_0 : i32, i32
  }
  func.func @transform_1(%arg0: i32) -> (i32, i32) {
    %c0_i32 = arith.constant 0 : i32
    %c0_i32_0 = arith.constant 0 : i32
    %c0_i32_1 = arith.constant 0 : i32
    return %c0_i32, %c0_i32_0 : i32, i32
  }
  func.func @transform_2(%arg0: i32) -> (i32, i32) {
    %c0_i32 = arith.constant 0 : i32
    %c0_i32_0 = arith.constant 0 : i32
    %c0_i32_1 = arith.constant 0 : i32
    return %c0_i32, %c0_i32_0 : i32, i32
  }
  func.func @transform_3(%arg0: i32) -> (i32, i32) {
    %c0_i32 = arith.constant 0 : i32
    %c0_i32_0 = arith.constant 0 : i32
    %c0_i32_1 = arith.constant 0 : i32
    return %c0_i32, %c0_i32_0 : i32, i32
  }
  func.func @transform_4(%arg0: i32) -> (i32, i32) {
    %c0_i32 = arith.constant 0 : i32
    %c0_i32_0 = arith.constant 0 : i32
    %c0_i32_1 = arith.constant 0 : i32
    return %c0_i32, %c0_i32_0 : i32, i32
  }
  func.func @transform_5(%arg0: i32) -> (i32, i32) {
    %c0_i32 = arith.constant 0 : i32
    %c0_i32_0 = arith.constant 0 : i32
    %c0_i32_1 = arith.constant 0 : i32
    return %c0_i32, %c0_i32_0 : i32, i32
  }
}

</mosaic_0001>

<llo_original>
// kernel: rollout_encoder_forward.3
$region0: #{rollout_encoder_forward.3}
  #allocation0 [shape = 'u32[]', space=smem, size = 0x4, offset = 0x4, fixed_abs, tag = 'smem constant byte address 0x4 - core index']
  #allocation1 [shape = 'u32[144,128]{1,0:T(1,128)}', space=vmem, size = 0x12000, scoped, tag = 'internal scratch']
  %s0 = inlined_call_operand.vmem [shape: f32[4096,36], index: 0, kind: input, shape index: {}]
  %s1 = inlined_call_operand.vmem [shape: f32[36,128], index: 1, kind: input, shape index: {}]
  %s2 = inlined_call_operand.vmem [shape: f32[1,128], index: 2, kind: input, shape index: {}]
  %s3 = inlined_call_operand.vmem [shape: f32[4096,128], index: 3, kind: output, shape index: {}]
  %s4 = sld [smem:[#allocation0]]
  $region45: #{rollout_encoder_forward.3} parent=0
    _
  %s6 = ssub.s32 1, %s4
  %s7 = scalar_select 0, %s6, %s4
  loop: start=0, step=1, limit=6
  $region2: #{rollout_encoder_forward.3} parent=0 // loop_pre_header
    _
  $region3: #{rollout_encoder_forward.3} parent=0 // loop_header
    %s9 = sphi 0, %s13
    %p10 = scmp.ge.s32.totalorder %s9, 6
    %s19 = sphi 0, %s21
    %s22 = sphi 0, %s19
    %s23 = sphi 0, %s22
    %s39 = sphi 0, %s23
    %s43 = sphi 0, %s43
    %s45 = sphi 0, %s43
    %s46 = sphi 0, %s45
    %s60 = sphi 0, %s46
    %s64 = sphi 0, %s64
    %s66 = sphi 0, %s64
    %s67 = sphi 0, %s66
    %s81 = sphi 0, %s67
    %s87 = sphi 0, %s89
    %s90 = sphi 0, %s87
    %s91 = sphi 0, %s90
    %s107 = sphi 0, %s91
  $region4: #{rollout_encoder_forward.3} parent=0 // loop_header_branch
    %12 = sbr.rel (%p10) target = $region8
  $region5: #{rollout_encoder_forward.3} parent=0 // loop_body
    %s14 = ssub.s32 %s9, 1
    %s15 = ssub.s32 %s9, 2
    %s16 = sadd.s32 %s9, 1
    %s17 = ssub.s32 %s9, %s16
    %p18 = scmp.eq.s32.totalorder %s17, 0
    %s20 = sadd.s32 %s19, 1
    %s21 = scalar_select %p18, %s19, %s20
    %p24 = pneg %p18
    %p25 = scmp.eq.s32.totalorder %s9, 3
    %p26 = por %p24, %p25
    %p27 = scmp.ne.s32.totalorder %s19, %s22
    %p28 = scmp.eq.s32.totalorder %s9, 0
    %p29 = por %p27, %p28
    %p30 = scmp.ne.s32.totalorder %s19, %s22
    %p31 = scmp.eq.s32.totalorder %s14, 3
    %p32 = por %p30, %p31
    %p33 = scmp.ne.s32.totalorder %s22, %s23
    %p34 = scmp.eq.s32.totalorder %s14, 0
    %p35 = por %p33, %p34
    %p36 = scmp.ne.s32.totalorder %s22, %s23
    %p37 = scmp.eq.s32.totalorder %s15, 3
    %p38 = por %p36, %p37
    %p40 = scmp.ne.s32.totalorder %s23, %s39
    %p41 = scmp.eq.s32.totalorder %s15, 0
    %p42 = por %p40, %p41
    %s44 = sadd.s32 %s43, 1
    %p47 = scmp.eq.s32.totalorder %s9, 3
    %p48 = scmp.ne.s32.totalorder %s43, %s45
    %p49 = scmp.eq.s32.totalorder %s9, 0
    %p50 = por %p48, %p49
    %p51 = scmp.ne.s32.totalorder %s43, %s45
    %p52 = scmp.eq.s32.totalorder %s14, 3
    %p53 = por %p51, %p52
    %p54 = scmp.ne.s32.totalorder %s45, %s46
    %p55 = scmp.eq.s32.totalorder %s14, 0
    %p56 = por %p54, %p55
    %p57 = scmp.ne.s32.totalorder %s45, %s46
    %p58 = scmp.eq.s32.totalorder %s15, 3
    %p59 = por %p57, %p58
    %p61 = scmp.ne.s32.totalorder %s46, %s60
    %p62 = scmp.eq.s32.totalorder %s15, 0
    %p63 = por %p61, %p62
    %s65 = sadd.s32 %s64, 1
    %p68 = scmp.eq.s32.totalorder %s9, 3
    %p69 = scmp.ne.s32.totalorder %s64, %s66
    %p70 = scmp.eq.s32.totalorder %s9, 0
    %p71 = por %p69, %p70
    %p72 = scmp.ne.s32.totalorder %s64, %s66
    %p73 = scmp.eq.s32.totalorder %s14, 3
    %p74 = por %p72, %p73
    %p75 = scmp.ne.s32.totalorder %s66, %s67
    %p76 = scmp.eq.s32.totalorder %s14, 0
    %p77 = por %p75, %p76
    %p78 = scmp.ne.s32.totalorder %s66, %s67
    %p79 = scmp.eq.s32.totalorder %s15, 3
    %p80 = por %p78, %p79
    %p82 = scmp.ne.s32.totalorder %s67, %s81
    %p83 = scmp.eq.s32.totalorder %s15, 0
    %p84 = por %p82, %p83
    %s85 = ssub.s32 %s9, %s16
    %p86 = scmp.eq.s32.totalorder %s85, 0
    %s88 = sadd.s32 %s87, 1
    %s89 = scalar_select %p86, %s87, %s88
    %p92 = pneg %p86
    %p93 = scmp.eq.s32.totalorder %s9, 3
    %p94 = por %p92, %p93
    %p95 = scmp.ne.s32.totalorder %s87, %s90
    %p96 = scmp.eq.s32.totalorder %s9, 0
    %p97 = por %p95, %p96
    %p98 = scmp.ne.s32.totalorder %s87, %s90
    %p99 = scmp.eq.s32.totalorder %s14, 3
    %p100 = por %p98, %p99
    %p101 = scmp.ne.s32.totalorder %s90, %s91
    %p102 = scmp.eq.s32.totalorder %s14, 0
    %p103 = por %p101, %p102
    %p104 = scmp.ne.s32.totalorder %s90, %s91
    %p105 = scmp.eq.s32.totalorder %s15, 3
    %p106 = por %p104, %p105
    %p108 = scmp.ne.s32.totalorder %s91, %s107
    %p109 = scmp.eq.s32.totalorder %s15, 0
    %p110 = por %p108, %p109
    %p111 = scmp.le.s32.totalorder 1, %s9
    %p112 = scmp.lt.s32.totalorder %s9, 5
    %p113 = pnand %p111, %p112
    %p114 = pneg %p113
    // Predicated region
    $region9: #{rollout_encoder_forward.3} parent=5 // pred_check
      _
    $region10: #{rollout_encoder_forward.3} parent=5 // pred_check_branch
      %116 = sbr.rel (%p113) target = $region12
    $region11: #{rollout_encoder_forward.3} parent=5 // pred_region
      %s117 = ssub.s32 %s9, 1
      // Predicated region
      $region13: #{rollout_encoder_forward.3} parent=11 // pred_check
        %p118 = pneg %p56
      $region14: #{rollout_encoder_forward.3} parent=11 // pred_check_branch
        %120 = sbr.rel (%p118) target = $region16
      $region15: #{rollout_encoder_forward.3} parent=11 // pred_region
        _
      $region16: #{rollout_encoder_forward.3} parent=11 // pred_fallthru
        _
      // Predicated region
      $region17: #{rollout_encoder_forward.3} parent=11 // pred_check
        %p121 = pneg %p77
      $region18: #{rollout_encoder_forward.3} parent=11 // pred_check_branch
        %123 = sbr.rel (%p121) target = $region20
      $region19: #{rollout_encoder_forward.3} parent=11 // pred_region
        _
      $region20: #{rollout_encoder_forward.3} parent=11 // pred_fallthru
        _
    $region12: #{rollout_encoder_forward.3} parent=5 // pred_fallthru
      _
    %p124 = scmp.lt.s32.totalorder %s9, 4
    // Predicated region
    $region21: #{rollout_encoder_forward.3} parent=5 // pred_check
      %p125 = pneg %p124
    $region22: #{rollout_encoder_forward.3} parent=5 // pred_check_branch
      %127 = sbr.rel (%p125) target = $region24
    $region23: #{rollout_encoder_forward.3} parent=5 // pred_region
      // Predicated region
      $region25: #{rollout_encoder_forward.3} parent=23 // pred_check
        %p128 = pneg %p29
      $region26: #{rollout_encoder_forward.3} parent=23 // pred_check_branch
        %130 = sbr.rel (%p128) target = $region28
      $region27: #{rollout_encoder_forward.3} parent=23 // pred_region
        %s131 = smul.u32 128, %s9
        %p132 = scmp.lt.s32.totalorder %s131, 511
        %s133 = scalar_select %p132, %s131, 511
        %s134 = smul.addr %s133, 8
        %s135 = scalar_lea.vmem %s0, %s134
        %s136 = smul.u32 128, %s9
      $region28: #{rollout_encoder_forward.3} parent=23 // pred_fallthru
        _
    $region24: #{rollout_encoder_forward.3} parent=5 // pred_fallthru
      _
    %p137 = scmp.le.s32.totalorder 1, %s9
    %p138 = scmp.lt.s32.totalorder %s9, 5
    %p139 = pnand %p137, %p138
    %p140 = pneg %p139
    // Predicated region
    $region29: #{rollout_encoder_forward.3} parent=5 // pred_check
      _
    $region30: #{rollout_encoder_forward.3} parent=5 // pred_check_branch
      %142 = sbr.rel (%p139) target = $region32
    $region31: #{rollout_encoder_forward.3} parent=5 // pred_region
      %s143 = ssub.s32 %s9, 1
      %s144 = smul.u32 128, %s14
      %p145 = scmp.lt.s32.totalorder %s144, 511
      %s146 = scalar_select %p145, %s144, 511
      %s147 = smul.addr %s146, 8
      %s148 = scalar_lea.vmem %s0, %s147
      %p149 = pneg %p35
      %p150 = pneg %p32
      %p151 = pneg %p56
      %p152 = pneg %p53
      %p153 = pneg %p77
      %p154 = pneg %p74
      %p155 = pneg %p103
      %p156 = pneg %p100
      %s157 = smul.u32 128, %s14
      %p158 = scmp.lt.s32.totalorder %s157, 511
      %s159 = scalar_select %p158, %s157, 511
      %s160 = smul.addr %s159, 8
      %s161 = scalar_lea.vmem %s3, %s160
      %s162 = smul.u32 128, %s14
      %p163 = scmp.lt.s32.totalorder %s162, 511
      %s164 = scalar_select %p163, %s162, 511
      %s165 = smul.addr %s164, 8
      %s166 = scalar_lea.vmem %s0, %s165
      %s167 = smul.u32 128, %s14
      %s168 = smul.u32 128, %s14
      %p169 = scmp.lt.s32.totalorder %s168, 511
      %s170 = scalar_select %p169, %s168, 511
      %s171 = smul.addr %s170, 8
      %s172 = scalar_lea.vmem %s3, %s171
      %s173 = smul.u32 128, %s14
      %v174 = vld [vmem:[%s166] sm:$0xff]
      %v175 = vld [vmem:[%s166 + $0x8] sm:$0xff]
      %v176 = vld [vmem:[%s166 + $0x10] sm:$0xff]
      %v177 = vld [vmem:[%s166 + $0x18] sm:$0xff]
      %v178 = vld [vmem:[%s166 + $0x20] sm:$0xff]
      %v179 = vld [vmem:[%s166 + $0x28] sm:$0xff]
      %v180 = vld [vmem:[%s166 + $0x30] sm:$0xff]
      %v181 = vld [vmem:[%s166 + $0x38] sm:$0xff]
      %v182 = vld [vmem:[%s166 + $0x40] sm:$0xff]
      %v183 = vld [vmem:[%s166 + $0x48] sm:$0xff]
      %v184 = vld [vmem:[%s166 + $0x50] sm:$0xff]
      %v185 = vld [vmem:[%s166 + $0x58] sm:$0xff]
      %v186 = vld [vmem:[%s166 + $0x60] sm:$0xff]
      %v187 = vld [vmem:[%s166 + $0x68] sm:$0xff]
      %v188 = vld [vmem:[%s166 + $0x70] sm:$0xff]
      %v189 = vld [vmem:[%s166 + $0x78] sm:$0xff]
      %v190 = vld [vmem:[%s166 + $0x80] sm:$0xff]
      %v191 = vld [vmem:[%s166 + $0x88] sm:$0xff]
      %v192 = vld [vmem:[%s166 + $0x90] sm:$0xff]
      %v193 = vld [vmem:[%s166 + $0x98] sm:$0xff]
      %v194 = vld [vmem:[%s166 + $0xa0] sm:$0xff]
      %v195 = vld [vmem:[%s166 + $0xa8] sm:$0xff]
      %v196 = vld [vmem:[%s166 + $0xb0] sm:$0xff]
      %v197 = vld [vmem:[%s166 + $0xb8] sm:$0xff]
      %v198 = vld [vmem:[%s166 + $0xc0] sm:$0xff]
      %v199 = vld [vmem:[%s166 + $0xc8] sm:$0xff]
      %v200 = vld [vmem:[%s166 + $0xd0] sm:$0xff]
      %v201 = vld [vmem:[%s166 + $0xd8] sm:$0xff]
      %v202 = vld [vmem:[%s166 + $0xe0] sm:$0xff]
      %v203 = vld [vmem:[%s166 + $0xe8] sm:$0xff]
      %v204 = vld [vmem:[%s166 + $0xf0] sm:$0xff]
      %v205 = vld [vmem:[%s166 + $0xf8] sm:$0xff]
      %v206 = vld [vmem:[%s166 + $0x100] sm:$0xff]
      %v207 = vld [vmem:[%s166 + $0x108] sm:$0xff]
      %v208 = vld [vmem:[%s166 + $0x110] sm:$0xff]
      %v209 = vld [vmem:[%s166 + $0x118] sm:$0xff]
      %v210 = vld [vmem:[%s166 + $0x120] sm:$0xff]
      %v211 = vld [vmem:[%s166 + $0x128] sm:$0xff]
      %v212 = vld [vmem:[%s166 + $0x130] sm:$0xff]
      %v213 = vld [vmem:[%s166 + $0x138] sm:$0xff]
      %v214 = vld [vmem:[%s166 + $0x140] sm:$0xff]
      %v215 = vld [vmem:[%s166 + $0x148] sm:$0xff]
      %v216 = vld [vmem:[%s166 + $0x150] sm:$0xff]
      %v217 = vld [vmem:[%s166 + $0x158] sm:$0xff]
      %v218 = vld [vmem:[%s166 + $0x160] sm:$0xff]
      %v219 = vld [vmem:[%s166 + $0x168] sm:$0xff]
      %v220 = vld [vmem:[%s166 + $0x170] sm:$0xff]
      %v221 = vld [vmem:[%s166 + $0x178] sm:$0xff]
      %v222 = vld [vmem:[%s166 + $0x180] sm:$0xff]
      %v223 = vld [vmem:[%s166 + $0x188] sm:$0xff]
      %v224 = vld [vmem:[%s166 + $0x190] sm:$0xff]
      %v225 = vld [vmem:[%s166 + $0x198] sm:$0xff]
      %v226 = vld [vmem:[%s166 + $0x1a0] sm:$0xff]
      %v227 = vld [vmem:[%s166 + $0x1a8] sm:$0xff]
      %v228 = vld [vmem:[%s166 + $0x1b0] sm:$0xff]
      %v229 = vld [vmem:[%s166 + $0x1b8] sm:$0xff]
      %v230 = vld [vmem:[%s166 + $0x1c0] sm:$0xff]
      %v231 = vld [vmem:[%s166 + $0x1c8] sm:$0xff]
      %v232 = vld [vmem:[%s166 + $0x1d0] sm:$0xff]
      %v233 = vld [vmem:[%s166 + $0x1d8] sm:$0xff]
      %v234 = vld [vmem:[%s166 + $0x1e0] sm:$0xff]
      %v235 = vld [vmem:[%s166 + $0x1e8] sm:$0xff]
      %v236 = vld [vmem:[%s166 + $0x1f0] sm:$0xff]
      %v237 = vld [vmem:[%s166 + $0x1f8] sm:$0xff]
      %v238 = vld [vmem:[%s166 + $0x200] sm:$0xff]
      %v239 = vld [vmem:[%s166 + $0x208] sm:$0xff]
      %v240 = vld [vmem:[%s166 + $0x210] sm:$0xff]
      %v241 = vld [vmem:[%s166 + $0x218] sm:$0xff]
      %v242 = vld [vmem:[%s166 + $0x220] sm:$0xff]
      %v243 = vld [vmem:[%s166 + $0x228] sm:$0xff]
      %v244 = vld [vmem:[%s166 + $0x230] sm:$0xff]
      %v245 = vld [vmem:[%s166 + $0x238] sm:$0xff]
      %v246 = vld [vmem:[%s166 + $0x240] sm:$0xff]
      %v247 = vld [vmem:[%s166 + $0x248] sm:$0xff]
      %v248 = vld [vmem:[%s166 + $0x250] sm:$0xff]
      %v249 = vld [vmem:[%s166 + $0x258] sm:$0xff]
      %v250 = vld [vmem:[%s166 + $0x260] sm:$0xff]
      %v251 = vld [vmem:[%s166 + $0x268] sm:$0xff]
      %v252 = vld [vmem:[%s166 + $0x270] sm:$0xff]
      %v253 = vld [vmem:[%s166 + $0x278] sm:$0xff]
      %v254 = vld [vmem:[%s166 + $0x280] sm:$0xff]
      %v255 = vld [vmem:[%s166 + $0x288] sm:$0xff]
      %v256 = vld [vmem:[%s166 + $0x290] sm:$0xff]
      %v257 = vld [vmem:[%s166 + $0x298] sm:$0xff]
      %v258 = vld [vmem:[%s166 + $0x2a0] sm:$0xff]
      %v259 = vld [vmem:[%s166 + $0x2a8] sm:$0xff]
      %v260 = vld [vmem:[%s166 + $0x2b0] sm:$0xff]
      %v261 = vld [vmem:[%s166 + $0x2b8] sm:$0xff]
      %v262 = vld [vmem:[%s166 + $0x2c0] sm:$0xff]
      %v263 = vld [vmem:[%s166 + $0x2c8] sm:$0xff]
      %v264 = vld [vmem:[%s166 + $0x2d0] sm:$0xff]
      %v265 = vld [vmem:[%s166 + $0x2d8] sm:$0xff]
      %v266 = vld [vmem:[%s166 + $0x2e0] sm:$0xff]
      %v267 = vld [vmem:[%s166 + $0x2e8] sm:$0xff]
      %v268 = vld [vmem:[%s166 + $0x2f0] sm:$0xff]
      %v269 = vld [vmem:[%s166 + $0x2f8] sm:$0xff]
      %v270 = vld [vmem:[%s166 + $0x300] sm:$0xff]
      %v271 = vld [vmem:[%s166 + $0x308] sm:$0xff]
      %v272 = vld [vmem:[%s166 + $0x310] sm:$0xff]
      %v273 = vld [vmem:[%s166 + $0x318] sm:$0xff]
      %v274 = vld [vmem:[%s166 + $0x320] sm:$0xff]
      %v275 = vld [vmem:[%s166 + $0x328] sm:$0xff]
      %v276 = vld [vmem:[%s166 + $0x330] sm:$0xff]
      %v277 = vld [vmem:[%s166 + $0x338] sm:$0xff]
      %v278 = vld [vmem:[%s166 + $0x340] sm:$0xff]
      %v279 = vld [vmem:[%s166 + $0x348] sm:$0xff]
      %v280 = vld [vmem:[%s166 + $0x350] sm:$0xff]
      %v281 = vld [vmem:[%s166 + $0x358] sm:$0xff]
      %v282 = vld [vmem:[%s166 + $0x360] sm:$0xff]
      %v283 = vld [vmem:[%s166 + $0x368] sm:$0xff]
      %v284 = vld [vmem:[%s166 + $0x370] sm:$0xff]
      %v285 = vld [vmem:[%s166 + $0x378] sm:$0xff]
      %v286 = vld [vmem:[%s166 + $0x380] sm:$0xff]
      %v287 = vld [vmem:[%s166 + $0x388] sm:$0xff]
      %v288 = vld [vmem:[%s166 + $0x390] sm:$0xff]
      %v289 = vld [vmem:[%s166 + $0x398] sm:$0xff]
      %v290 = vld [vmem:[%s166 + $0x3a0] sm:$0xff]
      %v291 = vld [vmem:[%s166 + $0x3a8] sm:$0xff]
      %v292 = vld [vmem:[%s166 + $0x3b0] sm:$0xff]
      %v293 = vld [vmem:[%s166 + $0x3b8] sm:$0xff]
      %v294 = vld [vmem:[%s166 + $0x3c0] sm:$0xff]
      %v295 = vld [vmem:[%s166 + $0x3c8] sm:$0xff]
      %v296 = vld [vmem:[%s166 + $0x3d0] sm:$0xff]
      %v297 = vld [vmem:[%s166 + $0x3d8] sm:$0xff]
      %v298 = vld [vmem:[%s166 + $0x3e0] sm:$0xff]
      %v299 = vld [vmem:[%s166 + $0x3e8] sm:$0xff]
      %v300 = vld [vmem:[%s166 + $0x3f0] sm:$0xff]
      %v301 = vld [vmem:[%s166 + $0x3f8] sm:$0xff]
      %v302 = vld [vmem:[%s1] sm:$0xff]
      %v303 = vld [vmem:[%s1 + $0x8] sm:$0xff]
      %v304 = vld [vmem:[%s1 + $0x10] sm:$0xff]
      %v305 = vld [vmem:[%s1 + $0x18] sm:$0xff]
      %v306 = vld [vmem:[%s1 + $0x20] sm:$0xf]
      %v307 = vld [vmem:[%s2] sm:$0x1]
      %v309 = vlaneseq
      %v310 = vshrl.u32 %v309, 7
      %v311 = vsub.s32 0, %v310
      %v312 = vrot.slane %v307, %v311
      %vm314 = vcmask 293888
      %v316 = vsel %vm314, %v174, 0
      %v319 = vsel %vm314, %v175, 0
      %v322 = vsel %vm314, %v176, 0
      %v325 = vsel %vm314, %v177, 0
      %v328 = vsel %vm314, %v178, 0
      %v331 = vsel %vm314, %v179, 0
      %v334 = vsel %vm314, %v180, 0
      %v337 = vsel %vm314, %v181, 0
      %v340 = vsel %vm314, %v182, 0
      %v343 = vsel %vm314, %v183, 0
      %v346 = vsel %vm314, %v184, 0
      %v349 = vsel %vm314, %v185, 0
      %v352 = vsel %vm314, %v186, 0
      %v355 = vsel %vm314, %v187, 0
      %v358 = vsel %vm314, %v188, 0
      %v361 = vsel %vm314, %v189, 0
      %v364 = vsel %vm314, %v190, 0
      %v367 = vsel %vm314, %v191, 0
      %v370 = vsel %vm314, %v192, 0
      %v373 = vsel %vm314, %v193, 0
      %v376 = vsel %vm314, %v194, 0
      %v379 = vsel %vm314, %v195, 0
      %v382 = vsel %vm314, %v196, 0
      %v385 = vsel %vm314, %v197, 0
      %v388 = vsel %vm314, %v198, 0
      %v391 = vsel %vm314, %v199, 0
      %v394 = vsel %vm314, %v200, 0
      %v397 = vsel %vm314, %v201, 0
      %v400 = vsel %vm314, %v202, 0
      %v403 = vsel %vm314, %v203, 0
      %v406 = vsel %vm314, %v204, 0
      %v409 = vsel %vm314, %v205, 0
      %v412 = vsel %vm314, %v206, 0
      %v415 = vsel %vm314, %v207, 0
      %v418 = vsel %vm314, %v208, 0
      %v421 = vsel %vm314, %v209, 0
      %v424 = vsel %vm314, %v210, 0
      %v427 = vsel %vm314, %v211, 0
      %v430 = vsel %vm314, %v212, 0
      %v433 = vsel %vm314, %v213, 0
      %v436 = vsel %vm314, %v214, 0
      %v439 = vsel %vm314, %v215, 0
      %v442 = vsel %vm314, %v216, 0
      %v445 = vsel %vm314, %v217, 0
      %v448 = vsel %vm314, %v218, 0
      %v451 = vsel %vm314, %v219, 0
      %v454 = vsel %vm314, %v220, 0
      %v457 = vsel %vm314, %v221, 0
      %v460 = vsel %vm314, %v222, 0
      %v463 = vsel %vm314, %v223, 0
      %v466 = vsel %vm314, %v224, 0
      %v469 = vsel %vm314, %v225, 0
      %v472 = vsel %vm314, %v226, 0
      %v475 = vsel %vm314, %v227, 0
      %v478 = vsel %vm314, %v228, 0
      %v481 = vsel %vm314, %v229, 0
      %v484 = vsel %vm314, %v230, 0
      %v487 = vsel %vm314, %v231, 0
      %v490 = vsel %vm314, %v232, 0
      %v493 = vsel %vm314, %v233, 0
      %v496 = vsel %vm314, %v234, 0
      %v499 = vsel %vm314, %v235, 0
      %v502 = vsel %vm314, %v236, 0
      %v505 = vsel %vm314, %v237, 0
      %v508 = vsel %vm314, %v238, 0
      %v511 = vsel %vm314, %v239, 0
      %v514 = vsel %vm314, %v240, 0
      %v517 = vsel %vm314, %v241, 0
      %v520 = vsel %vm314, %v242, 0
      %v523 = vsel %vm314, %v243, 0
      %v526 = vsel %vm314, %v244, 0
      %v529 = vsel %vm314, %v245, 0
      %v532 = vsel %vm314, %v246, 0
      %v535 = vsel %vm314, %v247, 0
      %v538 = vsel %vm314, %v248, 0
      %v541 = vsel %vm314, %v249, 0
      %v544 = vsel %vm314, %v250, 0
      %v547 = vsel %vm314, %v251, 0
      %v550 = vsel %vm314, %v252, 0
      %v553 = vsel %vm314, %v253, 0
      %v556 = vsel %vm314, %v254, 0
      %v559 = vsel %vm314, %v255, 0
      %v562 = vsel %vm314, %v256, 0
      %v565 = vsel %vm314, %v257, 0
      %v568 = vsel %vm314, %v258, 0
      %v571 = vsel %vm314, %v259, 0
      %v574 = vsel %vm314, %v260, 0
      %v577 = vsel %vm314, %v261, 0
      %v580 = vsel %vm314, %v262, 0
      %v583 = vsel %vm314, %v263, 0
      %v586 = vsel %vm314, %v264, 0
      %v589 = vsel %vm314, %v265, 0
      %v592 = vsel %vm314, %v266, 0
      %v595 = vsel %vm314, %v267, 0
      %v598 = vsel %vm314, %v268, 0
      %v601 = vsel %vm314, %v269, 0
      %v604 = vsel %vm314, %v270, 0
      %v607 = vsel %vm314, %v271, 0
      %v610 = vsel %vm314, %v272, 0
      %v613 = vsel %vm314, %v273, 0
      %v616 = vsel %vm314, %v274, 0
      %v619 = vsel %vm314, %v275, 0
      %v622 = vsel %vm314, %v276, 0
      %v625 = vsel %vm314, %v277, 0
      %v628 = vsel %vm314, %v278, 0
      %v631 = vsel %vm314, %v279, 0
      %v634 = vsel %vm314, %v280, 0
      %v637 = vsel %vm314, %v281, 0
      %v640 = vsel %vm314, %v282, 0
      %v643 = vsel %vm314, %v283, 0
      %v646 = vsel %vm314, %v284, 0
      %v649 = vsel %vm314, %v285, 0
      %v652 = vsel %vm314, %v286, 0
      %v655 = vsel %vm314, %v287, 0
      %v658 = vsel %vm314, %v288, 0
      %v661 = vsel %vm314, %v289, 0
      %v664 = vsel %vm314, %v290, 0
      %v667 = vsel %vm314, %v291, 0
      %v670 = vsel %vm314, %v292, 0
      %v673 = vsel %vm314, %v293, 0
      %v676 = vsel %vm314, %v294, 0
      %v679 = vsel %vm314, %v295, 0
      %v682 = vsel %vm314, %v296, 0
      %v685 = vsel %vm314, %v297, 0
      %v688 = vsel %vm314, %v298, 0
      %v691 = vsel %vm314, %v299, 0
      %v694 = vsel %vm314, %v300, 0
      %v697 = vsel %vm314, %v301, 0
      %vm699 = vcmask 1043456
      %v701 = vsel %vm699, %v306, 0
      %703 = vmatprep.subr.mxu0 0.0
      %704 = vmatpush1.msra.mxu0 %v302
      %705 = vmatprep.subr.mxu0 0.0
      %706 = vmatpush1.msra.mxu0 %v303
      %707 = vmatprep.subr.mxu0 0.0
      %708 = vmatpush1.msra.mxu0 %v304
      %709 = vmatprep.subr.mxu0 0.0
      %710 = vmatpush1.msra.mxu0 %v305
      %711 = vmatprep.subr.mxu0 0.0
      %712 = vmatpush1.msra.mxu0 %v701
      %713 = vmatprep.subr.mxu0 0.0
      %714 = vmatpush1.msra.mxu0 0.0
      %715 = vmatprep.subr.mxu0 0.0
      %716 = vmatpush1.msra.mxu0 0.0
      %717 = vmatprep.subr.mxu0 0.0
      %718 = vmatpush1.msra.mxu0 0.0
      %719 = vmatprep.subr.mxu0 0.0
      %720 = vmatpush1.msra.mxu0 0.0
      %721 = vmatprep.subr.mxu0 0.0
      %722 = vmatpush1.msra.mxu0 0.0
      %723 = vmatprep.subr.mxu0 0.0
      %724 = vmatpush1.msra.mxu0 0.0
      %725 = vmatprep.subr.mxu0 0.0
      %726 = vmatpush1.msra.mxu0 0.0
      %727 = vmatprep.subr.mxu0 0.0
      %728 = vmatpush1.msra.mxu0 0.0
      %729 = vmatprep.subr.mxu0 0.0
      %730 = vmatpush1.msra.mxu0 0.0
      %731 = vmatprep.subr.mxu0 0.0
      %732 = vmatpush1.msra.mxu0 0.0
      %733 = vmatprep.subr.mxu0 0.0
      %734 = vmatpush1.msra.mxu0 0.0
      %735 = vmatprep.subr.mxu0 0.0
      %736 = vmatpush1.msra.mxu0 0.0
      %737 = vmatprep.subr.mxu0 0.0
      %738 = vmatpush1.msra.mxu0 0.0
      %739 = vmatprep.subr.mxu0 0.0
      %740 = vmatpush1.msra.mxu0 0.0
      %741 = vmatprep.subr.mxu0 0.0
      %742 = vmatpush1.msra.mxu0 0.0
      %743 = vmatprep.subr.mxu0 0.0
      %744 = vmatpush1.msra.mxu0 0.0
      %745 = vmatprep.subr.mxu0 0.0
      %746 = vmatpush1.msra.mxu0 0.0
      %747 = vmatprep.subr.mxu0 0.0
      %748 = vmatpush1.msra.mxu0 0.0
      %749 = vmatprep.subr.mxu0 0.0
      %750 = vmatpush1.msra.mxu0 0.0
      %751 = vmatprep.subr.mxu0 0.0
      %752 = vmatpush1.msra.mxu0 0.0
      %753 = vmatprep.subr.mxu0 0.0
      %754 = vmatpush1.msra.mxu0 0.0
      %755 = vmatprep.subr.mxu0 0.0
      %756 = vmatpush1.msra.mxu0 0.0
      %757 = vmatprep.subr.mxu0 0.0
      %758 = vmatpush1.msra.mxu0 0.0
      %759 = vmatprep.subr.mxu0 0.0
      %760 = vmatpush1.msra.mxu0 0.0
      %761 = vmatprep.subr.mxu0 0.0
      %762 = vmatpush1.msra.mxu0 0.0
      %763 = vmatprep.subr.mxu0 0.0
      %764 = vmatpush1.msra.mxu0 0.0
      %765 = vmatprep.subr.mxu0 0.0
      %766 = vmatpush1.msra.mxu0 0.0
      %767 = vmatprep.mubr.f32.mxu0 0.0
      %768 = vmatmul.mubr.f32.gmra.mrb[0].mxu0 %v316
      %v769 = vpop.f32.mrb[0].mxu0
      %v770 = vadd.f32 %v312, %v769
      %v771 = vpop.f32.mrb[0].mxu0
      %772 = vmatprep.mubr.f32.mxu0 0.0
      %773 = vmatmul.mubr.f32.gmra.mrb[0].mxu0 %v319
      %v774 = vpop.f32.mrb[0].mxu0
      %v775 = vadd.f32 %v312, %v774
      %v776 = vpop.f32.mrb[0].mxu0
      %777 = vmatprep.mubr.f32.mxu0 0.0
      %778 = vmatmul.mubr.f32.gmra.mrb[0].mxu0 %v322
      %v779 = vpop.f32.mrb[0].mxu0
      %v780 = vadd.f32 %v312, %v779
      %v781 = vpop.f32.mrb[0].mxu0
      %782 = vmatprep.mubr.f32.mxu0 0.0
      %783 = vmatmul.mubr.f32.gmra.mrb[0].mxu0 %v325
      %v784 = vpop.f32.mrb[0].mxu0
      %v785 = vadd.f32 %v312, %v784
      %v786 = vpop.f32.mrb[0].mxu0
      %787 = vmatprep.mubr.f32.mxu0 0.0
      %788 = vmatmul.mubr.f32.gmra.mrb[0].mxu0 %v328
      %v789 = vpop.f32.mrb[0].mxu0
      %v790 = vadd.f32 %v312, %v789
      %v791 = vpop.f32.mrb[0].mxu0
      %792 = vmatprep.mubr.f32.mxu0 0.0
      %793 = vmatmul.mubr.f32.gmra.mrb[0].mxu0 %v331
      %v794 = vpop.f32.mrb[0].mxu0
      %v795 = vadd.f32 %v312, %v794
      %v796 = vpop.f32.mrb[0].mxu0
      %797 = vmatprep.mubr.f32.mxu0 0.0
      %798 = vmatmul.mubr.f32.gmra.mrb[0].mxu0 %v334
      %v799 = vpop.f32.mrb[0].mxu0
      %v800 = vadd.f32 %v312, %v799
      %v801 = vpop.f32.mrb[0].mxu0
      %802 = vmatprep.mubr.f32.mxu0 0.0
      %803 = vmatmul.mubr.f32.gmra.mrb[0].mxu0 %v337
      %v804 = vpop.f32.mrb[0].mxu0
      %v805 = vadd.f32 %v312, %v804
      %v806 = vpop.f32.mrb[0].mxu0
      %807 = vmatprep.mubr.f32.mxu0 0.0
      %808 = vmatmul.mubr.f32.gmra.mrb[0].mxu0 %v340
      %v809 = vpop.f32.mrb[0].mxu0
      %v810 = vadd.f32 %v312, %v809
      %v811 = vpop.f32.mrb[0].mxu0
      %812 = vmatprep.mubr.f32.mxu0 0.0
      %813 = vmatmul.mubr.f32.gmra.mrb[0].mxu0 %v343
      %v814 = vpop.f32.mrb[0].mxu0
      %v815 = vadd.f32 %v312, %v814
      %v816 = vpop.f32.mrb[0].mxu0
      %817 = vmatprep.mubr.f32.mxu0 0.0
      %818 = vmatmul.mubr.f32.gmra.mrb[0].mxu0 %v346
      %v819 = vpop.f32.mrb[0].mxu0
      %v820 = vadd.f32 %v312, %v819
      %v821 = vpop.f32.mrb[0].mxu0
      %822 = vmatprep.mubr.f32.mxu0 0.0
      %823 = vmatmul.mubr.f32.gmra.mrb[0].mxu0 %v349
      %v824 = vpop.f32.mrb[0].mxu0
      %v825 = vadd.f32 %v312, %v824
      %v826 = vpop.f32.mrb[0].mxu0
      %827 = vmatprep.mubr.f32.mxu0 0.0
      %828 = vmatmul.mubr.f32.gmra.mrb[0].mxu0 %v352
      %v829 = vpop.f32.mrb[0].mxu0
      %v830 = vadd.f32 %v312, %v829
      %v831 = vpop.f32.mrb[0].mxu0
      %832 = vmatprep.mubr.f32.mxu0 0.0
      %833 = vmatmul.mubr.f32.gmra.mrb[0].mxu0 %v355
      %v834 = vpop.f32.mrb[0].mxu0
      %v835 = vadd.f32 %v312, %v834
      %v836 = vpop.f32.mrb[0].mxu0
      %837 = vmatprep.mubr.f32.mxu0 0.0
      %838 = vmatmul.mubr.f32.gmra.mrb[0].mxu0 %v358
      %v839 = vpop.f32.mrb[0].mxu0
      %v840 = vadd.f32 %v312, %v839
      %v841 = vpop.f32.mrb[0].mxu0
      %842 = vmatprep.mubr.f32.mxu0 0.0
      %843 = vmatmul.mubr.f32.gmra.mrb[0].mxu0 %v361
      %v844 = vpop.f32.mrb[0].mxu0
      %v845 = vadd.f32 %v312, %v844
      %v846 = vpop.f32.mrb[0].mxu0
      %847 = vmatprep.mubr.f32.mxu0 0.0
      %848 = vmatmul.mubr.f32.gmra.mrb[0].mxu0 %v364
      %v849 = vpop.f32.mrb[0].mxu0
      %v850 = vadd.f32 %v312, %v849
      %v851 = vpop.f32.mrb[0].mxu0
      %852 = vmatprep.mubr.f32.mxu0 0.0
      %853 = vmatmul.mubr.f32.gmra.mrb[0].mxu0 %v367
      %v854 = vpop.f32.mrb[0].mxu0
      %v855 = vadd.f32 %v312, %v854
      %v856 = vpop.f32.mrb[0].mxu0
      %857 = vmatprep.mubr.f32.mxu0 0.0
      %858 = vmatmul.mubr.f32.gmra.mrb[0].mxu0 %v370
      %v859 = vpop.f32.mrb[0].mxu0
      %v860 = vadd.f32 %v312, %v859
      %v861 = vpop.f32.mrb[0].mxu0
      %862 = vmatprep.mubr.f32.mxu0 0.0
      %863 = vmatmul.mubr.f32.gmra.mrb[0].mxu0 %v373
      %v864 = vpop.f32.mrb[0].mxu0
      %v865 = vadd.f32 %v312, %v864
      %v866 = vpop.f32.mrb[0].mxu0
      %867 = vmatprep.mubr.f32.mxu0 0.0
      %868 = vmatmul.mubr.f32.gmra.mrb[0].mxu0 %v376
      %v869 = vpop.f32.mrb[0].mxu0
      %v870 = vadd.f32 %v312, %v869
      %v871 = vpop.f32.mrb[0].mxu0
      %872 = vmatprep.mubr.f32.mxu0 0.0
      %873 = vmatmul.mubr.f32.gmra.mrb[0].mxu0 %v379
      %v874 = vpop.f32.mrb[0].mxu0
      %v875 = vadd.f32 %v312, %v874
      %v876 = vpop.f32.mrb[0].mxu0
      %877 = vmatprep.mubr.f32.mxu0 0.0
      %878 = vmatmul.mubr.f32.gmra.mrb[0].mxu0 %v382
      %v879 = vpop.f32.mrb[0].mxu0
      %v880 = vadd.f32 %v312, %v879
      %v881 = vpop.f32.mrb[0].mxu0
      %882 = vmatprep.mubr.f32.mxu0 0.0
      %883 = vmatmul.mubr.f32.gmra.mrb[0].mxu0 %v385
      %v884 = vpop.f32.mrb[0].mxu0
      %v885 = vadd.f32 %v312, %v884
      %v886 = vpop.f32.mrb[0].mxu0
      %887 = vmatprep.mubr.f32.mxu0 0.0
      %888 = vmatmul.mubr.f32.gmra.mrb[0].mxu0 %v388
      %v889 = vpop.f32.mrb[0].mxu0
      %v890 = vadd.f32 %v312, %v889
      %v891 = vpop.f32.mrb[0].mxu0
      %892 = vmatprep.mubr.f32.mxu0 0.0
      %893 = vmatmul.mubr.f32.gmra.mrb[0].mxu0 %v391
      %v894 = vpop.f32.mrb[0].mxu0
      %v895 = vadd.f32 %v312, %v894
      %v896 = vpop.f32.mrb[0].mxu0
      %897 = vmatprep.mubr.f32.mxu0 0.0
      %898 = vmatmul.mubr.f32.gmra.mrb[0].mxu0 %v394
      %v899 = vpop.f32.mrb[0].mxu0
      %v900 = vadd.f32 %v312, %v899
      %v901 = vpop.f32.mrb[0].mxu0
      %902 = vmatprep.mubr.f32.mxu0 0.0
      %903 = vmatmul.mubr.f32.gmra.mrb[0].mxu0 %v397
      %v904 = vpop.f32.mrb[0].mxu0
      %v905 = vadd.f32 %v312, %v904
      %v906 = vpop.f32.mrb[0].mxu0
      %907 = vmatprep.mubr.f32.mxu0 0.0
      %908 = vmatmul.mubr.f32.gmra.mrb[0].mxu0 %v400
      %v909 = vpop.f32.mrb[0].mxu0
      %v910 = vadd.f32 %v312, %v909
      %v911 = vpop.f32.mrb[0].mxu0
      %912 = vmatprep.mubr.f32.mxu0 0.0
      %913 = vmatmul.mubr.f32.gmra.mrb[0].mxu0 %v403
      %v914 = vpop.f32.mrb[0].mxu0
      %v915 = vadd.f32 %v312, %v914
      %v916 = vpop.f32.mrb[0].mxu0
      %917 = vmatprep.mubr.f32.mxu0 0.0
      %918 = vmatmul.mubr.f32.gmra.mrb[0].mxu0 %v406
      %v919 = vpop.f32.mrb[0].mxu0
      %v920 = vadd.f32 %v312, %v919
      %v921 = vpop.f32.mrb[0].mxu0
      %922 = vmatprep.mubr.f32.mxu0 0.0
      %923 = vmatmul.mubr.f32.gmra.mrb[0].mxu0 %v409
      %v924 = vpop.f32.mrb[0].mxu0
      %v925 = vadd.f32 %v312, %v924
      %v926 = vpop.f32.mrb[0].mxu0
      %927 = vmatprep.mubr.f32.mxu0 0.0
      %928 = vmatmul.mubr.f32.gmra.mrb[0].mxu0 %v412
      %v929 = vpop.f32.mrb[0].mxu0
      %v930 = vadd.f32 %v312, %v929
      %v931 = vpop.f32.mrb[0].mxu0
      %932 = vmatprep.mubr.f32.mxu0 0.0
      %933 = vmatmul.mubr.f32.gmra.mrb[0].mxu0 %v415
      %v934 = vpop.f32.mrb[0].mxu0
      %v935 = vadd.f32 %v312, %v934
      %v936 = vpop.f32.mrb[0].mxu0
      %937 = vmatprep.mubr.f32.mxu0 0.0
      %938 = vmatmul.mubr.f32.gmra.mrb[0].mxu0 %v418
      %v939 = vpop.f32.mrb[0].mxu0
      %v940 = vadd.f32 %v312, %v939
      %v941 = vpop.f32.mrb[0].mxu0
      %942 = vmatprep.mubr.f32.mxu0 0.0
      %943 = vmatmul.mubr.f32.gmra.mrb[0].mxu0 %v421
      %v944 = vpop.f32.mrb[0].mxu0
      %v945 = vadd.f32 %v312, %v944
      %v946 = vpop.f32.mrb[0].mxu0
      %947 = vmatprep.mubr.f32.mxu0 0.0
      %948 = vmatmul.mubr.f32.gmra.mrb[0].mxu0 %v424
      %v949 = vpop.f32.mrb[0].mxu0
      %v950 = vadd.f32 %v312, %v949
      %v951 = vpop.f32.mrb[0].mxu0
      %952 = vmatprep.mubr.f32.mxu0 0.0
      %953 = vmatmul.mubr.f32.gmra.mrb[0].mxu0 %v427
      %v954 = vpop.f32.mrb[0].mxu0
      %v955 = vadd.f32 %v312, %v954
      %v956 = vpop.f32.mrb[0].mxu0
      %957 = vmatprep.mubr.f32.mxu0 0.0
      %958 = vmatmul.mubr.f32.gmra.mrb[0].mxu0 %v430
      %v959 = vpop.f32.mrb[0].mxu0
      %v960 = vadd.f32 %v312, %v959
      %v961 = vpop.f32.mrb[0].mxu0
      %962 = vmatprep.mubr.f32.mxu0 0.0
      %963 = vmatmul.mubr.f32.gmra.mrb[0].mxu0 %v433
      %v964 = vpop.f32.mrb[0].mxu0
      %v965 = vadd.f32 %v312, %v964
      %v966 = vpop.f32.mrb[0].mxu0
      %967 = vmatprep.mubr.f32.mxu0 0.0
      %968 = vmatmul.mubr.f32.gmra.mrb[0].mxu0 %v436
      %v969 = vpop.f32.mrb[0].mxu0
      %v970 = vadd.f32 %v312, %v969
      %v971 = vpop.f32.mrb[0].mxu0
      %972 = vmatprep.mubr.f32.mxu0 0.0
      %973 = vmatmul.mubr.f32.gmra.mrb[0].mxu0 %v439
      %v974 = vpop.f32.mrb[0].mxu0
      %v975 = vadd.f32 %v312, %v974
      %v976 = vpop.f32.mrb[0].mxu0
      %977 = vmatprep.mubr.f32.mxu0 0.0
      %978 = vmatmul.mubr.f32.gmra.mrb[0].mxu0 %v442
      %v979 = vpop.f32.mrb[0].mxu0
      %v980 = vadd.f32 %v312, %v979
      %v981 = vpop.f32.mrb[0].mxu0
      %982 = vmatprep.mubr.f32.mxu0 0.0
      %983 = vmatmul.mubr.f32.gmra.mrb[0].mxu0 %v445
      %v984 = vpop.f32.mrb[0].mxu0
      %v985 = vadd.f32 %v312, %v984
      %v986 = vpop.f32.mrb[0].mxu0
      %987 = vmatprep.mubr.f32.mxu0 0.0
      %988 = vmatmul.mubr.f32.gmra.mrb[0].mxu0 %v448
      %v989 = vpop.f32.mrb[0].mxu0
      %v990 = vadd.f32 %v312, %v989
      %v991 = vpop.f32.mrb[0].mxu0
      %992 = vmatprep.mubr.f32.mxu0 0.0
      %993 = vmatmul.mubr.f32.gmra.mrb[0].mxu0 %v451
      %v994 = vpop.f32.mrb[0].mxu0
      %v995 = vadd.f32 %v312, %v994
      %v996 = vpop.f32.mrb[0].mxu0
      %997 = vmatprep.mubr.f32.mxu0 0.0
      %998 = vmatmul.mubr.f32.gmra.mrb[0].mxu0 %v454
      %v999 = vpop.f32.mrb[0].mxu0
      %v1000 = vadd.f32 %v312, %v999
      %v1001 = vpop.f32.mrb[0].mxu0
      %1002 = vmatprep.mubr.f32.mxu0 0.0
      %1003 = vmatmul.mubr.f32.gmra.mrb[0].mxu0 %v457
      %v1004 = vpop.f32.mrb[0].mxu0
      %v1005 = vadd.f32 %v312, %v1004
      %v1006 = vpop.f32.mrb[0].mxu0
      %1007 = vmatprep.mubr.f32.mxu0 0.0
      %1008 = vmatmul.mubr.f32.gmra.mrb[0].mxu0 %v460
      %v1009 = vpop.f32.mrb[0].mxu0
      %v1010 = vadd.f32 %v312, %v1009
      %v1011 = vpop.f32.mrb[0].mxu0
      %1012 = vmatprep.mubr.f32.mxu0 0.0
      %1013 = vmatmul.mubr.f32.gmra.mrb[0].mxu0 %v463
      %v1014 = vpop.f32.mrb[0].mxu0
      %v1015 = vadd.f32 %v312, %v1014
      %v1016 = vpop.f32.mrb[0].mxu0
      %1017 = vmatprep.mubr.f32.mxu0 0.0
      %1018 = vmatmul.mubr.f32.gmra.mrb[0].mxu0 %v466
      %v1019 = vpop.f32.mrb[0].mxu0
      %v1020 = vadd.f32 %v312, %v1019
      %v1021 = vpop.f32.mrb[0].mxu0
      %1022 = vmatprep.mubr.f32.mxu0 0.0
      %1023 = vmatmul.mubr.f32.gmra.mrb[0].mxu0 %v469
      %v1024 = vpop.f32.mrb[0].mxu0
      %v1025 = vadd.f32 %v312, %v1024
      %v1026 = vpop.f32.mrb[0].mxu0
      %1027 = vmatprep.mubr.f32.mxu0 0.0
      %1028 = vmatmul.mubr.f32.gmra.mrb[0].mxu0 %v472
      %v1029 = vpop.f32.mrb[0].mxu0
      %v1030 = vadd.f32 %v312, %v1029
      %v1031 = vpop.f32.mrb[0].mxu0
      %1032 = vmatprep.mubr.f32.mxu0 0.0
      %1033 = vmatmul.mubr.f32.gmra.mrb[0].mxu0 %v475
      %v1034 = vpop.f32.mrb[0].mxu0
      %v1035 = vadd.f32 %v312, %v1034
      %v1036 = vpop.f32.mrb[0].mxu0
      %1037 = vmatprep.mubr.f32.mxu0 0.0
      %1038 = vmatmul.mubr.f32.gmra.mrb[0].mxu0 %v478
      %v1039 = vpop.f32.mrb[0].mxu0
      %v1040 = vadd.f32 %v312, %v1039
      %v1041 = vpop.f32.mrb[0].mxu0
      %1042 = vmatprep.mubr.f32.mxu0 0.0
      %1043 = vmatmul.mubr.f32.gmra.mrb[0].mxu0 %v481
      %v1044 = vpop.f32.mrb[0].mxu0
      %v1045 = vadd.f32 %v312, %v1044
      %v1046 = vpop.f32.mrb[0].mxu0
      %1047 = vmatprep.mubr.f32.mxu0 0.0
      %1048 = vmatmul.mubr.f32.gmra.mrb[0].mxu0 %v484
      %v1049 = vpop.f32.mrb[0].mxu0
      %v1050 = vadd.f32 %v312, %v1049
      %v1051 = vpop.f32.mrb[0].mxu0
      %1052 = vmatprep.mubr.f32.mxu0 0.0
      %1053 = vmatmul.mubr.f32.gmra.mrb[0].mxu0 %v487
      %v1054 = vpop.f32.mrb[0].mxu0
      %v1055 = vadd.f32 %v312, %v1054
      %v1056 = vpop.f32.mrb[0].mxu0
      %1057 = vmatprep.mubr.f32.mxu0 0.0
      %1058 = vmatmul.mubr.f32.gmra.mrb[0].mxu0 %v490
      %v1059 = vpop.f32.mrb[0].mxu0
      %v1060 = vadd.f32 %v312, %v1059
      %v1061 = vpop.f32.mrb[0].mxu0
      %1062 = vmatprep.mubr.f32.mxu0 0.0
      %1063 = vmatmul.mubr.f32.gmra.mrb[0].mxu0 %v493
      %v1064 = vpop.f32.mrb[0].mxu0
      %v1065 = vadd.f32 %v312, %v1064
      %v1066 = vpop.f32.mrb[0].mxu0
      %1067 = vmatprep.mubr.f32.mxu0 0.0
      %1068 = vmatmul.mubr.f32.gmra.mrb[0].mxu0 %v496
      %v1069 = vpop.f32.mrb[0].mxu0
      %v1070 = vadd.f32 %v312, %v1069
      %v1071 = vpop.f32.mrb[0].mxu0
      %1072 = vmatprep.mubr.f32.mxu0 0.0
      %1073 = vmatmul.mubr.f32.gmra.mrb[0].mxu0 %v499
      %v1074 = vpop.f32.mrb[0].mxu0
      %v1075 = vadd.f32 %v312, %v1074
      %v1076 = vpop.f32.mrb[0].mxu0
      %1077 = vmatprep.mubr.f32.mxu0 0.0
      %1078 = vmatmul.mubr.f32.gmra.mrb[0].mxu0 %v502
      %v1079 = vpop.f32.mrb[0].mxu0
      %v1080 = vadd.f32 %v312, %v1079
      %v1081 = vpop.f32.mrb[0].mxu0
      %1082 = vmatprep.mubr.f32.mxu0 0.0
      %1083 = vmatmul.mubr.f32.gmra.mrb[0].mxu0 %v505
      %v1084 = vpop.f32.mrb[0].mxu0
      %v1085 = vadd.f32 %v312, %v1084
      %v1086 = vpop.f32.mrb[0].mxu0
      %1087 = vmatprep.mubr.f32.mxu0 0.0
      %1088 = vmatmul.mubr.f32.gmra.mrb[0].mxu0 %v508
      %v1089 = vpop.f32.mrb[0].mxu0
      %v1090 = vadd.f32 %v312, %v1089
      %v1091 = vpop.f32.mrb[0].mxu0
      %1092 = vmatprep.mubr.f32.mxu0 0.0
      %1093 = vmatmul.mubr.f32.gmra.mrb[0].mxu0 %v511
      %v1094 = vpop.f32.mrb[0].mxu0
      %v1095 = vadd.f32 %v312, %v1094
      %v1096 = vpop.f32.mrb[0].mxu0
      %1097 = vmatprep.mubr.f32.mxu0 0.0
      %1098 = vmatmul.mubr.f32.gmra.mrb[0].mxu0 %v514
      %v1099 = vpop.f32.mrb[0].mxu0
      %v1100 = vadd.f32 %v312, %v1099
      %v1101 = vpop.f32.mrb[0].mxu0
      %1102 = vmatprep.mubr.f32.mxu0 0.0
      %1103 = vmatmul.mubr.f32.gmra.mrb[0].mxu0 %v517
      %v1104 = vpop.f32.mrb[0].mxu0
      %v1105 = vadd.f32 %v312, %v1104
      %v1106 = vpop.f32.mrb[0].mxu0
      %1107 = vmatprep.mubr.f32.mxu0 0.0
      %1108 = vmatmul.mubr.f32.gmra.mrb[0].mxu0 %v520
      %v1109 = vpop.f32.mrb[0].mxu0
      %v1110 = vadd.f32 %v312, %v1109
      %v1111 = vpop.f32.mrb[0].mxu0
      %1112 = vmatprep.mubr.f32.mxu0 0.0
      %1113 = vmatmul.mubr.f32.gmra.mrb[0].mxu0 %v523
      %v1114 = vpop.f32.mrb[0].mxu0
      %v1115 = vadd.f32 %v312, %v1114
      %v1116 = vpop.f32.mrb[0].mxu0
      %1117 = vmatprep.mubr.f32.mxu0 0.0
      %1118 = vmatmul.mubr.f32.gmra.mrb[0].mxu0 %v526
      %v1119 = vpop.f32.mrb[0].mxu0
      %v1120 = vadd.f32 %v312, %v1119
      %v1121 = vpop.f32.mrb[0].mxu0
      %1122 = vmatprep.mubr.f32.mxu0 0.0
      %1123 = vmatmul.mubr.f32.gmra.mrb[0].mxu0 %v529
      %v1124 = vpop.f32.mrb[0].mxu0
      %v1125 = vadd.f32 %v312, %v1124
      %v1126 = vpop.f32.mrb[0].mxu0
      %1127 = vmatprep.mubr.f32.mxu0 0.0
      %1128 = vmatmul.mubr.f32.gmra.mrb[0].mxu0 %v532
      %v1129 = vpop.f32.mrb[0].mxu0
      %v1130 = vadd.f32 %v312, %v1129
      %v1131 = vpop.f32.mrb[0].mxu0
      %1132 = vmatprep.mubr.f32.mxu0 0.0
      %1133 = vmatmul.mubr.f32.gmra.mrb[0].mxu0 %v535
      %v1134 = vpop.f32.mrb[0].mxu0
      %v1135 = vadd.f32 %v312, %v1134
      %v1136 = vpop.f32.mrb[0].mxu0
      %1137 = vmatprep.mubr.f32.mxu0 0.0
      %1138 = vmatmul.mubr.f32.gmra.mrb[0].mxu0 %v538
      %v1139 = vpop.f32.mrb[0].mxu0
      %v1140 = vadd.f32 %v312, %v1139
      %v1141 = vpop.f32.mrb[0].mxu0
      %1142 = vmatprep.mubr.f32.mxu0 0.0
      %1143 = vmatmul.mubr.f32.gmra.mrb[0].mxu0 %v541
      %v1144 = vpop.f32.mrb[0].mxu0
      %v1145 = vadd.f32 %v312, %v1144
      %v1146 = vpop.f32.mrb[0].mxu0
      %1147 = vmatprep.mubr.f32.mxu0 0.0
      %1148 = vmatmul.mubr.f32.gmra.mrb[0].mxu0 %v544
      %v1149 = vpop.f32.mrb[0].mxu0
      %v1150 = vadd.f32 %v312, %v1149
      %v1151 = vpop.f32.mrb[0].mxu0
      %1152 = vmatprep.mubr.f32.mxu0 0.0
      %1153 = vmatmul.mubr.f32.gmra.mrb[0].mxu0 %v547
      %v1154 = vpop.f32.mrb[0].mxu0
      %v1155 = vadd.f32 %v312, %v1154
      %v1156 = vpop.f32.mrb[0].mxu0
      %1157 = vmatprep.mubr.f32.mxu0 0.0
      %1158 = vmatmul.mubr.f32.gmra.mrb[0].mxu0 %v550
      %v1159 = vpop.f32.mrb[0].mxu0
      %v1160 = vadd.f32 %v312, %v1159
      %v1161 = vpop.f32.mrb[0].mxu0
      %1162 = vmatprep.mubr.f32.mxu0 0.0
      %1163 = vmatmul.mubr.f32.gmra.mrb[0].mxu0 %v553
      %v1164 = vpop.f32.mrb[0].mxu0
      %v1165 = vadd.f32 %v312, %v1164
      %v1166 = vpop.f32.mrb[0].mxu0
      %1167 = vmatprep.mubr.f32.mxu0 0.0
      %1168 = vmatmul.mubr.f32.gmra.mrb[0].mxu0 %v556
      %v1169 = vpop.f32.mrb[0].mxu0
      %v1170 = vadd.f32 %v312, %v1169
      %v1171 = vpop.f32.mrb[0].mxu0
      %1172 = vmatprep.mubr.f32.mxu0 0.0
      %1173 = vmatmul.mubr.f32.gmra.mrb[0].mxu0 %v559
      %v1174 = vpop.f32.mrb[0].mxu0
      %v1175 = vadd.f32 %v312, %v1174
      %v1176 = vpop.f32.mrb[0].mxu0
      %1177 = vmatprep.mubr.f32.mxu0 0.0
      %1178 = vmatmul.mubr.f32.gmra.mrb[0].mxu0 %v562
      %v1179 = vpop.f32.mrb[0].mxu0
      %v1180 = vadd.f32 %v312, %v1179
      %v1181 = vpop.f32.mrb[0].mxu0
      %1182 = vmatprep.mubr.f32.mxu0 0.0
      %1183 = vmatmul.mubr.f32.gmra.mrb[0].mxu0 %v565
      %v1184 = vpop.f32.mrb[0].mxu0
      %v1185 = vadd.f32 %v312, %v1184
      %v1186 = vpop.f32.mrb[0].mxu0
      %1187 = vmatprep.mubr.f32.mxu0 0.0
      %1188 = vmatmul.mubr.f32.gmra.mrb[0].mxu0 %v568
      %v1189 = vpop.f32.mrb[0].mxu0
      %v1190 = vadd.f32 %v312, %v1189
      %v1191 = vpop.f32.mrb[0].mxu0
      %1192 = vmatprep.mubr.f32.mxu0 0.0
      %1193 = vmatmul.mubr.f32.gmra.mrb[0].mxu0 %v571
      %v1194 = vpop.f32.mrb[0].mxu0
      %v1195 = vadd.f32 %v312, %v1194
      %v1196 = vpop.f32.mrb[0].mxu0
      %1197 = vmatprep.mubr.f32.mxu0 0.0
      %1198 = vmatmul.mubr.f32.gmra.mrb[0].mxu0 %v574
      %v1199 = vpop.f32.mrb[0].mxu0
      %v1200 = vadd.f32 %v312, %v1199
      %v1201 = vpop.f32.mrb[0].mxu0
      %1202 = vmatprep.mubr.f32.mxu0 0.0
      %1203 = vmatmul.mubr.f32.gmra.mrb[0].mxu0 %v577
      %v1204 = vpop.f32.mrb[0].mxu0
      %v1205 = vadd.f32 %v312, %v1204
      %v1206 = vpop.f32.mrb[0].mxu0
      %1207 = vmatprep.mubr.f32.mxu0 0.0
      %1208 = vmatmul.mubr.f32.gmra.mrb[0].mxu0 %v580
      %v1209 = vpop.f32.mrb[0].mxu0
      %v1210 = vadd.f32 %v312, %v1209
      %v1211 = vpop.f32.mrb[0].mxu0
      %1212 = vmatprep.mubr.f32.mxu0 0.0
      %1213 = vmatmul.mubr.f32.gmra.mrb[0].mxu0 %v583
      %v1214 = vpop.f32.mrb[0].mxu0
      %v1215 = vadd.f32 %v312, %v1214
      %v1216 = vpop.f32.mrb[0].mxu0
      %1217 = vmatprep.mubr.f32.mxu0 0.0
      %1218 = vmatmul.mubr.f32.gmra.mrb[0].mxu0 %v586
      %v1219 = vpop.f32.mrb[0].mxu0
      %v1220 = vadd.f32 %v312, %v1219
      %v1221 = vpop.f32.mrb[0].mxu0
      %1222 = vmatprep.mubr.f32.mxu0 0.0
      %1223 = vmatmul.mubr.f32.gmra.mrb[0].mxu0 %v589
      %v1224 = vpop.f32.mrb[0].mxu0
      %v1225 = vadd.f32 %v312, %v1224
      %v1226 = vpop.f32.mrb[0].mxu0
      %1227 = vmatprep.mubr.f32.mxu0 0.0
      %1228 = vmatmul.mubr.f32.gmra.mrb[0].mxu0 %v592
      %v1229 = vpop.f32.mrb[0].mxu0
      %v1230 = vadd.f32 %v312, %v1229
      %v1231 = vpop.f32.mrb[0].mxu0
      %1232 = vmatprep.mubr.f32.mxu0 0.0
      %1233 = vmatmul.mubr.f32.gmra.mrb[0].mxu0 %v595
      %v1234 = vpop.f32.mrb[0].mxu0
      %v1235 = vadd.f32 %v312, %v1234
      %v1236 = vpop.f32.mrb[0].mxu0
      %1237 = vmatprep.mubr.f32.mxu0 0.0
      %1238 = vmatmul.mubr.f32.gmra.mrb[0].mxu0 %v598
      %v1239 = vpop.f32.mrb[0].mxu0
      %v1240 = vadd.f32 %v312, %v1239
      %v1241 = vpop.f32.mrb[0].mxu0
      %1242 = vmatprep.mubr.f32.mxu0 0.0
      %1243 = vmatmul.mubr.f32.gmra.mrb[0].mxu0 %v601
      %v1244 = vpop.f32.mrb[0].mxu0
      %v1245 = vadd.f32 %v312, %v1244
      %v1246 = vpop.f32.mrb[0].mxu0
      %1247 = vmatprep.mubr.f32.mxu0 0.0
      %1248 = vmatmul.mubr.f32.gmra.mrb[0].mxu0 %v604
      %v1249 = vpop.f32.mrb[0].mxu0
      %v1250 = vadd.f32 %v312, %v1249
      %v1251 = vpop.f32.mrb[0].mxu0
      %1252 = vmatprep.mubr.f32.mxu0 0.0
      %1253 = vmatmul.mubr.f32.gmra.mrb[0].mxu0 %v607
      %v1254 = vpop.f32.mrb[0].mxu0
      %v1255 = vadd.f32 %v312, %v1254
      %v1256 = vpop.f32.mrb[0].mxu0
      %1257 = vmatprep.mubr.f32.mxu0 0.0
      %1258 = vmatmul.mubr.f32.gmra.mrb[0].mxu0 %v610
      %v1259 = vpop.f32.mrb[0].mxu0
      %v1260 = vadd.f32 %v312, %v1259
      %v1261 = vpop.f32.mrb[0].mxu0
      %1262 = vmatprep.mubr.f32.mxu0 0.0
      %1263 = vmatmul.mubr.f32.gmra.mrb[0].mxu0 %v613
      %v1264 = vpop.f32.mrb[0].mxu0
      %v1265 = vadd.f32 %v312, %v1264
      %v1266 = vpop.f32.mrb[0].mxu0
      %1267 = vmatprep.mubr.f32.mxu0 0.0
      %1268 = vmatmul.mubr.f32.gmra.mrb[0].mxu0 %v616
      %v1269 = vpop.f32.mrb[0].mxu0
      %v1270 = vadd.f32 %v312, %v1269
      %v1271 = vpop.f32.mrb[0].mxu0
      %1272 = vmatprep.mubr.f32.mxu0 0.0
      %1273 = vmatmul.mubr.f32.gmra.mrb[0].mxu0 %v619
      %v1274 = vpop.f32.mrb[0].mxu0
      %v1275 = vadd.f32 %v312, %v1274
      %v1276 = vpop.f32.mrb[0].mxu0
      %1277 = vmatprep.mubr.f32.mxu0 0.0
      %1278 = vmatmul.mubr.f32.gmra.mrb[0].mxu0 %v622
      %v1279 = vpop.f32.mrb[0].mxu0
      %v1280 = vadd.f32 %v312, %v1279
      %v1281 = vpop.f32.mrb[0].mxu0
      %1282 = vmatprep.mubr.f32.mxu0 0.0
      %1283 = vmatmul.mubr.f32.gmra.mrb[0].mxu0 %v625
      %v1284 = vpop.f32.mrb[0].mxu0
      %v1285 = vadd.f32 %v312, %v1284
      %v1286 = vpop.f32.mrb[0].mxu0
      %1287 = vmatprep.mubr.f32.mxu0 0.0
      %1288 = vmatmul.mubr.f32.gmra.mrb[0].mxu0 %v628
      %v1289 = vpop.f32.mrb[0].mxu0
      %v1290 = vadd.f32 %v312, %v1289
      %v1291 = vpop.f32.mrb[0].mxu0
      %1292 = vmatprep.mubr.f32.mxu0 0.0
      %1293 = vmatmul.mubr.f32.gmra.mrb[0].mxu0 %v631
      %v1294 = vpop.f32.mrb[0].mxu0
      %v1295 = vadd.f32 %v312, %v1294
      %v1296 = vpop.f32.mrb[0].mxu0
      %1297 = vmatprep.mubr.f32.mxu0 0.0
      %1298 = vmatmul.mubr.f32.gmra.mrb[0].mxu0 %v634
      %v1299 = vpop.f32.mrb[0].mxu0
      %v1300 = vadd.f32 %v312, %v1299
      %v1301 = vpop.f32.mrb[0].mxu0
      %1302 = vmatprep.mubr.f32.mxu0 0.0
      %1303 = vmatmul.mubr.f32.gmra.mrb[0].mxu0 %v637
      %v1304 = vpop.f32.mrb[0].mxu0
      %v1305 = vadd.f32 %v312, %v1304
      %v1306 = vpop.f32.mrb[0].mxu0
      %1307 = vmatprep.mubr.f32.mxu0 0.0
      %1308 = vmatmul.mubr.f32.gmra.mrb[0].mxu0 %v640
      %v1309 = vpop.f32.mrb[0].mxu0
      %v1310 = vadd.f32 %v312, %v1309
      %v1311 = vpop.f32.mrb[0].mxu0
      %1312 = vmatprep.mubr.f32.mxu0 0.0
      %1313 = vmatmul.mubr.f32.gmra.mrb[0].mxu0 %v643
      %v1314 = vpop.f32.mrb[0].mxu0
      %v1315 = vadd.f32 %v312, %v1314
      %v1316 = vpop.f32.mrb[0].mxu0
      %1317 = vmatprep.mubr.f32.mxu0 0.0
      %1318 = vmatmul.mubr.f32.gmra.mrb[0].mxu0 %v646
      %v1319 = vpop.f32.mrb[0].mxu0
      %v1320 = vadd.f32 %v312, %v1319
      %v1321 = vpop.f32.mrb[0].mxu0
      %1322 = vmatprep.mubr.f32.mxu0 0.0
      %1323 = vmatmul.mubr.f32.gmra.mrb[0].mxu0 %v649
      %v1324 = vpop.f32.mrb[0].mxu0
      %v1325 = vadd.f32 %v312, %v1324
      %v1326 = vpop.f32.mrb[0].mxu0
      %1327 = vmatprep.mubr.f32.mxu0 0.0
      %1328 = vmatmul.mubr.f32.gmra.mrb[0].mxu0 %v652
      %v1329 = vpop.f32.mrb[0].mxu0
      %v1330 = vadd.f32 %v312, %v1329
      %v1331 = vpop.f32.mrb[0].mxu0
      %1332 = vmatprep.mubr.f32.mxu0 0.0
      %1333 = vmatmul.mubr.f32.gmra.mrb[0].mxu0 %v655
      %v1334 = vpop.f32.mrb[0].mxu0
      %v1335 = vadd.f32 %v312, %v1334
      %v1336 = vpop.f32.mrb[0].mxu0
      %1337 = vmatprep.mubr.f32.mxu0 0.0
      %1338 = vmatmul.mubr.f32.gmra.mrb[0].mxu0 %v658
      %v1339 = vpop.f32.mrb[0].mxu0
      %v1340 = vadd.f32 %v312, %v1339
      %v1341 = vpop.f32.mrb[0].mxu0
      %1342 = vmatprep.mubr.f32.mxu0 0.0
      %1343 = vmatmul.mubr.f32.gmra.mrb[0].mxu0 %v661
      %v1344 = vpop.f32.mrb[0].mxu0
      %v1345 = vadd.f32 %v312, %v1344
      %v1346 = vpop.f32.mrb[0].mxu0
      %1347 = vmatprep.mubr.f32.mxu0 0.0
      %1348 = vmatmul.mubr.f32.gmra.mrb[0].mxu0 %v664
      %v1349 = vpop.f32.mrb[0].mxu0
      %v1350 = vadd.f32 %v312, %v1349
      %v1351 = vpop.f32.mrb[0].mxu0
      %1352 = vmatprep.mubr.f32.mxu0 0.0
      %1353 = vmatmul.mubr.f32.gmra.mrb[0].mxu0 %v667
      %v1354 = vpop.f32.mrb[0].mxu0
      %v1355 = vadd.f32 %v312, %v1354
      %v1356 = vpop.f32.mrb[0].mxu0
      %1357 = vmatprep.mubr.f32.mxu0 0.0
      %1358 = vmatmul.mubr.f32.gmra.mrb[0].mxu0 %v670
      %v1359 = vpop.f32.mrb[0].mxu0
      %v1360 = vadd.f32 %v312, %v1359
      %v1361 = vpop.f32.mrb[0].mxu0
      %1362 = vmatprep.mubr.f32.mxu0 0.0
      %1363 = vmatmul.mubr.f32.gmra.mrb[0].mxu0 %v673
      %v1364 = vpop.f32.mrb[0].mxu0
      %v1365 = vadd.f32 %v312, %v1364
      %v1366 = vpop.f32.mrb[0].mxu0
      %1367 = vmatprep.mubr.f32.mxu0 0.0
      %1368 = vmatmul.mubr.f32.gmra.mrb[0].mxu0 %v676
      %v1369 = vpop.f32.mrb[0].mxu0
      %v1370 = vadd.f32 %v312, %v1369
      %v1371 = vpop.f32.mrb[0].mxu0
      %1372 = vmatprep.mubr.f32.mxu0 0.0
      %1373 = vmatmul.mubr.f32.gmra.mrb[0].mxu0 %v679
      %v1374 = vpop.f32.mrb[0].mxu0
      %v1375 = vadd.f32 %v312, %v1374
      %v1376 = vpop.f32.mrb[0].mxu0
      %1377 = vmatprep.mubr.f32.mxu0 0.0
      %1378 = vmatmul.mubr.f32.gmra.mrb[0].mxu0 %v682
      %v1379 = vpop.f32.mrb[0].mxu0
      %v1380 = vadd.f32 %v312, %v1379
      %v1381 = vpop.f32.mrb[0].mxu0
      %1382 = vmatprep.mubr.f32.mxu0 0.0
      %1383 = vmatmul.mubr.f32.gmra.mrb[0].mxu0 %v685
      %v1384 = vpop.f32.mrb[0].mxu0
      %v1385 = vadd.f32 %v312, %v1384
      %v1386 = vpop.f32.mrb[0].mxu0
      %1387 = vmatprep.mubr.f32.mxu0 0.0
      %1388 = vmatmul.mubr.f32.gmra.mrb[0].mxu0 %v688
      %v1389 = vpop.f32.mrb[0].mxu0
      %v1390 = vadd.f32 %v312, %v1389
      %v1391 = vpop.f32.mrb[0].mxu0
      %1392 = vmatprep.mubr.f32.mxu0 0.0
      %1393 = vmatmul.mubr.f32.gmra.mrb[0].mxu0 %v691
      %v1394 = vpop.f32.mrb[0].mxu0
      %v1395 = vadd.f32 %v312, %v1394
      %v1396 = vpop.f32.mrb[0].mxu0
      %1397 = vmatprep.mubr.f32.mxu0 0.0
      %1398 = vmatmul.mubr.f32.gmra.mrb[0].mxu0 %v694
      %v1399 = vpop.f32.mrb[0].mxu0
      %v1400 = vadd.f32 %v312, %v1399
      %v1401 = vpop.f32.mrb[0].mxu0
      %1402 = vmatprep.mubr.f32.mxu0 0.0
      %1403 = vmatmul.mubr.f32.gmra.mrb[0].mxu0 %v697
      %v1404 = vpop.f32.mrb[0].mxu0
      %v1405 = vadd.f32 %v312, %v1404
      %v1406 = vpop.f32.mrb[0].mxu0
      %1407 = vdwg.mxu0
      %v1408 = vmax.f32 %v770, 0.0
      %v1409 = vmax.f32 %v775, 0.0
      %v1410 = vmax.f32 %v780, 0.0
      %v1411 = vmax.f32 %v785, 0.0
      %v1412 = vmax.f32 %v790, 0.0
      %v1413 = vmax.f32 %v795, 0.0
      %v1414 = vmax.f32 %v800, 0.0
      %v1415 = vmax.f32 %v805, 0.0
      %v1416 = vmax.f32 %v810, 0.0
      %v1417 = vmax.f32 %v815, 0.0
      %v1418 = vmax.f32 %v820, 0.0
      %v1419 = vmax.f32 %v825, 0.0
      %v1420 = vmax.f32 %v830, 0.0
      %v1421 = vmax.f32 %v835, 0.0
      %v1422 = vmax.f32 %v840, 0.0
      %v1423 = vmax.f32 %v845, 0.0
      %v1424 = vmax.f32 %v850, 0.0
      %v1425 = vmax.f32 %v855, 0.0
      %v1426 = vmax.f32 %v860, 0.0
      %v1427 = vmax.f32 %v865, 0.0
      %v1428 = vmax.f32 %v870, 0.0
      %v1429 = vmax.f32 %v875, 0.0
      %v1430 = vmax.f32 %v880, 0.0
      %v1431 = vmax.f32 %v885, 0.0
      %v1432 = vmax.f32 %v890, 0.0
      %v1433 = vmax.f32 %v895, 0.0
      %v1434 = vmax.f32 %v900, 0.0
      %v1435 = vmax.f32 %v905, 0.0
      %v1436 = vmax.f32 %v910, 0.0
      %v1437 = vmax.f32 %v915, 0.0
      %v1438 = vmax.f32 %v920, 0.0
      %v1439 = vmax.f32 %v925, 0.0
      %v1440 = vmax.f32 %v930, 0.0
      %v1441 = vmax.f32 %v935, 0.0
      %v1442 = vmax.f32 %v940, 0.0
      %v1443 = vmax.f32 %v945, 0.0
      %v1444 = vmax.f32 %v950, 0.0
      %v1445 = vmax.f32 %v955, 0.0
      %v1446 = vmax.f32 %v960, 0.0
      %v1447 = vmax.f32 %v965, 0.0
      %v1448 = vmax.f32 %v970, 0.0
      %v1449 = vmax.f32 %v975, 0.0
      %v1450 = vmax.f32 %v980, 0.0
      %v1451 = vmax.f32 %v985, 0.0
      %v1452 = vmax.f32 %v990, 0.0
      %v1453 = vmax.f32 %v995, 0.0
      %v1454 = vmax.f32 %v1000, 0.0
      %v1455 = vmax.f32 %v1005, 0.0
      %v1456 = vmax.f32 %v1010, 0.0
      %v1457 = vmax.f32 %v1015, 0.0
      %v1458 = vmax.f32 %v1020, 0.0
      %v1459 = vmax.f32 %v1025, 0.0
      %v1460 = vmax.f32 %v1030, 0.0
      %v1461 = vmax.f32 %v1035, 0.0
      %v1462 = vmax.f32 %v1040, 0.0
      %v1463 = vmax.f32 %v1045, 0.0
      %v1464 = vmax.f32 %v1050, 0.0
      %v1465 = vmax.f32 %v1055, 0.0
      %v1466 = vmax.f32 %v1060, 0.0
      %v1467 = vmax.f32 %v1065, 0.0
      %v1468 = vmax.f32 %v1070, 0.0
      %v1469 = vmax.f32 %v1075, 0.0
      %v1470 = vmax.f32 %v1080, 0.0
      %v1471 = vmax.f32 %v1085, 0.0
      %v1472 = vmax.f32 %v1090, 0.0
      %v1473 = vmax.f32 %v1095, 0.0
      %v1474 = vmax.f32 %v1100, 0.0
      %v1475 = vmax.f32 %v1105, 0.0
      %v1476 = vmax.f32 %v1110, 0.0
      %v1477 = vmax.f32 %v1115, 0.0
      %v1478 = vmax.f32 %v1120, 0.0
      %v1479 = vmax.f32 %v1125, 0.0
      %v1480 = vmax.f32 %v1130, 0.0
      %v1481 = vmax.f32 %v1135, 0.0
      %v1482 = vmax.f32 %v1140, 0.0
      %v1483 = vmax.f32 %v1145, 0.0
      %v1484 = vmax.f32 %v1150, 0.0
      %v1485 = vmax.f32 %v1155, 0.0
      %v1486 = vmax.f32 %v1160, 0.0
      %v1487 = vmax.f32 %v1165, 0.0
      %v1488 = vmax.f32 %v1170, 0.0
      %v1489 = vmax.f32 %v1175, 0.0
      %v1490 = vmax.f32 %v1180, 0.0
      %v1491 = vmax.f32 %v1185, 0.0
      %v1492 = vmax.f32 %v1190, 0.0
      %v1493 = vmax.f32 %v1195, 0.0
      %v1494 = vmax.f32 %v1200, 0.0
      %v1495 = vmax.f32 %v1205, 0.0
      %v1496 = vmax.f32 %v1210, 0.0
      %v1497 = vmax.f32 %v1215, 0.0
      %v1498 = vmax.f32 %v1220, 0.0
      %v1499 = vmax.f32 %v1225, 0.0
      %v1500 = vmax.f32 %v1230, 0.0
      %v1501 = vmax.f32 %v1235, 0.0
      %v1502 = vmax.f32 %v1240, 0.0
      %v1503 = vmax.f32 %v1245, 0.0
      %v1504 = vmax.f32 %v1250, 0.0
      %v1505 = vmax.f32 %v1255, 0.0
      %v1506 = vmax.f32 %v1260, 0.0
      %v1507 = vmax.f32 %v1265, 0.0
      %v1508 = vmax.f32 %v1270, 0.0
      %v1509 = vmax.f32 %v1275, 0.0
      %v1510 = vmax.f32 %v1280, 0.0
      %v1511 = vmax.f32 %v1285, 0.0
      %v1512 = vmax.f32 %v1290, 0.0
      %v1513 = vmax.f32 %v1295, 0.0
      %v1514 = vmax.f32 %v1300, 0.0
      %v1515 = vmax.f32 %v1305, 0.0
      %v1516 = vmax.f32 %v1310, 0.0
      %v1517 = vmax.f32 %v1315, 0.0
      %v1518 = vmax.f32 %v1320, 0.0
      %v1519 = vmax.f32 %v1325, 0.0
      %v1520 = vmax.f32 %v1330, 0.0
      %v1521 = vmax.f32 %v1335, 0.0
      %v1522 = vmax.f32 %v1340, 0.0
      %v1523 = vmax.f32 %v1345, 0.0
      %v1524 = vmax.f32 %v1350, 0.0
      %v1525 = vmax.f32 %v1355, 0.0
      %v1526 = vmax.f32 %v1360, 0.0
      %v1527 = vmax.f32 %v1365, 0.0
      %v1528 = vmax.f32 %v1370, 0.0
      %v1529 = vmax.f32 %v1375, 0.0
      %v1530 = vmax.f32 %v1380, 0.0
      %v1531 = vmax.f32 %v1385, 0.0
      %v1532 = vmax.f32 %v1390, 0.0
      %v1533 = vmax.f32 %v1395, 0.0
      %v1534 = vmax.f32 %v1400, 0.0
      %v1535 = vmax.f32 %v1405, 0.0
      %1536 = vst [vmem:[%s172] sm:$0xff] %v1408
      %1537 = vst [vmem:[%s172 + $0x8] sm:$0xff] %v1409
      %1538 = vst [vmem:[%s172 + $0x10] sm:$0xff] %v1410
      %1539 = vst [vmem:[%s172 + $0x18] sm:$0xff] %v1411
      %1540 = vst [vmem:[%s172 + $0x20] sm:$0xff] %v1412
      %1541 = vst [vmem:[%s172 + $0x28] sm:$0xff] %v1413
      %1542 = vst [vmem:[%s172 + $0x30] sm:$0xff] %v1414
      %1543 = vst [vmem:[%s172 + $0x38] sm:$0xff] %v1415
      %1544 = vst [vmem:[%s172 + $0x40] sm:$0xff] %v1416
      %1545 = vst [vmem:[%s172 + $0x48] sm:$0xff] %v1417
      %1546 = vst [vmem:[%s172 + $0x50] sm:$0xff] %v1418
      %1547 = vst [vmem:[%s172 + $0x58] sm:$0xff] %v1419
      %1548 = vst [vmem:[%s172 + $0x60] sm:$0xff] %v1420
      %1549 = vst [vmem:[%s172 + $0x68] sm:$0xff] %v1421
      %1550 = vst [vmem:[%s172 + $0x70] sm:$0xff] %v1422
      %1551 = vst [vmem:[%s172 + $0x78] sm:$0xff] %v1423
      %1552 = vst [vmem:[%s172 + $0x80] sm:$0xff] %v1424
      %1553 = vst [vmem:[%s172 + $0x88] sm:$0xff] %v1425
      %1554 = vst [vmem:[%s172 + $0x90] sm:$0xff] %v1426
      %1555 = vst [vmem:[%s172 + $0x98] sm:$0xff] %v1427
      %1556 = vst [vmem:[%s172 + $0xa0] sm:$0xff] %v1428
      %1557 = vst [vmem:[%s172 + $0xa8] sm:$0xff] %v1429
      %1558 = vst [vmem:[%s172 + $0xb0] sm:$0xff] %v1430
      %1559 = vst [vmem:[%s172 + $0xb8] sm:$0xff] %v1431
      %1560 = vst [vmem:[%s172 + $0xc0] sm:$0xff] %v1432
      %1561 = vst [vmem:[%s172 + $0xc8] sm:$0xff] %v1433
      %1562 = vst [vmem:[%s172 + $0xd0] sm:$0xff] %v1434
      %1563 = vst [vmem:[%s172 + $0xd8] sm:$0xff] %v1435
      %1564 = vst [vmem:[%s172 + $0xe0] sm:$0xff] %v1436
      %1565 = vst [vmem:[%s172 + $0xe8] sm:$0xff] %v1437
      %1566 = vst [vmem:[%s172 + $0xf0] sm:$0xff] %v1438
      %1567 = vst [vmem:[%s172 + $0xf8] sm:$0xff] %v1439
      %1568 = vst [vmem:[%s172 + $0x100] sm:$0xff] %v1440
      %1569 = vst [vmem:[%s172 + $0x108] sm:$0xff] %v1441
      %1570 = vst [vmem:[%s172 + $0x110] sm:$0xff] %v1442
      %1571 = vst [vmem:[%s172 + $0x118] sm:$0xff] %v1443
      %1572 = vst [vmem:[%s172 + $0x120] sm:$0xff] %v1444
      %1573 = vst [vmem:[%s172 + $0x128] sm:$0xff] %v1445
      %1574 = vst [vmem:[%s172 + $0x130] sm:$0xff] %v1446
      %1575 = vst [vmem:[%s172 + $0x138] sm:$0xff] %v1447
      %1576 = vst [vmem:[%s172 + $0x140] sm:$0xff] %v1448
      %1577 = vst [vmem:[%s172 + $0x148] sm:$0xff] %v1449
      %1578 = vst [vmem:[%s172 + $0x150] sm:$0xff] %v1450
      %1579 = vst [vmem:[%s172 + $0x158] sm:$0xff] %v1451
      %1580 = vst [vmem:[%s172 + $0x160] sm:$0xff] %v1452
      %1581 = vst [vmem:[%s172 + $0x168] sm:$0xff] %v1453
      %1582 = vst [vmem:[%s172 + $0x170] sm:$0xff] %v1454
      %1583 = vst [vmem:[%s172 + $0x178] sm:$0xff] %v1455
      %1584 = vst [vmem:[%s172 + $0x180] sm:$0xff] %v1456
      %1585 = vst [vmem:[%s172 + $0x188] sm:$0xff] %v1457
      %1586 = vst [vmem:[%s172 + $0x190] sm:$0xff] %v1458
      %1587 = vst [vmem:[%s172 + $0x198] sm:$0xff] %v1459
      %1588 = vst [vmem:[%s172 + $0x1a0] sm:$0xff] %v1460
      %1589 = vst [vmem:[%s172 + $0x1a8] sm:$0xff] %v1461
      %1590 = vst [vmem:[%s172 + $0x1b0] sm:$0xff] %v1462
      %1591 = vst [vmem:[%s172 + $0x1b8] sm:$0xff] %v1463
      %1592 = vst [vmem:[%s172 + $0x1c0] sm:$0xff] %v1464
      %1593 = vst [vmem:[%s172 + $0x1c8] sm:$0xff] %v1465
      %1594 = vst [vmem:[%s172 + $0x1d0] sm:$0xff] %v1466
      %1595 = vst [vmem:[%s172 + $0x1d8] sm:$0xff] %v1467
      %1596 = vst [vmem:[%s172 + $0x1e0] sm:$0xff] %v1468
      %1597 = vst [vmem:[%s172 + $0x1e8] sm:$0xff] %v1469
      %1598 = vst [vmem:[%s172 + $0x1f0] sm:$0xff] %v1470
      %1599 = vst [vmem:[%s172 + $0x1f8] sm:$0xff] %v1471
      %1600 = vst [vmem:[%s172 + $0x200] sm:$0xff] %v1472
      %1601 = vst [vmem:[%s172 + $0x208] sm:$0xff] %v1473
      %1602 = vst [vmem:[%s172 + $0x210] sm:$0xff] %v1474
      %1603 = vst [vmem:[%s172 + $0x218] sm:$0xff] %v1475
      %1604 = vst [vmem:[%s172 + $0x220] sm:$0xff] %v1476
      %1605 = vst [vmem:[%s172 + $0x228] sm:$0xff] %v1477
      %1606 = vst [vmem:[%s172 + $0x230] sm:$0xff] %v1478
      %1607 = vst [vmem:[%s172 + $0x238] sm:$0xff] %v1479
      %1608 = vst [vmem:[%s172 + $0x240] sm:$0xff] %v1480
      %1609 = vst [vmem:[%s172 + $0x248] sm:$0xff] %v1481
      %1610 = vst [vmem:[%s172 + $0x250] sm:$0xff] %v1482
      %1611 = vst [vmem:[%s172 + $0x258] sm:$0xff] %v1483
      %1612 = vst [vmem:[%s172 + $0x260] sm:$0xff] %v1484
      %1613 = vst [vmem:[%s172 + $0x268] sm:$0xff] %v1485
      %1614 = vst [vmem:[%s172 + $0x270] sm:$0xff] %v1486
      %1615 = vst [vmem:[%s172 + $0x278] sm:$0xff] %v1487
      %1616 = vst [vmem:[%s172 + $0x280] sm:$0xff] %v1488
      %1617 = vst [vmem:[%s172 + $0x288] sm:$0xff] %v1489
      %1618 = vst [vmem:[%s172 + $0x290] sm:$0xff] %v1490
      %1619 = vst [vmem:[%s172 + $0x298] sm:$0xff] %v1491
      %1620 = vst [vmem:[%s172 + $0x2a0] sm:$0xff] %v1492
      %1621 = vst [vmem:[%s172 + $0x2a8] sm:$0xff] %v1493
      %1622 = vst [vmem:[%s172 + $0x2b0] sm:$0xff] %v1494
      %1623 = vst [vmem:[%s172 + $0x2b8] sm:$0xff] %v1495
      %1624 = vst [vmem:[%s172 + $0x2c0] sm:$0xff] %v1496
      %1625 = vst [vmem:[%s172 + $0x2c8] sm:$0xff] %v1497
      %1626 = vst [vmem:[%s172 + $0x2d0] sm:$0xff] %v1498
      %1627 = vst [vmem:[%s172 + $0x2d8] sm:$0xff] %v1499
      %1628 = vst [vmem:[%s172 + $0x2e0] sm:$0xff] %v1500
      %1629 = vst [vmem:[%s172 + $0x2e8] sm:$0xff] %v1501
      %1630 = vst [vmem:[%s172 + $0x2f0] sm:$0xff] %v1502
      %1631 = vst [vmem:[%s172 + $0x2f8] sm:$0xff] %v1503
      %1632 = vst [vmem:[%s172 + $0x300] sm:$0xff] %v1504
      %1633 = vst [vmem:[%s172 + $0x308] sm:$0xff] %v1505
      %1634 = vst [vmem:[%s172 + $0x310] sm:$0xff] %v1506
      %1635 = vst [vmem:[%s172 + $0x318] sm:$0xff] %v1507
      %1636 = vst [vmem:[%s172 + $0x320] sm:$0xff] %v1508
      %1637 = vst [vmem:[%s172 + $0x328] sm:$0xff] %v1509
      %1638 = vst [vmem:[%s172 + $0x330] sm:$0xff] %v1510
      %1639 = vst [vmem:[%s172 + $0x338] sm:$0xff] %v1511
      %1640 = vst [vmem:[%s172 + $0x340] sm:$0xff] %v1512
      %1641 = vst [vmem:[%s172 + $0x348] sm:$0xff] %v1513
      %1642 = vst [vmem:[%s172 + $0x350] sm:$0xff] %v1514
      %1643 = vst [vmem:[%s172 + $0x358] sm:$0xff] %v1515
      %1644 = vst [vmem:[%s172 + $0x360] sm:$0xff] %v1516
      %1645 = vst [vmem:[%s172 + $0x368] sm:$0xff] %v1517
      %1646 = vst [vmem:[%s172 + $0x370] sm:$0xff] %v1518
      %1647 = vst [vmem:[%s172 + $0x378] sm:$0xff] %v1519
      %1648 = vst [vmem:[%s172 + $0x380] sm:$0xff] %v1520
      %1649 = vst [vmem:[%s172 + $0x388] sm:$0xff] %v1521
      %1650 = vst [vmem:[%s172 + $0x390] sm:$0xff] %v1522
      %1651 = vst [vmem:[%s172 + $0x398] sm:$0xff] %v1523
      %1652 = vst [vmem:[%s172 + $0x3a0] sm:$0xff] %v1524
      %1653 = vst [vmem:[%s172 + $0x3a8] sm:$0xff] %v1525
      %1654 = vst [vmem:[%s172 + $0x3b0] sm:$0xff] %v1526
      %1655 = vst [vmem:[%s172 + $0x3b8] sm:$0xff] %v1527
      %1656 = vst [vmem:[%s172 + $0x3c0] sm:$0xff] %v1528
      %1657 = vst [vmem:[%s172 + $0x3c8] sm:$0xff] %v1529
      %1658 = vst [vmem:[%s172 + $0x3d0] sm:$0xff] %v1530
      %1659 = vst [vmem:[%s172 + $0x3d8] sm:$0xff] %v1531
      %1660 = vst [vmem:[%s172 + $0x3e0] sm:$0xff] %v1532
      %1661 = vst [vmem:[%s172 + $0x3e8] sm:$0xff] %v1533
      %1662 = vst [vmem:[%s172 + $0x3f0] sm:$0xff] %v1534
      %1663 = vst [vmem:[%s172 + $0x3f8] sm:$0xff] %v1535
      %s1664 = smul.u32 128, %s14
      %p1665 = scmp.lt.s32.totalorder %s1664, 511
      %s1666 = scalar_select %p1665, %s1664, 511
      %s1667 = smul.addr %s1666, 8
      %s1668 = scalar_lea.vmem %s3, %s1667
      // Predicated region
      $region33: #{rollout_encoder_forward.3} parent=31 // pred_check
        %p1669 = pneg %p100
      $region34: #{rollout_encoder_forward.3} parent=31 // pred_check_branch
        %1671 = sbr.rel (%p1669) target = $region36
      $region35: #{rollout_encoder_forward.3} parent=31 // pred_region
        %s1672 = smul.u32 128, %s14
      $region36: #{rollout_encoder_forward.3} parent=31 // pred_fallthru
        _
    $region32: #{rollout_encoder_forward.3} parent=5 // pred_fallthru
      _
    %p1673 = scmp.le.s32.totalorder 2, %s9
    // Predicated region
    $region37: #{rollout_encoder_forward.3} parent=5 // pred_check
      %p1674 = pneg %p1673
    $region38: #{rollout_encoder_forward.3} parent=5 // pred_check_branch
      %1676 = sbr.rel (%p1674) target = $region40
    $region39: #{rollout_encoder_forward.3} parent=5 // pred_region
      %s1677 = ssub.s32 %s9, 2
      // Predicated region
      $region41: #{rollout_encoder_forward.3} parent=39 // pred_check
        %p1678 = pneg %p106
      $region42: #{rollout_encoder_forward.3} parent=39 // pred_check_branch
        %1680 = sbr.rel (%p1678) target = $region44
      $region43: #{rollout_encoder_forward.3} parent=39 // pred_region
        %s1681 = smul.u32 128, %s15
        %p1682 = scmp.lt.s32.totalorder %s1681, 511
        %s1683 = scalar_select %p1682, %s1681, 511
        %s1684 = smul.addr %s1683, 8
        %s1685 = scalar_lea.vmem %s3, %s1684
      $region44: #{rollout_encoder_forward.3} parent=39 // pred_fallthru
        _
    $region40: #{rollout_encoder_forward.3} parent=5 // pred_fallthru
      _
  $region6: #{rollout_encoder_forward.3} parent=0 // loop_footer
    %s13 = sadd.s32 1, %s9
  $region7: #{rollout_encoder_forward.3} parent=0 // loop_footer_branch
    %8 = sbr.rel target = $region3
  $region8: #{rollout_encoder_forward.3} parent=0 // loop_exit
    _

// kernel: rollout_encoder_forward.4
$region0: #{rollout_encoder_forward.4}
  #allocation0 [shape = 'u32[]', space=smem, size = 0x4, offset = 0x4, fixed_abs, tag = 'smem constant byte address 0x4 - core index']
  #allocation1 [shape = 'u32[144,128]{1,0:T(1,128)}', space=vmem, size = 0x12000, scoped, tag = 'internal scratch']
  %s0 = inlined_call_operand.vmem [shape: f32[576,144], index: 0, kind: input, shape index: {}]
  %s1 = inlined_call_operand.vmem [shape: f32[144,128], index: 1, kind: input, shape index: {}]
  %s2 = inlined_call_operand.vmem [shape: f32[1,128], index: 2, kind: input, shape index: {}]
  %s3 = inlined_call_operand.vmem [shape: f32[576,128], index: 3, kind: output, shape index: {}]
  %s4 = sld [smem:[#allocation0]]
  $region22: #{rollout_encoder_forward.4} parent=0
    _
  %s6 = ssub.s32 1, %s4
  %s7 = scalar_select 0, %s6, %s4
  // Predicated region
  $region2: #{rollout_encoder_forward.4} parent=0 // pred_check
    _
  $region3: #{rollout_encoder_forward.4} parent=0 // pred_check_branch
    %9 = sbr.rel (0) target = $region5
  $region4: #{rollout_encoder_forward.4} parent=0 // pred_region
    _
  $region5: #{rollout_encoder_forward.4} parent=0 // pred_fallthru
    _
  // Predicated region
  $region6: #{rollout_encoder_forward.4} parent=0 // pred_check
    _
  $region7: #{rollout_encoder_forward.4} parent=0 // pred_check_branch
    %11 = sbr.rel (0) target = $region9
  $region8: #{rollout_encoder_forward.4} parent=0 // pred_region
    _
  $region9: #{rollout_encoder_forward.4} parent=0 // pred_fallthru
    _
  // Predicated region
  $region10: #{rollout_encoder_forward.4} parent=0 // pred_check
    _
  $region11: #{rollout_encoder_forward.4} parent=0 // pred_check_branch
    %13 = sbr.rel (0) target = $region13
  $region12: #{rollout_encoder_forward.4} parent=0 // pred_region
    _
  $region13: #{rollout_encoder_forward.4} parent=0 // pred_fallthru
    _
  %v14 = vld [vmem:[%s0] sm:$0xff]
  %v15 = vld [vmem:[%s0 + $0x8] sm:$0xff]
  %v16 = vld [vmem:[%s0 + $0x10] sm:$0xff]
  %v17 = vld [vmem:[%s0 + $0x18] sm:$0xff]
  %v18 = vld [vmem:[%s0 + $0x20] sm:$0xff]
  %v19 = vld [vmem:[%s0 + $0x28] sm:$0xff]
  %v20 = vld [vmem:[%s0 + $0x30] sm:$0xff]
  %v21 = vld [vmem:[%s0 + $0x38] sm:$0xff]
  %v22 = vld [vmem:[%s0 + $0x40] sm:$0xff]
  %v23 = vld [vmem:[%s0 + $0x48] sm:$0xff]
  %v24 = vld [vmem:[%s0 + $0x50] sm:$0xff]
  %v25 = vld [vmem:[%s0 + $0x58] sm:$0xff]
  %v26 = vld [vmem:[%s0 + $0x60] sm:$0xff]
  %v27 = vld [vmem:[%s0 + $0x68] sm:$0xff]
  %v28 = vld [vmem:[%s0 + $0x70] sm:$0xff]
  %v29 = vld [vmem:[%s0 + $0x78] sm:$0xff]
  %v30 = vld [vmem:[%s0 + $0x80] sm:$0xff]
  %v31 = vld [vmem:[%s0 + $0x88] sm:$0xff]
  %v32 = vld [vmem:[%s0 + $0x90] sm:$0xff]
  %v33 = vld [vmem:[%s0 + $0x98] sm:$0xff]
  %v34 = vld [vmem:[%s0 + $0xa0] sm:$0xff]
  %v35 = vld [vmem:[%s0 + $0xa8] sm:$0xff]
  %v36 = vld [vmem:[%s0 + $0xb0] sm:$0xff]
  %v37 = vld [vmem:[%s0 + $0xb8] sm:$0xff]
  %v38 = vld [vmem:[%s0 + $0xc0] sm:$0xff]
  %v39 = vld [vmem:[%s0 + $0xc8] sm:$0xff]
  %v40 = vld [vmem:[%s0 + $0xd0] sm:$0xff]
  %v41 = vld [vmem:[%s0 + $0xd8] sm:$0xff]
  %v42 = vld [vmem:[%s0 + $0xe0] sm:$0xff]
  %v43 = vld [vmem:[%s0 + $0xe8] sm:$0xff]
  %v44 = vld [vmem:[%s0 + $0xf0] sm:$0xff]
  %v45 = vld [vmem:[%s0 + $0xf8] sm:$0xff]
  %v46 = vld [vmem:[%s0 + $0x100] sm:$0xff]
  %v47 = vld [vmem:[%s0 + $0x108] sm:$0xff]
  %v48 = vld [vmem:[%s0 + $0x110] sm:$0xff]
  %v49 = vld [vmem:[%s0 + $0x118] sm:$0xff]
  %v50 = vld [vmem:[%s0 + $0x120] sm:$0xff]
  %v51 = vld [vmem:[%s0 + $0x128] sm:$0xff]
  %v52 = vld [vmem:[%s0 + $0x130] sm:$0xff]
  %v53 = vld [vmem:[%s0 + $0x138] sm:$0xff]
  %v54 = vld [vmem:[%s0 + $0x140] sm:$0xff]
  %v55 = vld [vmem:[%s0 + $0x148] sm:$0xff]
  %v56 = vld [vmem:[%s0 + $0x150] sm:$0xff]
  %v57 = vld [vmem:[%s0 + $0x158] sm:$0xff]
  %v58 = vld [vmem:[%s0 + $0x160] sm:$0xff]
  %v59 = vld [vmem:[%s0 + $0x168] sm:$0xff]
  %v60 = vld [vmem:[%s0 + $0x170] sm:$0xff]
  %v61 = vld [vmem:[%s0 + $0x178] sm:$0xff]
  %v62 = vld [vmem:[%s0 + $0x180] sm:$0xff]
  %v63 = vld [vmem:[%s0 + $0x188] sm:$0xff]
  %v64 = vld [vmem:[%s0 + $0x190] sm:$0xff]
  %v65 = vld [vmem:[%s0 + $0x198] sm:$0xff]
  %v66 = vld [vmem:[%s0 + $0x1a0] sm:$0xff]
  %v67 = vld [vmem:[%s0 + $0x1a8] sm:$0xff]
  %v68 = vld [vmem:[%s0 + $0x1b0] sm:$0xff]
  %v69 = vld [vmem:[%s0 + $0x1b8] sm:$0xff]
  %v70 = vld [vmem:[%s0 + $0x1c0] sm:$0xff]
  %v71 = vld [vmem:[%s0 + $0x1c8] sm:$0xff]
  %v72 = vld [vmem:[%s0 + $0x1d0] sm:$0xff]
  %v73 = vld [vmem:[%s0 + $0x1d8] sm:$0xff]
  %v74 = vld [vmem:[%s0 + $0x1e0] sm:$0xff]
  %v75 = vld [vmem:[%s0 + $0x1e8] sm:$0xff]
  %v76 = vld [vmem:[%s0 + $0x1f0] sm:$0xff]
  %v77 = vld [vmem:[%s0 + $0x1f8] sm:$0xff]
  %v78 = vld [vmem:[%s0 + $0x200] sm:$0xff]
  %v79 = vld [vmem:[%s0 + $0x208] sm:$0xff]
  %v80 = vld [vmem:[%s0 + $0x210] sm:$0xff]
  %v81 = vld [vmem:[%s0 + $0x218] sm:$0xff]
  %v82 = vld [vmem:[%s0 + $0x220] sm:$0xff]
  %v83 = vld [vmem:[%s0 + $0x228] sm:$0xff]
  %v84 = vld [vmem:[%s0 + $0x230] sm:$0xff]
  %v85 = vld [vmem:[%s0 + $0x238] sm:$0xff]
  %v86 = vld [vmem:[%s0 + $0x240] sm:$0xff]
  %v87 = vld [vmem:[%s0 + $0x248] sm:$0xff]
  %v88 = vld [vmem:[%s0 + $0x250] sm:$0xff]
  %v89 = vld [vmem:[%s0 + $0x258] sm:$0xff]
  %v90 = vld [vmem:[%s0 + $0x260] sm:$0xff]
  %v91 = vld [vmem:[%s0 + $0x268] sm:$0xff]
  %v92 = vld [vmem:[%s0 + $0x270] sm:$0xff]
  %v93 = vld [vmem:[%s0 + $0x278] sm:$0xff]
  %v94 = vld [vmem:[%s0 + $0x280] sm:$0xff]
  %v95 = vld [vmem:[%s0 + $0x288] sm:$0xff]
  %v96 = vld [vmem:[%s0 + $0x290] sm:$0xff]
  %v97 = vld [vmem:[%s0 + $0x298] sm:$0xff]
  %v98 = vld [vmem:[%s0 + $0x2a0] sm:$0xff]
  %v99 = vld [vmem:[%s0 + $0x2a8] sm:$0xff]
  %v100 = vld [vmem:[%s0 + $0x2b0] sm:$0xff]
  %v101 = vld [vmem:[%s0 + $0x2b8] sm:$0xff]
  %v102 = vld [vmem:[%s0 + $0x2c0] sm:$0xff]
  %v103 = vld [vmem:[%s0 + $0x2c8] sm:$0xff]
  %v104 = vld [vmem:[%s0 + $0x2d0] sm:$0xff]
  %v105 = vld [vmem:[%s0 + $0x2d8] sm:$0xff]
  %v106 = vld [vmem:[%s0 + $0x2e0] sm:$0xff]
  %v107 = vld [vmem:[%s0 + $0x2e8] sm:$0xff]
  %v108 = vld [vmem:[%s0 + $0x2f0] sm:$0xff]
  %v109 = vld [vmem:[%s0 + $0x2f8] sm:$0xff]
  %v110 = vld [vmem:[%s0 + $0x300] sm:$0xff]
  %v111 = vld [vmem:[%s0 + $0x308] sm:$0xff]
  %v112 = vld [vmem:[%s0 + $0x310] sm:$0xff]
  %v113 = vld [vmem:[%s0 + $0x318] sm:$0xff]
  %v114 = vld [vmem:[%s0 + $0x320] sm:$0xff]
  %v115 = vld [vmem:[%s0 + $0x328] sm:$0xff]
  %v116 = vld [vmem:[%s0 + $0x330] sm:$0xff]
  %v117 = vld [vmem:[%s0 + $0x338] sm:$0xff]
  %v118 = vld [vmem:[%s0 + $0x340] sm:$0xff]
  %v119 = vld [vmem:[%s0 + $0x348] sm:$0xff]
  %v120 = vld [vmem:[%s0 + $0x350] sm:$0xff]
  %v121 = vld [vmem:[%s0 + $0x358] sm:$0xff]
  %v122 = vld [vmem:[%s0 + $0x360] sm:$0xff]
  %v123 = vld [vmem:[%s0 + $0x368] sm:$0xff]
  %v124 = vld [vmem:[%s0 + $0x370] sm:$0xff]
  %v125 = vld [vmem:[%s0 + $0x378] sm:$0xff]
  %v126 = vld [vmem:[%s0 + $0x380] sm:$0xff]
  %v127 = vld [vmem:[%s0 + $0x388] sm:$0xff]
  %v128 = vld [vmem:[%s0 + $0x390] sm:$0xff]
  %v129 = vld [vmem:[%s0 + $0x398] sm:$0xff]
  %v130 = vld [vmem:[%s0 + $0x3a0] sm:$0xff]
  %v131 = vld [vmem:[%s0 + $0x3a8] sm:$0xff]
  %v132 = vld [vmem:[%s0 + $0x3b0] sm:$0xff]
  %v133 = vld [vmem:[%s0 + $0x3b8] sm:$0xff]
  %v134 = vld [vmem:[%s0 + $0x3c0] sm:$0xff]
  %v135 = vld [vmem:[%s0 + $0x3c8] sm:$0xff]
  %v136 = vld [vmem:[%s0 + $0x3d0] sm:$0xff]
  %v137 = vld [vmem:[%s0 + $0x3d8] sm:$0xff]
  %v138 = vld [vmem:[%s0 + $0x3e0] sm:$0xff]
  %v139 = vld [vmem:[%s0 + $0x3e8] sm:$0xff]
  %v140 = vld [vmem:[%s0 + $0x3f0] sm:$0xff]
  %v141 = vld [vmem:[%s0 + $0x3f8] sm:$0xff]
  %v142 = vld [vmem:[%s0 + $0x400] sm:$0xff]
  %v143 = vld [vmem:[%s0 + $0x408] sm:$0xff]
  %v144 = vld [vmem:[%s0 + $0x410] sm:$0xff]
  %v145 = vld [vmem:[%s0 + $0x418] sm:$0xff]
  %v146 = vld [vmem:[%s0 + $0x420] sm:$0xff]
  %v147 = vld [vmem:[%s0 + $0x428] sm:$0xff]
  %v148 = vld [vmem:[%s0 + $0x430] sm:$0xff]
  %v149 = vld [vmem:[%s0 + $0x438] sm:$0xff]
  %v150 = vld [vmem:[%s0 + $0x440] sm:$0xff]
  %v151 = vld [vmem:[%s0 + $0x448] sm:$0xff]
  %v152 = vld [vmem:[%s0 + $0x450] sm:$0xff]
  %v153 = vld [vmem:[%s0 + $0x458] sm:$0xff]
  %v154 = vld [vmem:[%s0 + $0x460] sm:$0xff]
  %v155 = vld [vmem:[%s0 + $0x468] sm:$0xff]
  %v156 = vld [vmem:[%s0 + $0x470] sm:$0xff]
  %v157 = vld [vmem:[%s0 + $0x478] sm:$0xff]
  %v158 = vld [vmem:[%s1] sm:$0xff]
  %v159 = vld [vmem:[%s1 + $0x8] sm:$0xff]
  %v160 = vld [vmem:[%s1 + $0x10] sm:$0xff]
  %v161 = vld [vmem:[%s1 + $0x18] sm:$0xff]
  %v162 = vld [vmem:[%s1 + $0x20] sm:$0xff]
  %v163 = vld [vmem:[%s1 + $0x28] sm:$0xff]
  %v164 = vld [vmem:[%s1 + $0x30] sm:$0xff]
  %v165 = vld [vmem:[%s1 + $0x38] sm:$0xff]
  %v166 = vld [vmem:[%s1 + $0x40] sm:$0xff]
  %v167 = vld [vmem:[%s1 + $0x48] sm:$0xff]
  %v168 = vld [vmem:[%s1 + $0x50] sm:$0xff]
  %v169 = vld [vmem:[%s1 + $0x58] sm:$0xff]
  %v170 = vld [vmem:[%s1 + $0x60] sm:$0xff]
  %v171 = vld [vmem:[%s1 + $0x68] sm:$0xff]
  %v172 = vld [vmem:[%s1 + $0x70] sm:$0xff]
  %v173 = vld [vmem:[%s1 + $0x78] sm:$0xff]
  %v174 = vld [vmem:[%s1 + $0x80] sm:$0xff]
  %v175 = vld [vmem:[%s1 + $0x88] sm:$0xff]
  %v176 = vld [vmem:[%s2] sm:$0x1]
  %v178 = vlaneseq
  %v179 = vshrl.u32 %v178, 7
  %v180 = vsub.s32 0, %v179
  %v181 = vrot.slane %v176, %v180
  %vm183 = vcmask 130048
  %v185 = vsel %vm183, %v15, 0
  %v188 = vsel %vm183, %v17, 0
  %v191 = vsel %vm183, %v19, 0
  %v194 = vsel %vm183, %v21, 0
  %v197 = vsel %vm183, %v23, 0
  %v200 = vsel %vm183, %v25, 0
  %v203 = vsel %vm183, %v27, 0
  %v206 = vsel %vm183, %v29, 0
  %v209 = vsel %vm183, %v31, 0
  %v212 = vsel %vm183, %v33, 0
  %v215 = vsel %vm183, %v35, 0
  %v218 = vsel %vm183, %v37, 0
  %v221 = vsel %vm183, %v39, 0
  %v224 = vsel %vm183, %v41, 0
  %v227 = vsel %vm183, %v43, 0
  %v230 = vsel %vm183, %v45, 0
  %v233 = vsel %vm183, %v47, 0
  %v236 = vsel %vm183, %v49, 0
  %v239 = vsel %vm183, %v51, 0
  %v242 = vsel %vm183, %v53, 0
  %v245 = vsel %vm183, %v55, 0
  %v248 = vsel %vm183, %v57, 0
  %v251 = vsel %vm183, %v59, 0
  %v254 = vsel %vm183, %v61, 0
  %v257 = vsel %vm183, %v63, 0
  %v260 = vsel %vm183, %v65, 0
  %v263 = vsel %vm183, %v67, 0
  %v266 = vsel %vm183, %v69, 0
  %v269 = vsel %vm183, %v71, 0
  %v272 = vsel %vm183, %v73, 0
  %v275 = vsel %vm183, %v75, 0
  %v278 = vsel %vm183, %v77, 0
  %v281 = vsel %vm183, %v79, 0
  %v284 = vsel %vm183, %v81, 0
  %v287 = vsel %vm183, %v83, 0
  %v290 = vsel %vm183, %v85, 0
  %v293 = vsel %vm183, %v87, 0
  %v296 = vsel %vm183, %v89, 0
  %v299 = vsel %vm183, %v91, 0
  %v302 = vsel %vm183, %v93, 0
  %v305 = vsel %vm183, %v95, 0
  %v308 = vsel %vm183, %v97, 0
  %v311 = vsel %vm183, %v99, 0
  %v314 = vsel %vm183, %v101, 0
  %v317 = vsel %vm183, %v103, 0
  %v320 = vsel %vm183, %v105, 0
  %v323 = vsel %vm183, %v107, 0
  %v326 = vsel %vm183, %v109, 0
  %v329 = vsel %vm183, %v111, 0
  %v332 = vsel %vm183, %v113, 0
  %v335 = vsel %vm183, %v115, 0
  %v338 = vsel %vm183, %v117, 0
  %v341 = vsel %vm183, %v119, 0
  %v344 = vsel %vm183, %v121, 0
  %v347 = vsel %vm183, %v123, 0
  %v350 = vsel %vm183, %v125, 0
  %v353 = vsel %vm183, %v127, 0
  %v356 = vsel %vm183, %v129, 0
  %v359 = vsel %vm183, %v131, 0
  %v362 = vsel %vm183, %v133, 0
  %v365 = vsel %vm183, %v135, 0
  %v368 = vsel %vm183, %v137, 0
  %v371 = vsel %vm183, %v139, 0
  %v374 = vsel %vm183, %v141, 0
  %v377 = vsel %vm183, %v143, 0
  %v380 = vsel %vm183, %v145, 0
  %v383 = vsel %vm183, %v147, 0
  %v386 = vsel %vm183, %v149, 0
  %v389 = vsel %vm183, %v151, 0
  %v392 = vsel %vm183, %v153, 0
  %v395 = vsel %vm183, %v155, 0
  %v398 = vsel %vm183, %v157, 0
  %400 = vmatprep.subr.mxu0 0.0
  %401 = vmatpush1.msra.mxu0 %v158
  %402 = vmatprep.subr.mxu0 0.0
  %403 = vmatpush1.msra.mxu0 %v159
  %404 = vmatprep.subr.mxu0 0.0
  %405 = vmatpush1.msra.mxu0 %v160
  %406 = vmatprep.subr.mxu0 0.0
  %407 = vmatpush1.msra.mxu0 %v161
  %408 = vmatprep.subr.mxu0 0.0
  %409 = vmatpush1.msra.mxu0 %v162
  %410 = vmatprep.subr.mxu0 0.0
  %411 = vmatpush1.msra.mxu0 %v163
  %412 = vmatprep.subr.mxu0 0.0
  %413 = vmatpush1.msra.mxu0 %v164
  %414 = vmatprep.subr.mxu0 0.0
  %415 = vmatpush1.msra.mxu0 %v165
  %416 = vmatprep.subr.mxu0 0.0
  %417 = vmatpush1.msra.mxu0 %v166
  %418 = vmatprep.subr.mxu0 0.0
  %419 = vmatpush1.msra.mxu0 %v167
  %420 = vmatprep.subr.mxu0 0.0
  %421 = vmatpush1.msra.mxu0 %v168
  %422 = vmatprep.subr.mxu0 0.0
  %423 = vmatpush1.msra.mxu0 %v169
  %424 = vmatprep.subr.mxu0 0.0
  %425 = vmatpush1.msra.mxu0 %v170
  %426 = vmatprep.subr.mxu0 0.0
  %427 = vmatpush1.msra.mxu0 %v171
  %428 = vmatprep.subr.mxu0 0.0
  %429 = vmatpush1.msra.mxu0 %v172
  %430 = vmatprep.subr.mxu0 0.0
  %431 = vmatpush1.msra.mxu0 %v173
  %432 = vmatprep.subr.mxu0 0.0
  %433 = vmatpush1.msra.mxu0 %v174
  %434 = vmatprep.subr.mxu0 0.0
  %435 = vmatpush1.msra.mxu0 %v175
  %436 = vmatprep.subr.mxu0 0.0
  %437 = vmatpush1.msra.mxu0 0.0
  %438 = vmatprep.subr.mxu0 0.0
  %439 = vmatpush1.msra.mxu0 0.0
  %440 = vmatprep.subr.mxu0 0.0
  %441 = vmatpush1.msra.mxu0 0.0
  %442 = vmatprep.subr.mxu0 0.0
  %443 = vmatpush1.msra.mxu0 0.0
  %444 = vmatprep.subr.mxu0 0.0
  %445 = vmatpush1.msra.mxu0 0.0
  %446 = vmatprep.subr.mxu0 0.0
  %447 = vmatpush1.msra.mxu0 0.0
  %448 = vmatprep.subr.mxu0 0.0
  %449 = vmatpush1.msra.mxu0 0.0
  %450 = vmatprep.subr.mxu0 0.0
  %451 = vmatpush1.msra.mxu0 0.0
  %452 = vmatprep.subr.mxu0 0.0
  %453 = vmatpush1.msra.mxu0 0.0
  %454 = vmatprep.subr.mxu0 0.0
  %455 = vmatpush1.msra.mxu0 0.0
  %456 = vmatprep.subr.mxu0 0.0
  %457 = vmatpush1.msra.mxu0 0.0
  %458 = vmatprep.subr.mxu0 0.0
  %459 = vmatpush1.msra.mxu0 0.0
  %460 = vmatprep.subr.mxu0 0.0
  %461 = vmatpush1.msra.mxu0 0.0
  %462 = vmatprep.subr.mxu0 0.0
  %463 = vmatpush1.msra.mxu0 0.0
  %464 = vmatprep.mubr.f32.mxu0 %v185
  %465 = vmatmul.mubr.f32.gmra.mrb[0].mxu0 %v14
  %v466 = vpop.f32.mrb[0].mxu0
  %v467 = vadd.f32 %v181, %v466
  %v468 = vpop.f32.mrb[0].mxu0
  %469 = vmatprep.mubr.f32.mxu0 %v188
  %470 = vmatmul.mubr.f32.gmra.mrb[0].mxu0 %v16
  %v471 = vpop.f32.mrb[0].mxu0
  %v472 = vadd.f32 %v181, %v471
  %v473 = vpop.f32.mrb[0].mxu0
  %474 = vmatprep.mubr.f32.mxu0 %v191
  %475 = vmatmul.mubr.f32.gmra.mrb[0].mxu0 %v18
  %v476 = vpop.f32.mrb[0].mxu0
  %v477 = vadd.f32 %v181, %v476
  %v478 = vpop.f32.mrb[0].mxu0
  %479 = vmatprep.mubr.f32.mxu0 %v194
  %480 = vmatmul.mubr.f32.gmra.mrb[0].mxu0 %v20
  %v481 = vpop.f32.mrb[0].mxu0
  %v482 = vadd.f32 %v181, %v481
  %v483 = vpop.f32.mrb[0].mxu0
  %484 = vmatprep.mubr.f32.mxu0 %v197
  %485 = vmatmul.mubr.f32.gmra.mrb[0].mxu0 %v22
  %v486 = vpop.f32.mrb[0].mxu0
  %v487 = vadd.f32 %v181, %v486
  %v488 = vpop.f32.mrb[0].mxu0
  %489 = vmatprep.mubr.f32.mxu0 %v200
  %490 = vmatmul.mubr.f32.gmra.mrb[0].mxu0 %v24
  %v491 = vpop.f32.mrb[0].mxu0
  %v492 = vadd.f32 %v181, %v491
  %v493 = vpop.f32.mrb[0].mxu0
  %494 = vmatprep.mubr.f32.mxu0 %v203
  %495 = vmatmul.mubr.f32.gmra.mrb[0].mxu0 %v26
  %v496 = vpop.f32.mrb[0].mxu0
  %v497 = vadd.f32 %v181, %v496
  %v498 = vpop.f32.mrb[0].mxu0
  %499 = vmatprep.mubr.f32.mxu0 %v206
  %500 = vmatmul.mubr.f32.gmra.mrb[0].mxu0 %v28
  %v501 = vpop.f32.mrb[0].mxu0
  %v502 = vadd.f32 %v181, %v501
  %v503 = vpop.f32.mrb[0].mxu0
  %504 = vmatprep.mubr.f32.mxu0 %v209
  %505 = vmatmul.mubr.f32.gmra.mrb[0].mxu0 %v30
  %v506 = vpop.f32.mrb[0].mxu0
  %v507 = vadd.f32 %v181, %v506
  %v508 = vpop.f32.mrb[0].mxu0
  %509 = vmatprep.mubr.f32.mxu0 %v212
  %510 = vmatmul.mubr.f32.gmra.mrb[0].mxu0 %v32
  %v511 = vpop.f32.mrb[0].mxu0
  %v512 = vadd.f32 %v181, %v511
  %v513 = vpop.f32.mrb[0].mxu0
  %514 = vmatprep.mubr.f32.mxu0 %v215
  %515 = vmatmul.mubr.f32.gmra.mrb[0].mxu0 %v34
  %v516 = vpop.f32.mrb[0].mxu0
  %v517 = vadd.f32 %v181, %v516
  %v518 = vpop.f32.mrb[0].mxu0
  %519 = vmatprep.mubr.f32.mxu0 %v218
  %520 = vmatmul.mubr.f32.gmra.mrb[0].mxu0 %v36
  %v521 = vpop.f32.mrb[0].mxu0
  %v522 = vadd.f32 %v181, %v521
  %v523 = vpop.f32.mrb[0].mxu0
  %524 = vmatprep.mubr.f32.mxu0 %v221
  %525 = vmatmul.mubr.f32.gmra.mrb[0].mxu0 %v38
  %v526 = vpop.f32.mrb[0].mxu0
  %v527 = vadd.f32 %v181, %v526
  %v528 = vpop.f32.mrb[0].mxu0
  %529 = vmatprep.mubr.f32.mxu0 %v224
  %530 = vmatmul.mubr.f32.gmra.mrb[0].mxu0 %v40
  %v531 = vpop.f32.mrb[0].mxu0
  %v532 = vadd.f32 %v181, %v531
  %v533 = vpop.f32.mrb[0].mxu0
  %534 = vmatprep.mubr.f32.mxu0 %v227
  %535 = vmatmul.mubr.f32.gmra.mrb[0].mxu0 %v42
  %v536 = vpop.f32.mrb[0].mxu0
  %v537 = vadd.f32 %v181, %v536
  %v538 = vpop.f32.mrb[0].mxu0
  %539 = vmatprep.mubr.f32.mxu0 %v230
  %540 = vmatmul.mubr.f32.gmra.mrb[0].mxu0 %v44
  %v541 = vpop.f32.mrb[0].mxu0
  %v542 = vadd.f32 %v181, %v541
  %v543 = vpop.f32.mrb[0].mxu0
  %544 = vmatprep.mubr.f32.mxu0 %v233
  %545 = vmatmul.mubr.f32.gmra.mrb[0].mxu0 %v46
  %v546 = vpop.f32.mrb[0].mxu0
  %v547 = vadd.f32 %v181, %v546
  %v548 = vpop.f32.mrb[0].mxu0
  %549 = vmatprep.mubr.f32.mxu0 %v236
  %550 = vmatmul.mubr.f32.gmra.mrb[0].mxu0 %v48
  %v551 = vpop.f32.mrb[0].mxu0
  %v552 = vadd.f32 %v181, %v551
  %v553 = vpop.f32.mrb[0].mxu0
  %554 = vmatprep.mubr.f32.mxu0 %v239
  %555 = vmatmul.mubr.f32.gmra.mrb[0].mxu0 %v50
  %v556 = vpop.f32.mrb[0].mxu0
  %v557 = vadd.f32 %v181, %v556
  %v558 = vpop.f32.mrb[0].mxu0
  %559 = vmatprep.mubr.f32.mxu0 %v242
  %560 = vmatmul.mubr.f32.gmra.mrb[0].mxu0 %v52
  %v561 = vpop.f32.mrb[0].mxu0
  %v562 = vadd.f32 %v181, %v561
  %v563 = vpop.f32.mrb[0].mxu0
  %564 = vmatprep.mubr.f32.mxu0 %v245
  %565 = vmatmul.mubr.f32.gmra.mrb[0].mxu0 %v54
  %v566 = vpop.f32.mrb[0].mxu0
  %v567 = vadd.f32 %v181, %v566
  %v568 = vpop.f32.mrb[0].mxu0
  %569 = vmatprep.mubr.f32.mxu0 %v248
  %570 = vmatmul.mubr.f32.gmra.mrb[0].mxu0 %v56
  %v571 = vpop.f32.mrb[0].mxu0
  %v572 = vadd.f32 %v181, %v571
  %v573 = vpop.f32.mrb[0].mxu0
  %574 = vmatprep.mubr.f32.mxu0 %v251
  %575 = vmatmul.mubr.f32.gmra.mrb[0].mxu0 %v58
  %v576 = vpop.f32.mrb[0].mxu0
  %v577 = vadd.f32 %v181, %v576
  %v578 = vpop.f32.mrb[0].mxu0
  %579 = vmatprep.mubr.f32.mxu0 %v254
  %580 = vmatmul.mubr.f32.gmra.mrb[0].mxu0 %v60
  %v581 = vpop.f32.mrb[0].mxu0
  %v582 = vadd.f32 %v181, %v581
  %v583 = vpop.f32.mrb[0].mxu0
  %584 = vmatprep.mubr.f32.mxu0 %v257
  %585 = vmatmul.mubr.f32.gmra.mrb[0].mxu0 %v62
  %v586 = vpop.f32.mrb[0].mxu0
  %v587 = vadd.f32 %v181, %v586
  %v588 = vpop.f32.mrb[0].mxu0
  %589 = vmatprep.mubr.f32.mxu0 %v260
  %590 = vmatmul.mubr.f32.gmra.mrb[0].mxu0 %v64
  %v591 = vpop.f32.mrb[0].mxu0
  %v592 = vadd.f32 %v181, %v591
  %v593 = vpop.f32.mrb[0].mxu0
  %594 = vmatprep.mubr.f32.mxu0 %v263
  %595 = vmatmul.mubr.f32.gmra.mrb[0].mxu0 %v66
  %v596 = vpop.f32.mrb[0].mxu0
  %v597 = vadd.f32 %v181, %v596
  %v598 = vpop.f32.mrb[0].mxu0
  %599 = vmatprep.mubr.f32.mxu0 %v266
  %600 = vmatmul.mubr.f32.gmra.mrb[0].mxu0 %v68
  %v601 = vpop.f32.mrb[0].mxu0
  %v602 = vadd.f32 %v181, %v601
  %v603 = vpop.f32.mrb[0].mxu0
  %604 = vmatprep.mubr.f32.mxu0 %v269
  %605 = vmatmul.mubr.f32.gmra.mrb[0].mxu0 %v70
  %v606 = vpop.f32.mrb[0].mxu0
  %v607 = vadd.f32 %v181, %v606
  %v608 = vpop.f32.mrb[0].mxu0
  %609 = vmatprep.mubr.f32.mxu0 %v272
  %610 = vmatmul.mubr.f32.gmra.mrb[0].mxu0 %v72
  %v611 = vpop.f32.mrb[0].mxu0
  %v612 = vadd.f32 %v181, %v611
  %v613 = vpop.f32.mrb[0].mxu0
  %614 = vmatprep.mubr.f32.mxu0 %v275
  %615 = vmatmul.mubr.f32.gmra.mrb[0].mxu0 %v74
  %v616 = vpop.f32.mrb[0].mxu0
  %v617 = vadd.f32 %v181, %v616
  %v618 = vpop.f32.mrb[0].mxu0
  %619 = vmatprep.mubr.f32.mxu0 %v278
  %620 = vmatmul.mubr.f32.gmra.mrb[0].mxu0 %v76
  %v621 = vpop.f32.mrb[0].mxu0
  %v622 = vadd.f32 %v181, %v621
  %v623 = vpop.f32.mrb[0].mxu0
  %624 = vmatprep.mubr.f32.mxu0 %v281
  %625 = vmatmul.mubr.f32.gmra.mrb[0].mxu0 %v78
  %v626 = vpop.f32.mrb[0].mxu0
  %v627 = vadd.f32 %v181, %v626
  %v628 = vpop.f32.mrb[0].mxu0
  %629 = vmatprep.mubr.f32.mxu0 %v284
  %630 = vmatmul.mubr.f32.gmra.mrb[0].mxu0 %v80
  %v631 = vpop.f32.mrb[0].mxu0
  %v632 = vadd.f32 %v181, %v631
  %v633 = vpop.f32.mrb[0].mxu0
  %634 = vmatprep.mubr.f32.mxu0 %v287
  %635 = vmatmul.mubr.f32.gmra.mrb[0].mxu0 %v82
  %v636 = vpop.f32.mrb[0].mxu0
  %v637 = vadd.f32 %v181, %v636
  %v638 = vpop.f32.mrb[0].mxu0
  %639 = vmatprep.mubr.f32.mxu0 %v290
  %640 = vmatmul.mubr.f32.gmra.mrb[0].mxu0 %v84
  %v641 = vpop.f32.mrb[0].mxu0
  %v642 = vadd.f32 %v181, %v641
  %v643 = vpop.f32.mrb[0].mxu0
  %644 = vmatprep.mubr.f32.mxu0 %v293
  %645 = vmatmul.mubr.f32.gmra.mrb[0].mxu0 %v86
  %v646 = vpop.f32.mrb[0].mxu0
  %v647 = vadd.f32 %v181, %v646
  %v648 = vpop.f32.mrb[0].mxu0
  %649 = vmatprep.mubr.f32.mxu0 %v296
  %650 = vmatmul.mubr.f32.gmra.mrb[0].mxu0 %v88
  %v651 = vpop.f32.mrb[0].mxu0
  %v652 = vadd.f32 %v181, %v651
  %v653 = vpop.f32.mrb[0].mxu0
  %654 = vmatprep.mubr.f32.mxu0 %v299
  %655 = vmatmul.mubr.f32.gmra.mrb[0].mxu0 %v90
  %v656 = vpop.f32.mrb[0].mxu0
  %v657 = vadd.f32 %v181, %v656
  %v658 = vpop.f32.mrb[0].mxu0
  %659 = vmatprep.mubr.f32.mxu0 %v302
  %660 = vmatmul.mubr.f32.gmra.mrb[0].mxu0 %v92
  %v661 = vpop.f32.mrb[0].mxu0
  %v662 = vadd.f32 %v181, %v661
  %v663 = vpop.f32.mrb[0].mxu0
  %664 = vmatprep.mubr.f32.mxu0 %v305
  %665 = vmatmul.mubr.f32.gmra.mrb[0].mxu0 %v94
  %v666 = vpop.f32.mrb[0].mxu0
  %v667 = vadd.f32 %v181, %v666
  %v668 = vpop.f32.mrb[0].mxu0
  %669 = vmatprep.mubr.f32.mxu0 %v308
  %670 = vmatmul.mubr.f32.gmra.mrb[0].mxu0 %v96
  %v671 = vpop.f32.mrb[0].mxu0
  %v672 = vadd.f32 %v181, %v671
  %v673 = vpop.f32.mrb[0].mxu0
  %674 = vmatprep.mubr.f32.mxu0 %v311
  %675 = vmatmul.mubr.f32.gmra.mrb[0].mxu0 %v98
  %v676 = vpop.f32.mrb[0].mxu0
  %v677 = vadd.f32 %v181, %v676
  %v678 = vpop.f32.mrb[0].mxu0
  %679 = vmatprep.mubr.f32.mxu0 %v314
  %680 = vmatmul.mubr.f32.gmra.mrb[0].mxu0 %v100
  %v681 = vpop.f32.mrb[0].mxu0
  %v682 = vadd.f32 %v181, %v681
  %v683 = vpop.f32.mrb[0].mxu0
  %684 = vmatprep.mubr.f32.mxu0 %v317
  %685 = vmatmul.mubr.f32.gmra.mrb[0].mxu0 %v102
  %v686 = vpop.f32.mrb[0].mxu0
  %v687 = vadd.f32 %v181, %v686
  %v688 = vpop.f32.mrb[0].mxu0
  %689 = vmatprep.mubr.f32.mxu0 %v320
  %690 = vmatmul.mubr.f32.gmra.mrb[0].mxu0 %v104
  %v691 = vpop.f32.mrb[0].mxu0
  %v692 = vadd.f32 %v181, %v691
  %v693 = vpop.f32.mrb[0].mxu0
  %694 = vmatprep.mubr.f32.mxu0 %v323
  %695 = vmatmul.mubr.f32.gmra.mrb[0].mxu0 %v106
  %v696 = vpop.f32.mrb[0].mxu0
  %v697 = vadd.f32 %v181, %v696
  %v698 = vpop.f32.mrb[0].mxu0
  %699 = vmatprep.mubr.f32.mxu0 %v326
  %700 = vmatmul.mubr.f32.gmra.mrb[0].mxu0 %v108
  %v701 = vpop.f32.mrb[0].mxu0
  %v702 = vadd.f32 %v181, %v701
  %v703 = vpop.f32.mrb[0].mxu0
  %704 = vmatprep.mubr.f32.mxu0 %v329
  %705 = vmatmul.mubr.f32.gmra.mrb[0].mxu0 %v110
  %v706 = vpop.f32.mrb[0].mxu0
  %v707 = vadd.f32 %v181, %v706
  %v708 = vpop.f32.mrb[0].mxu0
  %709 = vmatprep.mubr.f32.mxu0 %v332
  %710 = vmatmul.mubr.f32.gmra.mrb[0].mxu0 %v112
  %v711 = vpop.f32.mrb[0].mxu0
  %v712 = vadd.f32 %v181, %v711
  %v713 = vpop.f32.mrb[0].mxu0
  %714 = vmatprep.mubr.f32.mxu0 %v335
  %715 = vmatmul.mubr.f32.gmra.mrb[0].mxu0 %v114
  %v716 = vpop.f32.mrb[0].mxu0
  %v717 = vadd.f32 %v181, %v716
  %v718 = vpop.f32.mrb[0].mxu0
  %719 = vmatprep.mubr.f32.mxu0 %v338
  %720 = vmatmul.mubr.f32.gmra.mrb[0].mxu0 %v116
  %v721 = vpop.f32.mrb[0].mxu0
  %v722 = vadd.f32 %v181, %v721
  %v723 = vpop.f32.mrb[0].mxu0
  %724 = vmatprep.mubr.f32.mxu0 %v341
  %725 = vmatmul.mubr.f32.gmra.mrb[0].mxu0 %v118
  %v726 = vpop.f32.mrb[0].mxu0
  %v727 = vadd.f32 %v181, %v726
  %v728 = vpop.f32.mrb[0].mxu0
  %729 = vmatprep.mubr.f32.mxu0 %v344
  %730 = vmatmul.mubr.f32.gmra.mrb[0].mxu0 %v120
  %v731 = vpop.f32.mrb[0].mxu0
  %v732 = vadd.f32 %v181, %v731
  %v733 = vpop.f32.mrb[0].mxu0
  %734 = vmatprep.mubr.f32.mxu0 %v347
  %735 = vmatmul.mubr.f32.gmra.mrb[0].mxu0 %v122
  %v736 = vpop.f32.mrb[0].mxu0
  %v737 = vadd.f32 %v181, %v736
  %v738 = vpop.f32.mrb[0].mxu0
  %739 = vmatprep.mubr.f32.mxu0 %v350
  %740 = vmatmul.mubr.f32.gmra.mrb[0].mxu0 %v124
  %v741 = vpop.f32.mrb[0].mxu0
  %v742 = vadd.f32 %v181, %v741
  %v743 = vpop.f32.mrb[0].mxu0
  %744 = vmatprep.mubr.f32.mxu0 %v353
  %745 = vmatmul.mubr.f32.gmra.mrb[0].mxu0 %v126
  %v746 = vpop.f32.mrb[0].mxu0
  %v747 = vadd.f32 %v181, %v746
  %v748 = vpop.f32.mrb[0].mxu0
  %749 = vmatprep.mubr.f32.mxu0 %v356
  %750 = vmatmul.mubr.f32.gmra.mrb[0].mxu0 %v128
  %v751 = vpop.f32.mrb[0].mxu0
  %v752 = vadd.f32 %v181, %v751
  %v753 = vpop.f32.mrb[0].mxu0
  %754 = vmatprep.mubr.f32.mxu0 %v359
  %755 = vmatmul.mubr.f32.gmra.mrb[0].mxu0 %v130
  %v756 = vpop.f32.mrb[0].mxu0
  %v757 = vadd.f32 %v181, %v756
  %v758 = vpop.f32.mrb[0].mxu0
  %759 = vmatprep.mubr.f32.mxu0 %v362
  %760 = vmatmul.mubr.f32.gmra.mrb[0].mxu0 %v132
  %v761 = vpop.f32.mrb[0].mxu0
  %v762 = vadd.f32 %v181, %v761
  %v763 = vpop.f32.mrb[0].mxu0
  %764 = vmatprep.mubr.f32.mxu0 %v365
  %765 = vmatmul.mubr.f32.gmra.mrb[0].mxu0 %v134
  %v766 = vpop.f32.mrb[0].mxu0
  %v767 = vadd.f32 %v181, %v766
  %v768 = vpop.f32.mrb[0].mxu0
  %769 = vmatprep.mubr.f32.mxu0 %v368
  %770 = vmatmul.mubr.f32.gmra.mrb[0].mxu0 %v136
  %v771 = vpop.f32.mrb[0].mxu0
  %v772 = vadd.f32 %v181, %v771
  %v773 = vpop.f32.mrb[0].mxu0
  %774 = vmatprep.mubr.f32.mxu0 %v371
  %775 = vmatmul.mubr.f32.gmra.mrb[0].mxu0 %v138
  %v776 = vpop.f32.mrb[0].mxu0
  %v777 = vadd.f32 %v181, %v776
  %v778 = vpop.f32.mrb[0].mxu0
  %779 = vmatprep.mubr.f32.mxu0 %v374
  %780 = vmatmul.mubr.f32.gmra.mrb[0].mxu0 %v140
  %v781 = vpop.f32.mrb[0].mxu0
  %v782 = vadd.f32 %v181, %v781
  %v783 = vpop.f32.mrb[0].mxu0
  %784 = vmatprep.mubr.f32.mxu0 %v377
  %785 = vmatmul.mubr.f32.gmra.mrb[0].mxu0 %v142
  %v786 = vpop.f32.mrb[0].mxu0
  %v787 = vadd.f32 %v181, %v786
  %v788 = vpop.f32.mrb[0].mxu0
  %789 = vmatprep.mubr.f32.mxu0 %v380
  %790 = vmatmul.mubr.f32.gmra.mrb[0].mxu0 %v144
  %v791 = vpop.f32.mrb[0].mxu0
  %v792 = vadd.f32 %v181, %v791
  %v793 = vpop.f32.mrb[0].mxu0
  %794 = vmatprep.mubr.f32.mxu0 %v383
  %795 = vmatmul.mubr.f32.gmra.mrb[0].mxu0 %v146
  %v796 = vpop.f32.mrb[0].mxu0
  %v797 = vadd.f32 %v181, %v796
  %v798 = vpop.f32.mrb[0].mxu0
  %799 = vmatprep.mubr.f32.mxu0 %v386
  %800 = vmatmul.mubr.f32.gmra.mrb[0].mxu0 %v148
  %v801 = vpop.f32.mrb[0].mxu0
  %v802 = vadd.f32 %v181, %v801
  %v803 = vpop.f32.mrb[0].mxu0
  %804 = vmatprep.mubr.f32.mxu0 %v389
  %805 = vmatmul.mubr.f32.gmra.mrb[0].mxu0 %v150
  %v806 = vpop.f32.mrb[0].mxu0
  %v807 = vadd.f32 %v181, %v806
  %v808 = vpop.f32.mrb[0].mxu0
  %809 = vmatprep.mubr.f32.mxu0 %v392
  %810 = vmatmul.mubr.f32.gmra.mrb[0].mxu0 %v152
  %v811 = vpop.f32.mrb[0].mxu0
  %v812 = vadd.f32 %v181, %v811
  %v813 = vpop.f32.mrb[0].mxu0
  %814 = vmatprep.mubr.f32.mxu0 %v395
  %815 = vmatmul.mubr.f32.gmra.mrb[0].mxu0 %v154
  %v816 = vpop.f32.mrb[0].mxu0
  %v817 = vadd.f32 %v181, %v816
  %v818 = vpop.f32.mrb[0].mxu0
  %819 = vmatprep.mubr.f32.mxu0 %v398
  %820 = vmatmul.mubr.f32.gmra.mrb[0].mxu0 %v156
  %v821 = vpop.f32.mrb[0].mxu0
  %v822 = vadd.f32 %v181, %v821
  %v823 = vpop.f32.mrb[0].mxu0
  %824 = vdwg.mxu0
  %v825 = vmax.f32 %v467, 0.0
  %v826 = vmax.f32 %v472, 0.0
  %v827 = vmax.f32 %v477, 0.0
  %v828 = vmax.f32 %v482, 0.0
  %v829 = vmax.f32 %v487, 0.0
  %v830 = vmax.f32 %v492, 0.0
  %v831 = vmax.f32 %v497, 0.0
  %v832 = vmax.f32 %v502, 0.0
  %v833 = vmax.f32 %v507, 0.0
  %v834 = vmax.f32 %v512, 0.0
  %v835 = vmax.f32 %v517, 0.0
  %v836 = vmax.f32 %v522, 0.0
  %v837 = vmax.f32 %v527, 0.0
  %v838 = vmax.f32 %v532, 0.0
  %v839 = vmax.f32 %v537, 0.0
  %v840 = vmax.f32 %v542, 0.0
  %v841 = vmax.f32 %v547, 0.0
  %v842 = vmax.f32 %v552, 0.0
  %v843 = vmax.f32 %v557, 0.0
  %v844 = vmax.f32 %v562, 0.0
  %v845 = vmax.f32 %v567, 0.0
  %v846 = vmax.f32 %v572, 0.0
  %v847 = vmax.f32 %v577, 0.0
  %v848 = vmax.f32 %v582, 0.0
  %v849 = vmax.f32 %v587, 0.0
  %v850 = vmax.f32 %v592, 0.0
  %v851 = vmax.f32 %v597, 0.0
  %v852 = vmax.f32 %v602, 0.0
  %v853 = vmax.f32 %v607, 0.0
  %v854 = vmax.f32 %v612, 0.0
  %v855 = vmax.f32 %v617, 0.0
  %v856 = vmax.f32 %v622, 0.0
  %v857 = vmax.f32 %v627, 0.0
  %v858 = vmax.f32 %v632, 0.0
  %v859 = vmax.f32 %v637, 0.0
  %v860 = vmax.f32 %v642, 0.0
  %v861 = vmax.f32 %v647, 0.0
  %v862 = vmax.f32 %v652, 0.0
  %v863 = vmax.f32 %v657, 0.0
  %v864 = vmax.f32 %v662, 0.0
  %v865 = vmax.f32 %v667, 0.0
  %v866 = vmax.f32 %v672, 0.0
  %v867 = vmax.f32 %v677, 0.0
  %v868 = vmax.f32 %v682, 0.0
  %v869 = vmax.f32 %v687, 0.0
  %v870 = vmax.f32 %v692, 0.0
  %v871 = vmax.f32 %v697, 0.0
  %v872 = vmax.f32 %v702, 0.0
  %v873 = vmax.f32 %v707, 0.0
  %v874 = vmax.f32 %v712, 0.0
  %v875 = vmax.f32 %v717, 0.0
  %v876 = vmax.f32 %v722, 0.0
  %v877 = vmax.f32 %v727, 0.0
  %v878 = vmax.f32 %v732, 0.0
  %v879 = vmax.f32 %v737, 0.0
  %v880 = vmax.f32 %v742, 0.0
  %v881 = vmax.f32 %v747, 0.0
  %v882 = vmax.f32 %v752, 0.0
  %v883 = vmax.f32 %v757, 0.0
  %v884 = vmax.f32 %v762, 0.0
  %v885 = vmax.f32 %v767, 0.0
  %v886 = vmax.f32 %v772, 0.0
  %v887 = vmax.f32 %v777, 0.0
  %v888 = vmax.f32 %v782, 0.0
  %v889 = vmax.f32 %v787, 0.0
  %v890 = vmax.f32 %v792, 0.0
  %v891 = vmax.f32 %v797, 0.0
  %v892 = vmax.f32 %v802, 0.0
  %v893 = vmax.f32 %v807, 0.0
  %v894 = vmax.f32 %v812, 0.0
  %v895 = vmax.f32 %v817, 0.0
  %v896 = vmax.f32 %v822, 0.0
  %897 = vst [vmem:[%s3] sm:$0xff] %v825
  %898 = vst [vmem:[%s3 + $0x8] sm:$0xff] %v826
  %899 = vst [vmem:[%s3 + $0x10] sm:$0xff] %v827
  %900 = vst [vmem:[%s3 + $0x18] sm:$0xff] %v828
  %901 = vst [vmem:[%s3 + $0x20] sm:$0xff] %v829
  %902 = vst [vmem:[%s3 + $0x28] sm:$0xff] %v830
  %903 = vst [vmem:[%s3 + $0x30] sm:$0xff] %v831
  %904 = vst [vmem:[%s3 + $0x38] sm:$0xff] %v832
  %905 = vst [vmem:[%s3 + $0x40] sm:$0xff] %v833
  %906 = vst [vmem:[%s3 + $0x48] sm:$0xff] %v834
  %907 = vst [vmem:[%s3 + $0x50] sm:$0xff] %v835
  %908 = vst [vmem:[%s3 + $0x58] sm:$0xff] %v836
  %909 = vst [vmem:[%s3 + $0x60] sm:$0xff] %v837
  %910 = vst [vmem:[%s3 + $0x68] sm:$0xff] %v838
  %911 = vst [vmem:[%s3 + $0x70] sm:$0xff] %v839
  %912 = vst [vmem:[%s3 + $0x78] sm:$0xff] %v840
  %913 = vst [vmem:[%s3 + $0x80] sm:$0xff] %v841
  %914 = vst [vmem:[%s3 + $0x88] sm:$0xff] %v842
  %915 = vst [vmem:[%s3 + $0x90] sm:$0xff] %v843
  %916 = vst [vmem:[%s3 + $0x98] sm:$0xff] %v844
  %917 = vst [vmem:[%s3 + $0xa0] sm:$0xff] %v845
  %918 = vst [vmem:[%s3 + $0xa8] sm:$0xff] %v846
  %919 = vst [vmem:[%s3 + $0xb0] sm:$0xff] %v847
  %920 = vst [vmem:[%s3 + $0xb8] sm:$0xff] %v848
  %921 = vst [vmem:[%s3 + $0xc0] sm:$0xff] %v849
  %922 = vst [vmem:[%s3 + $0xc8] sm:$0xff] %v850
  %923 = vst [vmem:[%s3 + $0xd0] sm:$0xff] %v851
  %924 = vst [vmem:[%s3 + $0xd8] sm:$0xff] %v852
  %925 = vst [vmem:[%s3 + $0xe0] sm:$0xff] %v853
  %926 = vst [vmem:[%s3 + $0xe8] sm:$0xff] %v854
  %927 = vst [vmem:[%s3 + $0xf0] sm:$0xff] %v855
  %928 = vst [vmem:[%s3 + $0xf8] sm:$0xff] %v856
  %929 = vst [vmem:[%s3 + $0x100] sm:$0xff] %v857
  %930 = vst [vmem:[%s3 + $0x108] sm:$0xff] %v858
  %931 = vst [vmem:[%s3 + $0x110] sm:$0xff] %v859
  %932 = vst [vmem:[%s3 + $0x118] sm:$0xff] %v860
  %933 = vst [vmem:[%s3 + $0x120] sm:$0xff] %v861
  %934 = vst [vmem:[%s3 + $0x128] sm:$0xff] %v862
  %935 = vst [vmem:[%s3 + $0x130] sm:$0xff] %v863
  %936 = vst [vmem:[%s3 + $0x138] sm:$0xff] %v864
  %937 = vst [vmem:[%s3 + $0x140] sm:$0xff] %v865
  %938 = vst [vmem:[%s3 + $0x148] sm:$0xff] %v866
  %939 = vst [vmem:[%s3 + $0x150] sm:$0xff] %v867
  %940 = vst [vmem:[%s3 + $0x158] sm:$0xff] %v868
  %941 = vst [vmem:[%s3 + $0x160] sm:$0xff] %v869
  %942 = vst [vmem:[%s3 + $0x168] sm:$0xff] %v870
  %943 = vst [vmem:[%s3 + $0x170] sm:$0xff] %v871
  %944 = vst [vmem:[%s3 + $0x178] sm:$0xff] %v872
  %945 = vst [vmem:[%s3 + $0x180] sm:$0xff] %v873
  %946 = vst [vmem:[%s3 + $0x188] sm:$0xff] %v874
  %947 = vst [vmem:[%s3 + $0x190] sm:$0xff] %v875
  %948 = vst [vmem:[%s3 + $0x198] sm:$0xff] %v876
  %949 = vst [vmem:[%s3 + $0x1a0] sm:$0xff] %v877
  %950 = vst [vmem:[%s3 + $0x1a8] sm:$0xff] %v878
  %951 = vst [vmem:[%s3 + $0x1b0] sm:$0xff] %v879
  %952 = vst [vmem:[%s3 + $0x1b8] sm:$0xff] %v880
  %953 = vst [vmem:[%s3 + $0x1c0] sm:$0xff] %v881
  %954 = vst [vmem:[%s3 + $0x1c8] sm:$0xff] %v882
  %955 = vst [vmem:[%s3 + $0x1d0] sm:$0xff] %v883
  %956 = vst [vmem:[%s3 + $0x1d8] sm:$0xff] %v884
  %957 = vst [vmem:[%s3 + $0x1e0] sm:$0xff] %v885
  %958 = vst [vmem:[%s3 + $0x1e8] sm:$0xff] %v886
  %959 = vst [vmem:[%s3 + $0x1f0] sm:$0xff] %v887
  %960 = vst [vmem:[%s3 + $0x1f8] sm:$0xff] %v888
  %961 = vst [vmem:[%s3 + $0x200] sm:$0xff] %v889
  %962 = vst [vmem:[%s3 + $0x208] sm:$0xff] %v890
  %963 = vst [vmem:[%s3 + $0x210] sm:$0xff] %v891
  %964 = vst [vmem:[%s3 + $0x218] sm:$0xff] %v892
  %965 = vst [vmem:[%s3 + $0x220] sm:$0xff] %v893
  %966 = vst [vmem:[%s3 + $0x228] sm:$0xff] %v894
  %967 = vst [vmem:[%s3 + $0x230] sm:$0xff] %v895
  %968 = vst [vmem:[%s3 + $0x238] sm:$0xff] %v896
  // Predicated region
  $region14: #{rollout_encoder_forward.4} parent=0 // pred_check
    _
  $region15: #{rollout_encoder_forward.4} parent=0 // pred_check_branch
    %970 = sbr.rel (0) target = $region17
  $region16: #{rollout_encoder_forward.4} parent=0 // pred_region
    _
  $region17: #{rollout_encoder_forward.4} parent=0 // pred_fallthru
    _
  // Predicated region
  $region18: #{rollout_encoder_forward.4} parent=0 // pred_check
    _
  $region19: #{rollout_encoder_forward.4} parent=0 // pred_check_branch
    %972 = sbr.rel (0) target = $region21
  $region20: #{rollout_encoder_forward.4} parent=0 // pred_region
    _
  $region21: #{rollout_encoder_forward.4} parent=0 // pred_fallthru
    _

// kernel: rollout_encoder_forward.5
$region0: #{rollout_encoder_forward.5}
  #allocation0 [shape = 'u32[]', space=smem, size = 0x4, offset = 0x4, fixed_abs, tag = 'smem constant byte address 0x4 - core index']
  #allocation1 [shape = 'u32[144,128]{1,0:T(1,128)}', space=vmem, size = 0x12000, scoped, tag = 'internal scratch']
  #allocation2 [shape = 'f32[16,128]{1,0:T(8,128)}', space=vmem, size = 0x2000, scoped, tag = 'scratch operand']
  %s0 = inlined_call_operand.vmem [shape: f32[16,577], index: 0, kind: input, shape index: {}]
  %s1 = inlined_call_operand.vmem [shape: f32[577,128], index: 1, kind: input, shape index: {}]
  %s2 = inlined_call_operand.vmem [shape: f32[32,128], index: 2, kind: input, shape index: {}]
  %s3 = inlined_call_operand.vmem [shape: f32[1,128], index: 3, kind: input, shape index: {}]
  %s4 = inlined_call_operand.vmem [shape: f32[1,128], index: 4, kind: input, shape index: {}]
  %s5 = inlined_call_operand.hbm [shape: f32[2,32], index: 5, kind: output, shape index: {}]
  %s6 = sld [smem:[#allocation0]]
  $region30: #{rollout_encoder_forward.5} parent=0
    _
  %s8 = ssub.s32 1, %s6
  %s9 = scalar_select 0, %s8, %s6
  $region1: #{rollout_encoder_forward.5} parent=0
    #allocation3 [shape = 'u8[1024]{0}', space=vmem, size = 0x400, scoped, tag = 'output window, operand 0, single buffered']
    #allocation4 [shape = 's32[1]{0}', space=sflag, size = 0x4, scoped, tag = 'scoped memory for rollout_encoder_forward.5']
    %10 = vsyncpa [#allocation4], 0
    // Predicated region
    $region2: #{rollout_encoder_forward.5} parent=1 // pred_check
      _
    $region3: #{rollout_encoder_forward.5} parent=1 // pred_check_branch
      %12 = sbr.rel (0) target = $region5
    $region4: #{rollout_encoder_forward.5} parent=1 // pred_region
      _
    $region5: #{rollout_encoder_forward.5} parent=1 // pred_fallthru
      _
    // Predicated region
    $region6: #{rollout_encoder_forward.5} parent=1 // pred_check
      _
    $region7: #{rollout_encoder_forward.5} parent=1 // pred_check_branch
      %14 = sbr.rel (0) target = $region9
    $region8: #{rollout_encoder_forward.5} parent=1 // pred_region
      _
    $region9: #{rollout_encoder_forward.5} parent=1 // pred_fallthru
      _
    // Predicated region
    $region10: #{rollout_encoder_forward.5} parent=1 // pred_check
      _
    $region11: #{rollout_encoder_forward.5} parent=1 // pred_check_branch
      %16 = sbr.rel (0) target = $region13
    $region12: #{rollout_encoder_forward.5} parent=1 // pred_region
      _
    $region13: #{rollout_encoder_forward.5} parent=1 // pred_fallthru
      _
    // Predicated region
    $region14: #{rollout_encoder_forward.5} parent=1 // pred_check
      _
    $region15: #{rollout_encoder_forward.5} parent=1 // pred_check_branch
      %18 = sbr.rel (0) target = $region17
    $region16: #{rollout_encoder_forward.5} parent=1 // pred_region
      _
    $region17: #{rollout_encoder_forward.5} parent=1 // pred_fallthru
      _
    // Predicated region
    $region18: #{rollout_encoder_forward.5} parent=1 // pred_check
      _
    $region19: #{rollout_encoder_forward.5} parent=1 // pred_check_branch
      %20 = sbr.rel (0) target = $region21
    $region20: #{rollout_encoder_forward.5} parent=1 // pred_region
      _
    $region21: #{rollout_encoder_forward.5} parent=1 // pred_fallthru
      _
    %v21 = vld [vmem:[%s0] sm:$0xff]
    %v22 = vld [vmem:[%s0 + $0x8] sm:$0xff]
    %v23 = vld [vmem:[%s0 + $0x10] sm:$0xff]
    %v24 = vld [vmem:[%s0 + $0x18] sm:$0xff]
    %v25 = vld [vmem:[%s0 + $0x20] sm:$0xff]
    %v26 = vld [vmem:[%s0 + $0x28] sm:$0xff]
    %v27 = vld [vmem:[%s0 + $0x30] sm:$0xff]
    %v28 = vld [vmem:[%s0 + $0x38] sm:$0xff]
    %v29 = vld [vmem:[%s0 + $0x40] sm:$0xff]
    %v30 = vld [vmem:[%s0 + $0x48] sm:$0xff]
    %v31 = vld [vmem:[%s1] sm:$0xff]
    %v32 = vld [vmem:[%s1 + $0x8] sm:$0xff]
    %v33 = vld [vmem:[%s1 + $0x10] sm:$0xff]
    %v34 = vld [vmem:[%s1 + $0x18] sm:$0xff]
    %v35 = vld [vmem:[%s1 + $0x20] sm:$0xff]
    %v36 = vld [vmem:[%s1 + $0x28] sm:$0xff]
    %v37 = vld [vmem:[%s1 + $0x30] sm:$0xff]
    %v38 = vld [vmem:[%s1 + $0x38] sm:$0xff]
    %v39 = vld [vmem:[%s1 + $0x40] sm:$0xff]
    %v40 = vld [vmem:[%s1 + $0x48] sm:$0xff]
    %v41 = vld [vmem:[%s1 + $0x50] sm:$0xff]
    %v42 = vld [vmem:[%s1 + $0x58] sm:$0xff]
    %v43 = vld [vmem:[%s1 + $0x60] sm:$0xff]
    %v44 = vld [vmem:[%s1 + $0x68] sm:$0xff]
    %v45 = vld [vmem:[%s1 + $0x70] sm:$0xff]
    %v46 = vld [vmem:[%s1 + $0x78] sm:$0xff]
    %v47 = vld [vmem:[%s1 + $0x80] sm:$0xff]
    %v48 = vld [vmem:[%s1 + $0x88] sm:$0xff]
    %v49 = vld [vmem:[%s1 + $0x90] sm:$0xff]
    %v50 = vld [vmem:[%s1 + $0x98] sm:$0xff]
    %v51 = vld [vmem:[%s1 + $0xa0] sm:$0xff]
    %v52 = vld [vmem:[%s1 + $0xa8] sm:$0xff]
    %v53 = vld [vmem:[%s1 + $0xb0] sm:$0xff]
    %v54 = vld [vmem:[%s1 + $0xb8] sm:$0xff]
    %v55 = vld [vmem:[%s1 + $0xc0] sm:$0xff]
    %v56 = vld [vmem:[%s1 + $0xc8] sm:$0xff]
    %v57 = vld [vmem:[%s1 + $0xd0] sm:$0xff]
    %v58 = vld [vmem:[%s1 + $0xd8] sm:$0xff]
    %v59 = vld [vmem:[%s1 + $0xe0] sm:$0xff]
    %v60 = vld [vmem:[%s1 + $0xe8] sm:$0xff]
    %v61 = vld [vmem:[%s1 + $0xf0] sm:$0xff]
    %v62 = vld [vmem:[%s1 + $0xf8] sm:$0xff]
    %v63 = vld [vmem:[%s1 + $0x100] sm:$0xff]
    %v64 = vld [vmem:[%s1 + $0x108] sm:$0xff]
    %v65 = vld [vmem:[%s1 + $0x110] sm:$0xff]
    %v66 = vld [vmem:[%s1 + $0x118] sm:$0xff]
    %v67 = vld [vmem:[%s1 + $0x120] sm:$0xff]
    %v68 = vld [vmem:[%s1 + $0x128] sm:$0xff]
    %v69 = vld [vmem:[%s1 + $0x130] sm:$0xff]
    %v70 = vld [vmem:[%s1 + $0x138] sm:$0xff]
    %v71 = vld [vmem:[%s1 + $0x140] sm:$0xff]
    %v72 = vld [vmem:[%s1 + $0x148] sm:$0xff]
    %v73 = vld [vmem:[%s1 + $0x150] sm:$0xff]
    %v74 = vld [vmem:[%s1 + $0x158] sm:$0xff]
    %v75 = vld [vmem:[%s1 + $0x160] sm:$0xff]
    %v76 = vld [vmem:[%s1 + $0x168] sm:$0xff]
    %v77 = vld [vmem:[%s1 + $0x170] sm:$0xff]
    %v78 = vld [vmem:[%s1 + $0x178] sm:$0xff]
    %v79 = vld [vmem:[%s1 + $0x180] sm:$0xff]
    %v80 = vld [vmem:[%s1 + $0x188] sm:$0xff]
    %v81 = vld [vmem:[%s1 + $0x190] sm:$0xff]
    %v82 = vld [vmem:[%s1 + $0x198] sm:$0xff]
    %v83 = vld [vmem:[%s1 + $0x1a0] sm:$0xff]
    %v84 = vld [vmem:[%s1 + $0x1a8] sm:$0xff]
    %v85 = vld [vmem:[%s1 + $0x1b0] sm:$0xff]
    %v86 = vld [vmem:[%s1 + $0x1b8] sm:$0xff]
    %v87 = vld [vmem:[%s1 + $0x1c0] sm:$0xff]
    %v88 = vld [vmem:[%s1 + $0x1c8] sm:$0xff]
    %v89 = vld [vmem:[%s1 + $0x1d0] sm:$0xff]
    %v90 = vld [vmem:[%s1 + $0x1d8] sm:$0xff]
    %v91 = vld [vmem:[%s1 + $0x1e0] sm:$0xff]
    %v92 = vld [vmem:[%s1 + $0x1e8] sm:$0xff]
    %v93 = vld [vmem:[%s1 + $0x1f0] sm:$0xff]
    %v94 = vld [vmem:[%s1 + $0x1f8] sm:$0xff]
    %v95 = vld [vmem:[%s1 + $0x200] sm:$0xff]
    %v96 = vld [vmem:[%s1 + $0x208] sm:$0xff]
    %v97 = vld [vmem:[%s1 + $0x210] sm:$0xff]
    %v98 = vld [vmem:[%s1 + $0x218] sm:$0xff]
    %v99 = vld [vmem:[%s1 + $0x220] sm:$0xff]
    %v100 = vld [vmem:[%s1 + $0x228] sm:$0xff]
    %v101 = vld [vmem:[%s1 + $0x230] sm:$0xff]
    %v102 = vld [vmem:[%s1 + $0x238] sm:$0xff]
    %v103 = vld [vmem:[%s1 + $0x240] sm:$0x1]
    %v104 = vld [vmem:[%s3] sm:$0x1]
    %v106 = vlaneseq
    %v107 = vshrl.u32 %v106, 7
    %v108 = vsub.s32 0, %v107
    %v109 = vrot.slane %v104, %v108
    %vm111 = vcmask 531456
    %v113 = vsel %vm111, %v25, 0
    %v116 = vsel %vm111, %v30, 0
    %vm118 = vcmask 1040384
    %v120 = vsel %vm118, %v103, 0
    %122 = vmatprep.subr.mxu0 0.0
    %123 = vmatpush1.msra.mxu0 %v31
    %124 = vmatprep.subr.mxu0 0.0
    %125 = vmatpush1.msra.mxu0 %v32
    %126 = vmatprep.subr.mxu0 0.0
    %127 = vmatpush1.msra.mxu0 %v33
    %128 = vmatprep.subr.mxu0 0.0
    %129 = vmatpush1.msra.mxu0 %v34
    %130 = vmatprep.subr.mxu0 0.0
    %131 = vmatpush1.msra.mxu0 %v35
    %132 = vmatprep.subr.mxu0 0.0
    %133 = vmatpush1.msra.mxu0 %v36
    %134 = vmatprep.subr.mxu0 0.0
    %135 = vmatpush1.msra.mxu0 %v37
    %136 = vmatprep.subr.mxu0 0.0
    %137 = vmatpush1.msra.mxu0 %v38
    %138 = vmatprep.subr.mxu0 0.0
    %139 = vmatpush1.msra.mxu0 %v39
    %140 = vmatprep.subr.mxu0 0.0
    %141 = vmatpush1.msra.mxu0 %v40
    %142 = vmatprep.subr.mxu0 0.0
    %143 = vmatpush1.msra.mxu0 %v41
    %144 = vmatprep.subr.mxu0 0.0
    %145 = vmatpush1.msra.mxu0 %v42
    %146 = vmatprep.subr.mxu0 0.0
    %147 = vmatpush1.msra.mxu0 %v43
    %148 = vmatprep.subr.mxu0 0.0
    %149 = vmatpush1.msra.mxu0 %v44
    %150 = vmatprep.subr.mxu0 0.0
    %151 = vmatpush1.msra.mxu0 %v45
    %152 = vmatprep.subr.mxu0 0.0
    %153 = vmatpush1.msra.mxu0 %v46
    %154 = vmatprep.subr.mxu0 0.0
    %155 = vmatpush1.msra.mxu0 %v47
    %156 = vmatprep.subr.mxu0 0.0
    %157 = vmatpush1.msra.mxu0 %v48
    %158 = vmatprep.subr.mxu0 0.0
    %159 = vmatpush1.msra.mxu0 %v49
    %160 = vmatprep.subr.mxu0 0.0
    %161 = vmatpush1.msra.mxu0 %v50
    %162 = vmatprep.subr.mxu0 0.0
    %163 = vmatpush1.msra.mxu0 %v51
    %164 = vmatprep.subr.mxu0 0.0
    %165 = vmatpush1.msra.mxu0 %v52
    %166 = vmatprep.subr.mxu0 0.0
    %167 = vmatpush1.msra.mxu0 %v53
    %168 = vmatprep.subr.mxu0 0.0
    %169 = vmatpush1.msra.mxu0 %v54
    %170 = vmatprep.subr.mxu0 0.0
    %171 = vmatpush1.msra.mxu0 %v55
    %172 = vmatprep.subr.mxu0 0.0
    %173 = vmatpush1.msra.mxu0 %v56
    %174 = vmatprep.subr.mxu0 0.0
    %175 = vmatpush1.msra.mxu0 %v57
    %176 = vmatprep.subr.mxu0 0.0
    %177 = vmatpush1.msra.mxu0 %v58
    %178 = vmatprep.subr.mxu0 0.0
    %179 = vmatpush1.msra.mxu0 %v59
    %180 = vmatprep.subr.mxu0 0.0
    %181 = vmatpush1.msra.mxu0 %v60
    %182 = vmatprep.subr.mxu0 0.0
    %183 = vmatpush1.msra.mxu0 %v61
    %184 = vmatprep.subr.mxu0 0.0
    %185 = vmatpush1.msra.mxu0 %v62
    %186 = vmatprep.mubr.f32.mxu0 %v22
    %187 = vmatmul.mubr.f32.gmra.mrb[0].mxu0 %v21
    %v188 = vpop.f32.mrb[0].mxu0
    %v189 = vadd.f32 %v109, %v188
    %v190 = vpop.f32.mrb[0].mxu0
    %191 = vmatprep.mubr.f32.mxu0 %v27
    %192 = vmatmul.mubr.f32.gmra.mrb[0].mxu0 %v26
    %v193 = vpop.f32.mrb[0].mxu0
    %v194 = vadd.f32 %v109, %v193
    %v195 = vpop.f32.mrb[0].mxu0
    %196 = vdwg.mxu0
    %197 = vmatprep.subr.mxu0 0.0
    %198 = vmatpush1.msra.mxu0 %v63
    %199 = vmatprep.subr.mxu0 0.0
    %200 = vmatpush1.msra.mxu0 %v64
    %201 = vmatprep.subr.mxu0 0.0
    %202 = vmatpush1.msra.mxu0 %v65
    %203 = vmatprep.subr.mxu0 0.0
    %204 = vmatpush1.msra.mxu0 %v66
    %205 = vmatprep.subr.mxu0 0.0
    %206 = vmatpush1.msra.mxu0 %v67
    %207 = vmatprep.subr.mxu0 0.0
    %208 = vmatpush1.msra.mxu0 %v68
    %209 = vmatprep.subr.mxu0 0.0
    %210 = vmatpush1.msra.mxu0 %v69
    %211 = vmatprep.subr.mxu0 0.0
    %212 = vmatpush1.msra.mxu0 %v70
    %213 = vmatprep.subr.mxu0 0.0
    %214 = vmatpush1.msra.mxu0 %v71
    %215 = vmatprep.subr.mxu0 0.0
    %216 = vmatpush1.msra.mxu0 %v72
    %217 = vmatprep.subr.mxu0 0.0
    %218 = vmatpush1.msra.mxu0 %v73
    %219 = vmatprep.subr.mxu0 0.0
    %220 = vmatpush1.msra.mxu0 %v74
    %221 = vmatprep.subr.mxu0 0.0
    %222 = vmatpush1.msra.mxu0 %v75
    %223 = vmatprep.subr.mxu0 0.0
    %224 = vmatpush1.msra.mxu0 %v76
    %225 = vmatprep.subr.mxu0 0.0
    %226 = vmatpush1.msra.mxu0 %v77
    %227 = vmatprep.subr.mxu0 0.0
    %228 = vmatpush1.msra.mxu0 %v78
    %229 = vmatprep.subr.mxu0 0.0
    %230 = vmatpush1.msra.mxu0 %v79
    %231 = vmatprep.subr.mxu0 0.0
    %232 = vmatpush1.msra.mxu0 %v80
    %233 = vmatprep.subr.mxu0 0.0
    %234 = vmatpush1.msra.mxu0 %v81
    %235 = vmatprep.subr.mxu0 0.0
    %236 = vmatpush1.msra.mxu0 %v82
    %237 = vmatprep.subr.mxu0 0.0
    %238 = vmatpush1.msra.mxu0 %v83
    %239 = vmatprep.subr.mxu0 0.0
    %240 = vmatpush1.msra.mxu0 %v84
    %241 = vmatprep.subr.mxu0 0.0
    %242 = vmatpush1.msra.mxu0 %v85
    %243 = vmatprep.subr.mxu0 0.0
    %244 = vmatpush1.msra.mxu0 %v86
    %245 = vmatprep.subr.mxu0 0.0
    %246 = vmatpush1.msra.mxu0 %v87
    %247 = vmatprep.subr.mxu0 0.0
    %248 = vmatpush1.msra.mxu0 %v88
    %249 = vmatprep.subr.mxu0 0.0
    %250 = vmatpush1.msra.mxu0 %v89
    %251 = vmatprep.subr.mxu0 0.0
    %252 = vmatpush1.msra.mxu0 %v90
    %253 = vmatprep.subr.mxu0 0.0
    %254 = vmatpush1.msra.mxu0 %v91
    %255 = vmatprep.subr.mxu0 0.0
    %256 = vmatpush1.msra.mxu0 %v92
    %257 = vmatprep.subr.mxu0 0.0
    %258 = vmatpush1.msra.mxu0 %v93
    %259 = vmatprep.subr.mxu0 0.0
    %260 = vmatpush1.msra.mxu0 %v94
    %261 = vmatprep.mubr.f32.mxu0 %v24
    %262 = vmatmul.mubr.f32.gmra.mrb[0].mxu0 %v23
    %v263 = vpop.f32.mrb[0].mxu0
    %v264 = vadd.f32 %v189, %v263
    %v265 = vpop.f32.mrb[0].mxu0
    %266 = vmatprep.mubr.f32.mxu0 %v29
    %267 = vmatmul.mubr.f32.gmra.mrb[0].mxu0 %v28
    %v268 = vpop.f32.mrb[0].mxu0
    %v269 = vadd.f32 %v194, %v268
    %v270 = vpop.f32.mrb[0].mxu0
    %271 = vdwg.mxu0
    %272 = vmatprep.subr.mxu0 0.0
    %273 = vmatpush1.msra.mxu0 %v95
    %274 = vmatprep.subr.mxu0 0.0
    %275 = vmatpush1.msra.mxu0 %v96
    %276 = vmatprep.subr.mxu0 0.0
    %277 = vmatpush1.msra.mxu0 %v97
    %278 = vmatprep.subr.mxu0 0.0
    %279 = vmatpush1.msra.mxu0 %v98
    %280 = vmatprep.subr.mxu0 0.0
    %281 = vmatpush1.msra.mxu0 %v99
    %282 = vmatprep.subr.mxu0 0.0
    %283 = vmatpush1.msra.mxu0 %v100
    %284 = vmatprep.subr.mxu0 0.0
    %285 = vmatpush1.msra.mxu0 %v101
    %286 = vmatprep.subr.mxu0 0.0
    %287 = vmatpush1.msra.mxu0 %v102
    %288 = vmatprep.subr.mxu0 0.0
    %289 = vmatpush1.msra.mxu0 %v120
    %290 = vmatprep.subr.mxu0 0.0
    %291 = vmatpush1.msra.mxu0 0.0
    %292 = vmatprep.subr.mxu0 0.0
    %293 = vmatpush1.msra.mxu0 0.0
    %294 = vmatprep.subr.mxu0 0.0
    %295 = vmatpush1.msra.mxu0 0.0
    %296 = vmatprep.subr.mxu0 0.0
    %297 = vmatpush1.msra.mxu0 0.0
    %298 = vmatprep.subr.mxu0 0.0
    %299 = vmatpush1.msra.mxu0 0.0
    %300 = vmatprep.subr.mxu0 0.0
    %301 = vmatpush1.msra.mxu0 0.0
    %302 = vmatprep.subr.mxu0 0.0
    %303 = vmatpush1.msra.mxu0 0.0
    %304 = vmatprep.subr.mxu0 0.0
    %305 = vmatpush1.msra.mxu0 0.0
    %306 = vmatprep.subr.mxu0 0.0
    %307 = vmatpush1.msra.mxu0 0.0
    %308 = vmatprep.subr.mxu0 0.0
    %309 = vmatpush1.msra.mxu0 0.0
    %310 = vmatprep.subr.mxu0 0.0
    %311 = vmatpush1.msra.mxu0 0.0
    %312 = vmatprep.subr.mxu0 0.0
    %313 = vmatpush1.msra.mxu0 0.0
    %314 = vmatprep.subr.mxu0 0.0
    %315 = vmatpush1.msra.mxu0 0.0
    %316 = vmatprep.subr.mxu0 0.0
    %317 = vmatpush1.msra.mxu0 0.0
    %318 = vmatprep.subr.mxu0 0.0
    %319 = vmatpush1.msra.mxu0 0.0
    %320 = vmatprep.subr.mxu0 0.0
    %321 = vmatpush1.msra.mxu0 0.0
    %322 = vmatprep.subr.mxu0 0.0
    %323 = vmatpush1.msra.mxu0 0.0
    %324 = vmatprep.subr.mxu0 0.0
    %325 = vmatpush1.msra.mxu0 0.0
    %326 = vmatprep.subr.mxu0 0.0
    %327 = vmatpush1.msra.mxu0 0.0
    %328 = vmatprep.subr.mxu0 0.0
    %329 = vmatpush1.msra.mxu0 0.0
    %330 = vmatprep.subr.mxu0 0.0
    %331 = vmatpush1.msra.mxu0 0.0
    %332 = vmatprep.subr.mxu0 0.0
    %333 = vmatpush1.msra.mxu0 0.0
    %334 = vmatprep.subr.mxu0 0.0
    %335 = vmatpush1.msra.mxu0 0.0
    %336 = vmatprep.mubr.f32.mxu0 0.0
    %337 = vmatmul.mubr.f32.gmra.mrb[0].mxu0 %v113
    %v338 = vpop.f32.mrb[0].mxu0
    %v339 = vadd.f32 %v264, %v338
    %v340 = vpop.f32.mrb[0].mxu0
    %341 = vmatprep.mubr.f32.mxu0 0.0
    %342 = vmatmul.mubr.f32.gmra.mrb[0].mxu0 %v116
    %v343 = vpop.f32.mrb[0].mxu0
    %v344 = vadd.f32 %v269, %v343
    %v345 = vpop.f32.mrb[0].mxu0
    %346 = vdwg.mxu0
    %347 = vst [vmem:[#allocation2] sm:$0xff] %v339
    %348 = vst [vmem:[#allocation2 + $0x8] sm:$0xff] %v344
    %v349 = vld [vmem:[%s2] sm:$0xff]
    %v350 = vld [vmem:[%s2 + $0x8] sm:$0xff]
    %v351 = vld [vmem:[%s2 + $0x10] sm:$0xff]
    %v352 = vld [vmem:[%s2 + $0x18] sm:$0xff]
    %v353 = vld [vmem:[%s4] sm:$0x1]
    %v354 = vld [vmem:[#allocation2] sm:$0x3]
    %v356 = vlaneseq
    %v357 = vshrl.u32 %v356, 7
    %v358 = vsub.s32 0, %v357
    %v359 = vrot.slane %v353, %v358
    %vm361 = vcmask 261120
    %v363 = vsel %vm361, 0.0, 0
    %365 = vmatprep.subr.mxu0 0.0
    %366 = vmatpush1.msra.mxu0 %v349
    %367 = vmatprep.subr.mxu0 0.0
    %368 = vmatpush1.msra.mxu0 %v350
    %369 = vmatprep.subr.mxu0 0.0
    %370 = vmatpush1.msra.mxu0 %v351
    %371 = vmatprep.subr.mxu0 0.0
    %372 = vmatpush1.msra.mxu0 %v352
    %373 = vmatprep.subr.mxu0 0.0
    %374 = vmatpush1.msra.mxu0 0.0
    %375 = vmatprep.subr.mxu0 0.0
    %376 = vmatpush1.msra.mxu0 0.0
    %377 = vmatprep.subr.mxu0 0.0
    %378 = vmatpush1.msra.mxu0 0.0
    %379 = vmatprep.subr.mxu0 0.0
    %380 = vmatpush1.msra.mxu0 0.0
    %381 = vmatprep.subr.mxu0 0.0
    %382 = vmatpush1.msra.mxu0 0.0
    %383 = vmatprep.subr.mxu0 0.0
    %384 = vmatpush1.msra.mxu0 0.0
    %385 = vmatprep.subr.mxu0 0.0
    %386 = vmatpush1.msra.mxu0 0.0
    %387 = vmatprep.subr.mxu0 0.0
    %388 = vmatpush1.msra.mxu0 0.0
    %389 = vmatprep.subr.mxu0 0.0
    %390 = vmatpush1.msra.mxu0 0.0
    %391 = vmatprep.subr.mxu0 0.0
    %392 = vmatpush1.msra.mxu0 0.0
    %393 = vmatprep.subr.mxu0 0.0
    %394 = vmatpush1.msra.mxu0 0.0
    %395 = vmatprep.subr.mxu0 0.0
    %396 = vmatpush1.msra.mxu0 0.0
    %397 = vmatprep.subr.mxu0 0.0
    %398 = vmatpush1.msra.mxu0 0.0
    %399 = vmatprep.subr.mxu0 0.0
    %400 = vmatpush1.msra.mxu0 0.0
    %401 = vmatprep.subr.mxu0 0.0
    %402 = vmatpush1.msra.mxu0 0.0
    %403 = vmatprep.subr.mxu0 0.0
    %404 = vmatpush1.msra.mxu0 0.0
    %405 = vmatprep.subr.mxu0 0.0
    %406 = vmatpush1.msra.mxu0 0.0
    %407 = vmatprep.subr.mxu0 0.0
    %408 = vmatpush1.msra.mxu0 0.0
    %409 = vmatprep.subr.mxu0 0.0
    %410 = vmatpush1.msra.mxu0 0.0
    %411 = vmatprep.subr.mxu0 0.0
    %412 = vmatpush1.msra.mxu0 0.0
    %413 = vmatprep.subr.mxu0 0.0
    %414 = vmatpush1.msra.mxu0 0.0
    %415 = vmatprep.subr.mxu0 0.0
    %416 = vmatpush1.msra.mxu0 0.0
    %417 = vmatprep.subr.mxu0 0.0
    %418 = vmatpush1.msra.mxu0 0.0
    %419 = vmatprep.subr.mxu0 0.0
    %420 = vmatpush1.msra.mxu0 0.0
    %421 = vmatprep.subr.mxu0 0.0
    %422 = vmatpush1.msra.mxu0 0.0
    %423 = vmatprep.subr.mxu0 0.0
    %424 = vmatpush1.msra.mxu0 0.0
    %425 = vmatprep.subr.mxu0 0.0
    %426 = vmatpush1.msra.mxu0 0.0
    %427 = vmatprep.subr.mxu0 0.0
    %428 = vmatpush1.msra.mxu0 0.0
    %429 = vmatprep.mubr.f32.mxu0 0.0
    %430 = vmatmul.mubr.f32.gmra.mrb[0].mxu0 %v363
    %v431 = vpop.f32.mrb[0].mxu0
    %v432 = vadd.f32 %v359, %v431
    %v433 = vpop.f32.mrb[0].mxu0
    %434 = vdwg.mxu0
    %v435 = vadd.f32 %v354, %v432
    %v436 = vxor.u32 %v435, 2147483648
    %v437 = vmul.f32 %v436, 1.442695
    %v438 = vpow.pop %v437
    %v439 = vadd.f32 %v438, 1.0
    %v440 = vrcp.pop %v439
    %v441 = vmul.f32 1.0, %v440
    %443 = vrot.lane.b32.xlu0 %v432, 64
    %v444 = vpop.permute.xlu0 %443
    %v446 = vmul.f32 %v441, %v444
    %448 = vrot.lane.b32.xlu0 %v446, 64
    %v449 = vpop.permute.xlu0 %448
    %v451 = vadd.f32 %v354, %v449
    %v452 = vtanh.pop %v451
    %v453 = vsub.f32 1.0, %v441
    %455 = vrot.lane.b32.xlu0 %v452, 96
    %v456 = vpop.permute.xlu0 %455
    %v458 = vmul.f32 %v453, %v456
    %v459 = vmul.f32 %v441, 0.0
    %v460 = vadd.f32 %v458, %v459
    %v461 = vld [vmem:[#allocation2 + $0x2] sm:$0x3]
    %463 = vrot.lane.b32.xlu0 %v460, 96
    %v464 = vpop.permute.xlu0 %463
    %v465 = vsel %vm361, %v464, 0
    %467 = vmatprep.subr.mxu0 0.0
    %468 = vmatpush1.msra.mxu0 %v349
    %469 = vmatprep.subr.mxu0 0.0
    %470 = vmatpush1.msra.mxu0 %v350
    %471 = vmatprep.subr.mxu0 0.0
    %472 = vmatpush1.msra.mxu0 %v351
    %473 = vmatprep.subr.mxu0 0.0
    %474 = vmatpush1.msra.mxu0 %v352
    %475 = vmatprep.subr.mxu0 0.0
    %476 = vmatpush1.msra.mxu0 0.0
    %477 = vmatprep.subr.mxu0 0.0
    %478 = vmatpush1.msra.mxu0 0.0
    %479 = vmatprep.subr.mxu0 0.0
    %480 = vmatpush1.msra.mxu0 0.0
    %481 = vmatprep.subr.mxu0 0.0
    %482 = vmatpush1.msra.mxu0 0.0
    %483 = vmatprep.subr.mxu0 0.0
    %484 = vmatpush1.msra.mxu0 0.0
    %485 = vmatprep.subr.mxu0 0.0
    %486 = vmatpush1.msra.mxu0 0.0
    %487 = vmatprep.subr.mxu0 0.0
    %488 = vmatpush1.msra.mxu0 0.0
    %489 = vmatprep.subr.mxu0 0.0
    %490 = vmatpush1.msra.mxu0 0.0
    %491 = vmatprep.subr.mxu0 0.0
    %492 = vmatpush1.msra.mxu0 0.0
    %493 = vmatprep.subr.mxu0 0.0
    %494 = vmatpush1.msra.mxu0 0.0
    %495 = vmatprep.subr.mxu0 0.0
    %496 = vmatpush1.msra.mxu0 0.0
    %497 = vmatprep.subr.mxu0 0.0
    %498 = vmatpush1.msra.mxu0 0.0
    %499 = vmatprep.subr.mxu0 0.0
    %500 = vmatpush1.msra.mxu0 0.0
    %501 = vmatprep.subr.mxu0 0.0
    %502 = vmatpush1.msra.mxu0 0.0
    %503 = vmatprep.subr.mxu0 0.0
    %504 = vmatpush1.msra.mxu0 0.0
    %505 = vmatprep.subr.mxu0 0.0
    %506 = vmatpush1.msra.mxu0 0.0
    %507 = vmatprep.subr.mxu0 0.0
    %508 = vmatpush1.msra.mxu0 0.0
    %509 = vmatprep.subr.mxu0 0.0
    %510 = vmatpush1.msra.mxu0 0.0
    %511 = vmatprep.subr.mxu0 0.0
    %512 = vmatpush1.msra.mxu0 0.0
    %513 = vmatprep.subr.mxu0 0.0
    %514 = vmatpush1.msra.mxu0 0.0
    %515 = vmatprep.subr.mxu0 0.0
    %516 = vmatpush1.msra.mxu0 0.0
    %517 = vmatprep.subr.mxu0 0.0
    %518 = vmatpush1.msra.mxu0 0.0
    %519 = vmatprep.subr.mxu0 0.0
    %520 = vmatpush1.msra.mxu0 0.0
    %521 = vmatprep.subr.mxu0 0.0
    %522 = vmatpush1.msra.mxu0 0.0
    %523 = vmatprep.subr.mxu0 0.0
    %524 = vmatpush1.msra.mxu0 0.0
    %525 = vmatprep.subr.mxu0 0.0
    %526 = vmatpush1.msra.mxu0 0.0
    %527 = vmatprep.subr.mxu0 0.0
    %528 = vmatpush1.msra.mxu0 0.0
    %529 = vmatprep.subr.mxu0 0.0
    %530 = vmatpush1.msra.mxu0 0.0
    %531 = vmatprep.mubr.f32.mxu0 0.0
    %532 = vmatmul.mubr.f32.gmra.mrb[0].mxu0 %v465
    %v533 = vpop.f32.mrb[0].mxu0
    %v534 = vadd.f32 %v359, %v533
    %v535 = vpop.f32.mrb[0].mxu0
    %536 = vdwg.mxu0
    %v537 = vadd.f32 %v461, %v534
    %v538 = vxor.u32 %v537, 2147483648
    %v539 = vmul.f32 %v538, 1.442695
    %v540 = vpow.pop %v539
    %v541 = vadd.f32 %v540, 1.0
    %v542 = vrcp.pop %v541
    %v543 = vmul.f32 1.0, %v542
    %545 = vrot.lane.b32.xlu0 %v534, 64
    %v546 = vpop.permute.xlu0 %545
    %v548 = vmul.f32 %v543, %v546
    %550 = vrot.lane.b32.xlu0 %v548, 64
    %v551 = vpop.permute.xlu0 %550
    %v553 = vadd.f32 %v461, %v551
    %v554 = vtanh.pop %v553
    %v555 = vsub.f32 1.0, %v543
    %557 = vrot.lane.b32.xlu0 %v554, 96
    %v558 = vpop.permute.xlu0 %557
    %v560 = vmul.f32 %v555, %v558
    %v561 = vmul.f32 %v543, %v460
    %v562 = vadd.f32 %v560, %v561
    %v563 = vld [vmem:[#allocation2 + $0x4] sm:$0x3]
    %565 = vrot.lane.b32.xlu0 %v562, 96
    %v566 = vpop.permute.xlu0 %565
    %v567 = vsel %vm361, %v566, 0
    %569 = vmatprep.subr.mxu0 0.0
    %570 = vmatpush1.msra.mxu0 %v349
    %571 = vmatprep.subr.mxu0 0.0
    %572 = vmatpush1.msra.mxu0 %v350
    %573 = vmatprep.subr.mxu0 0.0
    %574 = vmatpush1.msra.mxu0 %v351
    %575 = vmatprep.subr.mxu0 0.0
    %576 = vmatpush1.msra.mxu0 %v352
    %577 = vmatprep.subr.mxu0 0.0
    %578 = vmatpush1.msra.mxu0 0.0
    %579 = vmatprep.subr.mxu0 0.0
    %580 = vmatpush1.msra.mxu0 0.0
    %581 = vmatprep.subr.mxu0 0.0
    %582 = vmatpush1.msra.mxu0 0.0
    %583 = vmatprep.subr.mxu0 0.0
    %584 = vmatpush1.msra.mxu0 0.0
    %585 = vmatprep.subr.mxu0 0.0
    %586 = vmatpush1.msra.mxu0 0.0
    %587 = vmatprep.subr.mxu0 0.0
    %588 = vmatpush1.msra.mxu0 0.0
    %589 = vmatprep.subr.mxu0 0.0
    %590 = vmatpush1.msra.mxu0 0.0
    %591 = vmatprep.subr.mxu0 0.0
    %592 = vmatpush1.msra.mxu0 0.0
    %593 = vmatprep.subr.mxu0 0.0
    %594 = vmatpush1.msra.mxu0 0.0
    %595 = vmatprep.subr.mxu0 0.0
    %596 = vmatpush1.msra.mxu0 0.0
    %597 = vmatprep.subr.mxu0 0.0
    %598 = vmatpush1.msra.mxu0 0.0
    %599 = vmatprep.subr.mxu0 0.0
    %600 = vmatpush1.msra.mxu0 0.0
    %601 = vmatprep.subr.mxu0 0.0
    %602 = vmatpush1.msra.mxu0 0.0
    %603 = vmatprep.subr.mxu0 0.0
    %604 = vmatpush1.msra.mxu0 0.0
    %605 = vmatprep.subr.mxu0 0.0
    %606 = vmatpush1.msra.mxu0 0.0
    %607 = vmatprep.subr.mxu0 0.0
    %608 = vmatpush1.msra.mxu0 0.0
    %609 = vmatprep.subr.mxu0 0.0
    %610 = vmatpush1.msra.mxu0 0.0
    %611 = vmatprep.subr.mxu0 0.0
    %612 = vmatpush1.msra.mxu0 0.0
    %613 = vmatprep.subr.mxu0 0.0
    %614 = vmatpush1.msra.mxu0 0.0
    %615 = vmatprep.subr.mxu0 0.0
    %616 = vmatpush1.msra.mxu0 0.0
    %617 = vmatprep.subr.mxu0 0.0
    %618 = vmatpush1.msra.mxu0 0.0
    %619 = vmatprep.subr.mxu0 0.0
    %620 = vmatpush1.msra.mxu0 0.0
    %621 = vmatprep.subr.mxu0 0.0
    %622 = vmatpush1.msra.mxu0 0.0
    %623 = vmatprep.subr.mxu0 0.0
    %624 = vmatpush1.msra.mxu0 0.0
    %625 = vmatprep.subr.mxu0 0.0
    %626 = vmatpush1.msra.mxu0 0.0
    %627 = vmatprep.subr.mxu0 0.0
    %628 = vmatpush1.msra.mxu0 0.0
    %629 = vmatprep.subr.mxu0 0.0
    %630 = vmatpush1.msra.mxu0 0.0
    %631 = vmatprep.subr.mxu0 0.0
    %632 = vmatpush1.msra.mxu0 0.0
    %633 = vmatprep.mubr.f32.mxu0 0.0
    %634 = vmatmul.mubr.f32.gmra.mrb[0].mxu0 %v567
    %v635 = vpop.f32.mrb[0].mxu0
    %v636 = vadd.f32 %v359, %v635
    %v637 = vpop.f32.mrb[0].mxu0
    %638 = vdwg.mxu0
    %v639 = vadd.f32 %v563, %v636
    %v640 = vxor.u32 %v639, 2147483648
    %v641 = vmul.f32 %v640, 1.442695
    %v642 = vpow.pop %v641
    %v643 = vadd.f32 %v642, 1.0
    %v644 = vrcp.pop %v643
    %v645 = vmul.f32 1.0, %v644
    %647 = vrot.lane.b32.xlu0 %v636, 64
    %v648 = vpop.permute.xlu0 %647
    %v650 = vmul.f32 %v645, %v648
    %652 = vrot.lane.b32.xlu0 %v650, 64
    %v653 = vpop.permute.xlu0 %652
    %v655 = vadd.f32 %v563, %v653
    %v656 = vtanh.pop %v655
    %v657 = vsub.f32 1.0, %v645
    %659 = vrot.lane.b32.xlu0 %v656, 96
    %v660 = vpop.permute.xlu0 %659
    %v662 = vmul.f32 %v657, %v660
    %v663 = vmul.f32 %v645, %v562
    %v664 = vadd.f32 %v662, %v663
    %v665 = vld [vmem:[#allocation2 + $0x6] sm:$0x3]
    %667 = vrot.lane.b32.xlu0 %v664, 96
    %v668 = vpop.permute.xlu0 %667
    %v669 = vsel %vm361, %v668, 0
    %671 = vmatprep.subr.mxu0 0.0
    %672 = vmatpush1.msra.mxu0 %v349
    %673 = vmatprep.subr.mxu0 0.0
    %674 = vmatpush1.msra.mxu0 %v350
    %675 = vmatprep.subr.mxu0 0.0
    %676 = vmatpush1.msra.mxu0 %v351
    %677 = vmatprep.subr.mxu0 0.0
    %678 = vmatpush1.msra.mxu0 %v352
    %679 = vmatprep.subr.mxu0 0.0
    %680 = vmatpush1.msra.mxu0 0.0
    %681 = vmatprep.subr.mxu0 0.0
    %682 = vmatpush1.msra.mxu0 0.0
    %683 = vmatprep.subr.mxu0 0.0
    %684 = vmatpush1.msra.mxu0 0.0
    %685 = vmatprep.subr.mxu0 0.0
    %686 = vmatpush1.msra.mxu0 0.0
    %687 = vmatprep.subr.mxu0 0.0
    %688 = vmatpush1.msra.mxu0 0.0
    %689 = vmatprep.subr.mxu0 0.0
    %690 = vmatpush1.msra.mxu0 0.0
    %691 = vmatprep.subr.mxu0 0.0
    %692 = vmatpush1.msra.mxu0 0.0
    %693 = vmatprep.subr.mxu0 0.0
    %694 = vmatpush1.msra.mxu0 0.0
    %695 = vmatprep.subr.mxu0 0.0
    %696 = vmatpush1.msra.mxu0 0.0
    %697 = vmatprep.subr.mxu0 0.0
    %698 = vmatpush1.msra.mxu0 0.0
    %699 = vmatprep.subr.mxu0 0.0
    %700 = vmatpush1.msra.mxu0 0.0
    %701 = vmatprep.subr.mxu0 0.0
    %702 = vmatpush1.msra.mxu0 0.0
    %703 = vmatprep.subr.mxu0 0.0
    %704 = vmatpush1.msra.mxu0 0.0
    %705 = vmatprep.subr.mxu0 0.0
    %706 = vmatpush1.msra.mxu0 0.0
    %707 = vmatprep.subr.mxu0 0.0
    %708 = vmatpush1.msra.mxu0 0.0
    %709 = vmatprep.subr.mxu0 0.0
    %710 = vmatpush1.msra.mxu0 0.0
    %711 = vmatprep.subr.mxu0 0.0
    %712 = vmatpush1.msra.mxu0 0.0
    %713 = vmatprep.subr.mxu0 0.0
    %714 = vmatpush1.msra.mxu0 0.0
    %715 = vmatprep.subr.mxu0 0.0
    %716 = vmatpush1.msra.mxu0 0.0
    %717 = vmatprep.subr.mxu0 0.0
    %718 = vmatpush1.msra.mxu0 0.0
    %719 = vmatprep.subr.mxu0 0.0
    %720 = vmatpush1.msra.mxu0 0.0
    %721 = vmatprep.subr.mxu0 0.0
    %722 = vmatpush1.msra.mxu0 0.0
    %723 = vmatprep.subr.mxu0 0.0
    %724 = vmatpush1.msra.mxu0 0.0
    %725 = vmatprep.subr.mxu0 0.0
    %726 = vmatpush1.msra.mxu0 0.0
    %727 = vmatprep.subr.mxu0 0.0
    %728 = vmatpush1.msra.mxu0 0.0
    %729 = vmatprep.subr.mxu0 0.0
    %730 = vmatpush1.msra.mxu0 0.0
    %731 = vmatprep.subr.mxu0 0.0
    %732 = vmatpush1.msra.mxu0 0.0
    %733 = vmatprep.subr.mxu0 0.0
    %734 = vmatpush1.msra.mxu0 0.0
    %735 = vmatprep.mubr.f32.mxu0 0.0
    %736 = vmatmul.mubr.f32.gmra.mrb[0].mxu0 %v669
    %v737 = vpop.f32.mrb[0].mxu0
    %v738 = vadd.f32 %v359, %v737
    %v739 = vpop.f32.mrb[0].mxu0
    %740 = vdwg.mxu0
    %v741 = vadd.f32 %v665, %v738
    %v742 = vxor.u32 %v741, 2147483648
    %v743 = vmul.f32 %v742, 1.442695
    %v744 = vpow.pop %v743
    %v745 = vadd.f32 %v744, 1.0
    %v746 = vrcp.pop %v745
    %v747 = vmul.f32 1.0, %v746
    %749 = vrot.lane.b32.xlu0 %v738, 64
    %v750 = vpop.permute.xlu0 %749
    %v752 = vmul.f32 %v747, %v750
    %754 = vrot.lane.b32.xlu0 %v752, 64
    %v755 = vpop.permute.xlu0 %754
    %v757 = vadd.f32 %v665, %v755
    %v758 = vtanh.pop %v757
    %v759 = vsub.f32 1.0, %v747
    %761 = vrot.lane.b32.xlu0 %v758, 96
    %v762 = vpop.permute.xlu0 %761
    %v764 = vmul.f32 %v759, %v762
    %v765 = vmul.f32 %v747, %v664
    %v766 = vadd.f32 %v764, %v765
    %v767 = vld [vmem:[#allocation2 + $0x8] sm:$0x3]
    %769 = vrot.lane.b32.xlu0 %v766, 96
    %v770 = vpop.permute.xlu0 %769
    %v771 = vsel %vm361, %v770, 0
    %773 = vmatprep.subr.mxu0 0.0
    %774 = vmatpush1.msra.mxu0 %v349
    %775 = vmatprep.subr.mxu0 0.0
    %776 = vmatpush1.msra.mxu0 %v350
    %777 = vmatprep.subr.mxu0 0.0
    %778 = vmatpush1.msra.mxu0 %v351
    %779 = vmatprep.subr.mxu0 0.0
    %780 = vmatpush1.msra.mxu0 %v352
    %781 = vmatprep.subr.mxu0 0.0
    %782 = vmatpush1.msra.mxu0 0.0
    %783 = vmatprep.subr.mxu0 0.0
    %784 = vmatpush1.msra.mxu0 0.0
    %785 = vmatprep.subr.mxu0 0.0
    %786 = vmatpush1.msra.mxu0 0.0
    %787 = vmatprep.subr.mxu0 0.0
    %788 = vmatpush1.msra.mxu0 0.0
    %789 = vmatprep.subr.mxu0 0.0
    %790 = vmatpush1.msra.mxu0 0.0
    %791 = vmatprep.subr.mxu0 0.0
    %792 = vmatpush1.msra.mxu0 0.0
    %793 = vmatprep.subr.mxu0 0.0
    %794 = vmatpush1.msra.mxu0 0.0
    %795 = vmatprep.subr.mxu0 0.0
    %796 = vmatpush1.msra.mxu0 0.0
    %797 = vmatprep.subr.mxu0 0.0
    %798 = vmatpush1.msra.mxu0 0.0
    %799 = vmatprep.subr.mxu0 0.0
    %800 = vmatpush1.msra.mxu0 0.0
    %801 = vmatprep.subr.mxu0 0.0
    %802 = vmatpush1.msra.mxu0 0.0
    %803 = vmatprep.subr.mxu0 0.0
    %804 = vmatpush1.msra.mxu0 0.0
    %805 = vmatprep.subr.mxu0 0.0
    %806 = vmatpush1.msra.mxu0 0.0
    %807 = vmatprep.subr.mxu0 0.0
    %808 = vmatpush1.msra.mxu0 0.0
    %809 = vmatprep.subr.mxu0 0.0
    %810 = vmatpush1.msra.mxu0 0.0
    %811 = vmatprep.subr.mxu0 0.0
    %812 = vmatpush1.msra.mxu0 0.0
    %813 = vmatprep.subr.mxu0 0.0
    %814 = vmatpush1.msra.mxu0 0.0
    %815 = vmatprep.subr.mxu0 0.0
    %816 = vmatpush1.msra.mxu0 0.0
    %817 = vmatprep.subr.mxu0 0.0
    %818 = vmatpush1.msra.mxu0 0.0
    %819 = vmatprep.subr.mxu0 0.0
    %820 = vmatpush1.msra.mxu0 0.0
    %821 = vmatprep.subr.mxu0 0.0
    %822 = vmatpush1.msra.mxu0 0.0
    %823 = vmatprep.subr.mxu0 0.0
    %824 = vmatpush1.msra.mxu0 0.0
    %825 = vmatprep.subr.mxu0 0.0
    %826 = vmatpush1.msra.mxu0 0.0
    %827 = vmatprep.subr.mxu0 0.0
    %828 = vmatpush1.msra.mxu0 0.0
    %829 = vmatprep.subr.mxu0 0.0
    %830 = vmatpush1.msra.mxu0 0.0
    %831 = vmatprep.subr.mxu0 0.0
    %832 = vmatpush1.msra.mxu0 0.0
    %833 = vmatprep.subr.mxu0 0.0
    %834 = vmatpush1.msra.mxu0 0.0
    %835 = vmatprep.subr.mxu0 0.0
    %836 = vmatpush1.msra.mxu0 0.0
    %837 = vmatprep.mubr.f32.mxu0 0.0
    %838 = vmatmul.mubr.f32.gmra.mrb[0].mxu0 %v771
    %v839 = vpop.f32.mrb[0].mxu0
    %v840 = vadd.f32 %v359, %v839
    %v841 = vpop.f32.mrb[0].mxu0
    %842 = vdwg.mxu0
    %v843 = vadd.f32 %v767, %v840
    %v844 = vxor.u32 %v843, 2147483648
    %v845 = vmul.f32 %v844, 1.442695
    %v846 = vpow.pop %v845
    %v847 = vadd.f32 %v846, 1.0
    %v848 = vrcp.pop %v847
    %v849 = vmul.f32 1.0, %v848
    %851 = vrot.lane.b32.xlu0 %v840, 64
    %v852 = vpop.permute.xlu0 %851
    %v854 = vmul.f32 %v849, %v852
    %856 = vrot.lane.b32.xlu0 %v854, 64
    %v857 = vpop.permute.xlu0 %856
    %v859 = vadd.f32 %v767, %v857
    %v860 = vtanh.pop %v859
    %v861 = vsub.f32 1.0, %v849
    %863 = vrot.lane.b32.xlu0 %v860, 96
    %v864 = vpop.permute.xlu0 %863
    %v866 = vmul.f32 %v861, %v864
    %v867 = vmul.f32 %v849, %v766
    %v868 = vadd.f32 %v866, %v867
    %v869 = vld [vmem:[#allocation2 + $0xa] sm:$0x3]
    %871 = vrot.lane.b32.xlu0 %v868, 96
    %v872 = vpop.permute.xlu0 %871
    %v873 = vsel %vm361, %v872, 0
    %875 = vmatprep.subr.mxu0 0.0
    %876 = vmatpush1.msra.mxu0 %v349
    %877 = vmatprep.subr.mxu0 0.0
    %878 = vmatpush1.msra.mxu0 %v350
    %879 = vmatprep.subr.mxu0 0.0
    %880 = vmatpush1.msra.mxu0 %v351
    %881 = vmatprep.subr.mxu0 0.0
    %882 = vmatpush1.msra.mxu0 %v352
    %883 = vmatprep.subr.mxu0 0.0
    %884 = vmatpush1.msra.mxu0 0.0
    %885 = vmatprep.subr.mxu0 0.0
    %886 = vmatpush1.msra.mxu0 0.0
    %887 = vmatprep.subr.mxu0 0.0
    %888 = vmatpush1.msra.mxu0 0.0
    %889 = vmatprep.subr.mxu0 0.0
    %890 = vmatpush1.msra.mxu0 0.0
    %891 = vmatprep.subr.mxu0 0.0
    %892 = vmatpush1.msra.mxu0 0.0
    %893 = vmatprep.subr.mxu0 0.0
    %894 = vmatpush1.msra.mxu0 0.0
    %895 = vmatprep.subr.mxu0 0.0
    %896 = vmatpush1.msra.mxu0 0.0
    %897 = vmatprep.subr.mxu0 0.0
    %898 = vmatpush1.msra.mxu0 0.0
    %899 = vmatprep.subr.mxu0 0.0
    %900 = vmatpush1.msra.mxu0 0.0
    %901 = vmatprep.subr.mxu0 0.0
    %902 = vmatpush1.msra.mxu0 0.0
    %903 = vmatprep.subr.mxu0 0.0
    %904 = vmatpush1.msra.mxu0 0.0
    %905 = vmatprep.subr.mxu0 0.0
    %906 = vmatpush1.msra.mxu0 0.0
    %907 = vmatprep.subr.mxu0 0.0
    %908 = vmatpush1.msra.mxu0 0.0
    %909 = vmatprep.subr.mxu0 0.0
    %910 = vmatpush1.msra.mxu0 0.0
    %911 = vmatprep.subr.mxu0 0.0
    %912 = vmatpush1.msra.mxu0 0.0
    %913 = vmatprep.subr.mxu0 0.0
    %914 = vmatpush1.msra.mxu0 0.0
    %915 = vmatprep.subr.mxu0 0.0
    %916 = vmatpush1.msra.mxu0 0.0
    %917 = vmatprep.subr.mxu0 0.0
    %918 = vmatpush1.msra.mxu0 0.0
    %919 = vmatprep.subr.mxu0 0.0
    %920 = vmatpush1.msra.mxu0 0.0
    %921 = vmatprep.subr.mxu0 0.0
    %922 = vmatpush1.msra.mxu0 0.0
    %923 = vmatprep.subr.mxu0 0.0
    %924 = vmatpush1.msra.mxu0 0.0
    %925 = vmatprep.subr.mxu0 0.0
    %926 = vmatpush1.msra.mxu0 0.0
    %927 = vmatprep.subr.mxu0 0.0
    %928 = vmatpush1.msra.mxu0 0.0
    %929 = vmatprep.subr.mxu0 0.0
    %930 = vmatpush1.msra.mxu0 0.0
    %931 = vmatprep.subr.mxu0 0.0
    %932 = vmatpush1.msra.mxu0 0.0
    %933 = vmatprep.subr.mxu0 0.0
    %934 = vmatpush1.msra.mxu0 0.0
    %935 = vmatprep.subr.mxu0 0.0
    %936 = vmatpush1.msra.mxu0 0.0
    %937 = vmatprep.subr.mxu0 0.0
    %938 = vmatpush1.msra.mxu0 0.0
    %939 = vmatprep.mubr.f32.mxu0 0.0
    %940 = vmatmul.mubr.f32.gmra.mrb[0].mxu0 %v873
    %v941 = vpop.f32.mrb[0].mxu0
    %v942 = vadd.f32 %v359, %v941
    %v943 = vpop.f32.mrb[0].mxu0
    %944 = vdwg.mxu0
    %v945 = vadd.f32 %v869, %v942
    %v946 = vxor.u32 %v945, 2147483648
    %v947 = vmul.f32 %v946, 1.442695
    %v948 = vpow.pop %v947
    %v949 = vadd.f32 %v948, 1.0
    %v950 = vrcp.pop %v949
    %v951 = vmul.f32 1.0, %v950
    %953 = vrot.lane.b32.xlu0 %v942, 64
    %v954 = vpop.permute.xlu0 %953
    %v956 = vmul.f32 %v951, %v954
    %958 = vrot.lane.b32.xlu0 %v956, 64
    %v959 = vpop.permute.xlu0 %958
    %v961 = vadd.f32 %v869, %v959
    %v962 = vtanh.pop %v961
    %v963 = vsub.f32 1.0, %v951
    %965 = vrot.lane.b32.xlu0 %v962, 96
    %v966 = vpop.permute.xlu0 %965
    %v968 = vmul.f32 %v963, %v966
    %v969 = vmul.f32 %v951, %v868
    %v970 = vadd.f32 %v968, %v969
    %v971 = vld [vmem:[#allocation2 + $0xc] sm:$0x3]
    %973 = vrot.lane.b32.xlu0 %v970, 96
    %v974 = vpop.permute.xlu0 %973
    %v975 = vsel %vm361, %v974, 0
    %977 = vmatprep.subr.mxu0 0.0
    %978 = vmatpush1.msra.mxu0 %v349
    %979 = vmatprep.subr.mxu0 0.0
    %980 = vmatpush1.msra.mxu0 %v350
    %981 = vmatprep.subr.mxu0 0.0
    %982 = vmatpush1.msra.mxu0 %v351
    %983 = vmatprep.subr.mxu0 0.0
    %984 = vmatpush1.msra.mxu0 %v352
    %985 = vmatprep.subr.mxu0 0.0
    %986 = vmatpush1.msra.mxu0 0.0
    %987 = vmatprep.subr.mxu0 0.0
    %988 = vmatpush1.msra.mxu0 0.0
    %989 = vmatprep.subr.mxu0 0.0
    %990 = vmatpush1.msra.mxu0 0.0
    %991 = vmatprep.subr.mxu0 0.0
    %992 = vmatpush1.msra.mxu0 0.0
    %993 = vmatprep.subr.mxu0 0.0
    %994 = vmatpush1.msra.mxu0 0.0
    %995 = vmatprep.subr.mxu0 0.0
    %996 = vmatpush1.msra.mxu0 0.0
    %997 = vmatprep.subr.mxu0 0.0
    %998 = vmatpush1.msra.mxu0 0.0
    %999 = vmatprep.subr.mxu0 0.0
    %1000 = vmatpush1.msra.mxu0 0.0
    %1001 = vmatprep.subr.mxu0 0.0
    %1002 = vmatpush1.msra.mxu0 0.0
    %1003 = vmatprep.subr.mxu0 0.0
    %1004 = vmatpush1.msra.mxu0 0.0
    %1005 = vmatprep.subr.mxu0 0.0
    %1006 = vmatpush1.msra.mxu0 0.0
    %1007 = vmatprep.subr.mxu0 0.0
    %1008 = vmatpush1.msra.mxu0 0.0
    %1009 = vmatprep.subr.mxu0 0.0
    %1010 = vmatpush1.msra.mxu0 0.0
    %1011 = vmatprep.subr.mxu0 0.0
    %1012 = vmatpush1.msra.mxu0 0.0
    %1013 = vmatprep.subr.mxu0 0.0
    %1014 = vmatpush1.msra.mxu0 0.0
    %1015 = vmatprep.subr.mxu0 0.0
    %1016 = vmatpush1.msra.mxu0 0.0
    %1017 = vmatprep.subr.mxu0 0.0
    %1018 = vmatpush1.msra.mxu0 0.0
    %1019 = vmatprep.subr.mxu0 0.0
    %1020 = vmatpush1.msra.mxu0 0.0
    %1021 = vmatprep.subr.mxu0 0.0
    %1022 = vmatpush1.msra.mxu0 0.0
    %1023 = vmatprep.subr.mxu0 0.0
    %1024 = vmatpush1.msra.mxu0 0.0
    %1025 = vmatprep.subr.mxu0 0.0
    %1026 = vmatpush1.msra.mxu0 0.0
    %1027 = vmatprep.subr.mxu0 0.0
    %1028 = vmatpush1.msra.mxu0 0.0
    %1029 = vmatprep.subr.mxu0 0.0
    %1030 = vmatpush1.msra.mxu0 0.0
    %1031 = vmatprep.subr.mxu0 0.0
    %1032 = vmatpush1.msra.mxu0 0.0
    %1033 = vmatprep.subr.mxu0 0.0
    %1034 = vmatpush1.msra.mxu0 0.0
    %1035 = vmatprep.subr.mxu0 0.0
    %1036 = vmatpush1.msra.mxu0 0.0
    %1037 = vmatprep.subr.mxu0 0.0
    %1038 = vmatpush1.msra.mxu0 0.0
    %1039 = vmatprep.subr.mxu0 0.0
    %1040 = vmatpush1.msra.mxu0 0.0
    %1041 = vmatprep.mubr.f32.mxu0 0.0
    %1042 = vmatmul.mubr.f32.gmra.mrb[0].mxu0 %v975
    %v1043 = vpop.f32.mrb[0].mxu0
    %v1044 = vadd.f32 %v359, %v1043
    %v1045 = vpop.f32.mrb[0].mxu0
    %1046 = vdwg.mxu0
    %v1047 = vadd.f32 %v971, %v1044
    %v1048 = vxor.u32 %v1047, 2147483648
    %v1049 = vmul.f32 %v1048, 1.442695
    %v1050 = vpow.pop %v1049
    %v1051 = vadd.f32 %v1050, 1.0
    %v1052 = vrcp.pop %v1051
    %v1053 = vmul.f32 1.0, %v1052
    %1055 = vrot.lane.b32.xlu0 %v1044, 64
    %v1056 = vpop.permute.xlu0 %1055
    %v1058 = vmul.f32 %v1053, %v1056
    %1060 = vrot.lane.b32.xlu0 %v1058, 64
    %v1061 = vpop.permute.xlu0 %1060
    %v1063 = vadd.f32 %v971, %v1061
    %v1064 = vtanh.pop %v1063
    %v1065 = vsub.f32 1.0, %v1053
    %1067 = vrot.lane.b32.xlu0 %v1064, 96
    %v1068 = vpop.permute.xlu0 %1067
    %v1070 = vmul.f32 %v1065, %v1068
    %v1071 = vmul.f32 %v1053, %v970
    %v1072 = vadd.f32 %v1070, %v1071
    %v1073 = vld [vmem:[#allocation2 + $0xe] sm:$0x3]
    %1075 = vrot.lane.b32.xlu0 %v1072, 96
    %v1076 = vpop.permute.xlu0 %1075
    %v1077 = vsel %vm361, %v1076, 0
    %1079 = vmatprep.subr.mxu0 0.0
    %1080 = vmatpush1.msra.mxu0 %v349
    %1081 = vmatprep.subr.mxu0 0.0
    %1082 = vmatpush1.msra.mxu0 %v350
    %1083 = vmatprep.subr.mxu0 0.0
    %1084 = vmatpush1.msra.mxu0 %v351
    %1085 = vmatprep.subr.mxu0 0.0
    %1086 = vmatpush1.msra.mxu0 %v352
    %1087 = vmatprep.subr.mxu0 0.0
    %1088 = vmatpush1.msra.mxu0 0.0
    %1089 = vmatprep.subr.mxu0 0.0
    %1090 = vmatpush1.msra.mxu0 0.0
    %1091 = vmatprep.subr.mxu0 0.0
    %1092 = vmatpush1.msra.mxu0 0.0
    %1093 = vmatprep.subr.mxu0 0.0
    %1094 = vmatpush1.msra.mxu0 0.0
    %1095 = vmatprep.subr.mxu0 0.0
    %1096 = vmatpush1.msra.mxu0 0.0
    %1097 = vmatprep.subr.mxu0 0.0
    %1098 = vmatpush1.msra.mxu0 0.0
    %1099 = vmatprep.subr.mxu0 0.0
    %1100 = vmatpush1.msra.mxu0 0.0
    %1101 = vmatprep.subr.mxu0 0.0
    %1102 = vmatpush1.msra.mxu0 0.0
    %1103 = vmatprep.subr.mxu0 0.0
    %1104 = vmatpush1.msra.mxu0 0.0
    %1105 = vmatprep.subr.mxu0 0.0
    %1106 = vmatpush1.msra.mxu0 0.0
    %1107 = vmatprep.subr.mxu0 0.0
    %1108 = vmatpush1.msra.mxu0 0.0
    %1109 = vmatprep.subr.mxu0 0.0
    %1110 = vmatpush1.msra.mxu0 0.0
    %1111 = vmatprep.subr.mxu0 0.0
    %1112 = vmatpush1.msra.mxu0 0.0
    %1113 = vmatprep.subr.mxu0 0.0
    %1114 = vmatpush1.msra.mxu0 0.0
    %1115 = vmatprep.subr.mxu0 0.0
    %1116 = vmatpush1.msra.mxu0 0.0
    %1117 = vmatprep.subr.mxu0 0.0
    %1118 = vmatpush1.msra.mxu0 0.0
    %1119 = vmatprep.subr.mxu0 0.0
    %1120 = vmatpush1.msra.mxu0 0.0
    %1121 = vmatprep.subr.mxu0 0.0
    %1122 = vmatpush1.msra.mxu0 0.0
    %1123 = vmatprep.subr.mxu0 0.0
    %1124 = vmatpush1.msra.mxu0 0.0
    %1125 = vmatprep.subr.mxu0 0.0
    %1126 = vmatpush1.msra.mxu0 0.0
    %1127 = vmatprep.subr.mxu0 0.0
    %1128 = vmatpush1.msra.mxu0 0.0
    %1129 = vmatprep.subr.mxu0 0.0
    %1130 = vmatpush1.msra.mxu0 0.0
    %1131 = vmatprep.subr.mxu0 0.0
    %1132 = vmatpush1.msra.mxu0 0.0
    %1133 = vmatprep.subr.mxu0 0.0
    %1134 = vmatpush1.msra.mxu0 0.0
    %1135 = vmatprep.subr.mxu0 0.0
    %1136 = vmatpush1.msra.mxu0 0.0
    %1137 = vmatprep.subr.mxu0 0.0
    %1138 = vmatpush1.msra.mxu0 0.0
    %1139 = vmatprep.subr.mxu0 0.0
    %1140 = vmatpush1.msra.mxu0 0.0
    %1141 = vmatprep.subr.mxu0 0.0
    %1142 = vmatpush1.msra.mxu0 0.0
    %1143 = vmatprep.mubr.f32.mxu0 0.0
    %1144 = vmatmul.mubr.f32.gmra.mrb[0].mxu0 %v1077
    %v1145 = vpop.f32.mrb[0].mxu0
    %v1146 = vadd.f32 %v359, %v1145
    %v1147 = vpop.f32.mrb[0].mxu0
    %1148 = vdwg.mxu0
    %v1149 = vadd.f32 %v1073, %v1146
    %v1150 = vxor.u32 %v1149, 2147483648
    %v1151 = vmul.f32 %v1150, 1.442695
    %v1152 = vpow.pop %v1151
    %v1153 = vadd.f32 %v1152, 1.0
    %v1154 = vrcp.pop %v1153
    %v1155 = vmul.f32 1.0, %v1154
    %1157 = vrot.lane.b32.xlu0 %v1146, 64
    %v1158 = vpop.permute.xlu0 %1157
    %v1160 = vmul.f32 %v1155, %v1158
    %1162 = vrot.lane.b32.xlu0 %v1160, 64
    %v1163 = vpop.permute.xlu0 %1162
    %v1165 = vadd.f32 %v1073, %v1163
    %v1166 = vtanh.pop %v1165
    %v1167 = vsub.f32 1.0, %v1155
    %1169 = vrot.lane.b32.xlu0 %v1166, 96
    %v1170 = vpop.permute.xlu0 %1169
    %v1172 = vmul.f32 %v1167, %v1170
    %v1173 = vmul.f32 %v1155, %v1072
    %v1174 = vadd.f32 %v1172, %v1173
    %1176 = vrot.lane.b32.xlu0 %v1174, 96
    %v1177 = vpop.permute.xlu0 %1176
    %vm1179 = vcmask 254976
    %1180 = vst.msk [vmem:[#allocation3] sm:$0x3] %vm1179, %v1177
    // Predicated region
    $region22: #{rollout_encoder_forward.5} parent=1 // pred_check
      _
    $region23: #{rollout_encoder_forward.5} parent=1 // pred_check_branch
      %1182 = sbr.rel (0) target = $region25
    $region24: #{rollout_encoder_forward.5} parent=1 // pred_region
      %s1184 = ssub.s32 32, 32
      %1185 = vsyncadd [#allocation4], %s1184
      %s1187 = sshll.u32 [#allocation3], 4
      %s1188 = int_to_ptr.vmem [resolvable:$true] %s1187
      %1190 = dma.vmem_to_hbm [thread:$0]  %s1188, 32, %s5, [#allocation4]
    $region25: #{rollout_encoder_forward.5} parent=1 // pred_fallthru
      _
    // Predicated region
    $region26: #{rollout_encoder_forward.5} parent=1 // pred_check
      _
    $region27: #{rollout_encoder_forward.5} parent=1 // pred_check_branch
      %1192 = sbr.rel (0) target = $region29
    $region28: #{rollout_encoder_forward.5} parent=1 // pred_region
      %1193 = dma.done [#allocation4], 32
    $region29: #{rollout_encoder_forward.5} parent=1 // pred_fallthru
      _
    %1194 = vsyncpa [#allocation4], 1

</llo_original>
